<compile_context>
chip_gen: v5e
topology: v5e:2x2
jax: 0.10.0
libtpu: 0.0.40
codegen_flags: <defaults>
</compile_context>

<pallas_src>
import numpy as np
import jax
import jax.numpy as jnp
from jax import lax
from jax.experimental import pallas as pl
from jax.experimental.pallas import tpu as pltpu


# ----------------------------------------------------------------------------
# Small helpers.
# ----------------------------------------------------------------------------
def _round_up(x, m):
    return ((x + m - 1) // m) * m


def _pad_axis(x, size, axis):
    pad = size - x.shape[axis]
    if pad <= 0:
        return x
    widths = [(0, 0)] * x.ndim
    widths[axis] = (0, pad)
    return jnp.pad(x, widths)


def _full_spec(arr):
    nd = arr.ndim
    return pl.BlockSpec(arr.shape, lambda i: (0,) * nd)


def _choose_b_tile(B, T, D, H, budget_bytes=12 * 1024 * 1024):
    """Sublane-aligned batch tile, as large as a conservative VMEM budget
    allows (works within the default scoped-VMEM limit on v5e/v6e/v7x)."""
    # per-batch-row resident bytes per grid step:
    #   gi_f + gi_b scratch : 2 * T * 3H * 4
    #   enc_f + enc_b       : 2 * T * H  * 4
    #   double-buffered x / mask(/tok) input blocks: ~2 * T * (D + 2) * 4
    per_row = T * (6 * H + 2 * H) * 4 + 2 * T * (D + 2) * 4
    cap = max(8, (budget_bytes // max(per_row, 1)) // 8 * 8)
    b_aligned = _round_up(B, 8)
    return int(min(128, cap, b_aligned))


# ----------------------------------------------------------------------------
# Shared in-kernel bidirectional GRU + masked-softmax attention.
# ----------------------------------------------------------------------------
def _bigru_attention(x_ref, mask_ref,
                     wih_f_ref, bpre_f_ref, whh_f_ref, bhhn_f_ref,
                     wih_b_ref, bpre_b_ref, whh_b_ref, bhhn_b_ref,
                     lin_wf_ref, lin_wb_ref, lin_b_ref, att_ref,
                     gi_f_ref, gi_b_ref, enc_f_ref, enc_b_ref):
    f32 = jnp.float32
    bf16 = jnp.bfloat16
    T, B, D = x_ref.shape
    H = whh_f_ref.shape[0]
    H3 = 3 * H

    # ---- hoisted, gate-fused input-side matmuls (bf16 x bf16 -> f32) ----
    x2 = x_ref[...].reshape(T * B, D).astype(bf16)
    gi_f_ref[...] = (jnp.dot(x2, wih_f_ref[...], preferred_element_type=f32)
                     + bpre_f_ref[...]).reshape(T, B, H3)
    gi_b_ref[...] = (jnp.dot(x2, wih_b_ref[...], preferred_element_type=f32)
                     + bpre_b_ref[...]).reshape(T, B, H3)

    # Recurrent weights / biases loaded once, outside the loop (f32).
    whh_f = whh_f_ref[...]
    whh_b = whh_b_ref[...]
    bhhn_f = bhhn_f_ref[...]
    bhhn_b = bhhn_b_ref[...]

    def cell(gi, whh, b_n, h):
        # gi: [B, 3H] precomputed x@Wih + (bih [+ bhh for r,z]); fused h@Whh.
        gh = jnp.dot(h, whh, preferred_element_type=f32)          # [B, 3H]
        rz = jax.nn.sigmoid(gi[:, :2 * H] + gh[:, :2 * H])
        r, z = rz[:, :H], rz[:, H:]
        n = jnp.tanh(gi[:, 2 * H:] + r * (gh[:, 2 * H:] + b_n))
        return (1.0 - z) * n + z * h

    def step(i, carry):
        h_f, h_b = carry
        tb = T - 1 - i
        m_f = mask_ref[i]                                         # [B, 1]
        m_b = mask_ref[tb]
        hf_new = cell(gi_f_ref[i], whh_f, bhhn_f, h_f)
        hb_new = cell(gi_b_ref[tb], whh_b, bhhn_b, h_b)
        h_f = jnp.where(m_f > 0.0, hf_new, h_f)    # freeze past sequence end
        h_b = jnp.where(m_b > 0.0, hb_new, h_b)    # bwd starts at true end
        enc_f_ref[i] = jnp.where(m_f > 0.0, h_f, 0.0)   # zero padded steps
        enc_b_ref[tb] = jnp.where(m_b > 0.0, h_b, 0.0)
        return h_f, h_b

    h0 = jnp.zeros((B, H), f32)
    # Interleaved fwd/bwd recurrences; unroll only when T is small.
    _ = lax.fori_loop(0, T, step, (h0, h0), unroll=(T <= 16))

    # ---- tanh(Linear) + attention, split-K over fwd/bwd halves (no concat) --
    enc_f = enc_f_ref[...]
    enc_b = enc_b_ref[...]
    emb2 = jnp.tanh(
        jnp.dot(enc_f.reshape(T * B, H).astype(bf16), lin_wf_ref[...],
                preferred_element_type=f32)
        + jnp.dot(enc_b.reshape(T * B, H).astype(bf16), lin_wb_ref[...],
                  preferred_element_type=f32)
        + lin_b_ref[...])
    # Attention logit as VPU multiply + lane reduce (avoid an N=1 MXU matvec).
    att = jnp.sum(emb2 * att_ref[...], axis=-1, keepdims=True).reshape(T, B, 1)

    # Masked softmax over time. The stability max `m` is taken over VALID
    # positions only (and >= 0), so  exp(att-m)*mask / (sum + 1e-4*exp(-m))
    # equals the torch math  exp(att)*mask / (sum(exp(att)*mask) + 1e-4)
    # exactly, while staying overflow-safe (incl. fully-padded batch rows).
    mask = mask_ref[...]
    m = jnp.max(jnp.where(mask > 0.0, att, 0.0), axis=0, keepdims=True)
    e = jnp.exp(att - m) * mask
    denom = jnp.sum(e, axis=0, keepdims=True) + 1e-4 * jnp.exp(-m)
    w = e / denom
    return w, enc_f, enc_b


# ----------------------------------------------------------------------------
# Kernel 1: word-level AttentionalBiRNN  ->  sentence embeddings [B, 2H].
# ----------------------------------------------------------------------------
def word_att_kernel(x_ref, mask_ref,
                    wih_f_ref, bpre_f_ref, whh_f_ref, bhhn_f_ref,
                    wih_b_ref, bpre_b_ref, whh_b_ref, bhhn_b_ref,
                    lin_wf_ref, lin_wb_ref, lin_b_ref, att_ref,
                    out_ref,
                    gi_f_ref, gi_b_ref, enc_f_ref, enc_b_ref):
    w, enc_f, enc_b = _bigru_attention(
        x_ref, mask_ref,
        wih_f_ref, bpre_f_ref, whh_f_ref, bhhn_f_ref,
        wih_b_ref, bpre_b_ref, whh_b_ref, bhhn_b_ref,
        lin_wf_ref, lin_wb_ref, lin_b_ref, att_ref,
        gi_f_ref, gi_b_ref, enc_f_ref, enc_b_ref)
    B, H = enc_f.shape[1], enc_f.shape[2]
    pieces = [jnp.sum(w * enc_f, axis=0), jnp.sum(w * enc_b, axis=0)]
    pad = out_ref.shape[1] - 2 * H
    if pad > 0:
        pieces.append(jnp.zeros((B, pad), jnp.float32))
    # single lane-dense store (output last dim padded to a multiple of 128)
    out_ref[...] = jnp.concatenate(pieces, axis=-1)


# ----------------------------------------------------------------------------
# Kernel 2: sentence-level TokAttentionalBiRNN + gate + output MLP (fused).
# ----------------------------------------------------------------------------
def sent_head_kernel(x_ref, mask_ref, tok_ref,
                     wih_f_ref, bpre_f_ref, whh_f_ref, bhhn_f_ref,
                     wih_b_ref, bpre_b_ref, whh_b_ref, bhhn_b_ref,
                     lin_wf_ref, lin_wb_ref, lin_b_ref, att_ref,
                     tokat_w_ref, tokat_b_ref,
                     w0_ref, b0_ref, w1_ref, b1_ref, wout_ref, bout_ref,
                     out_ref,
                     gi_f_ref, gi_b_ref, enc_f_ref, enc_b_ref):
    f32 = jnp.float32
    w, enc_f, enc_b = _bigru_attention(
        x_ref, mask_ref,
        wih_f_ref, bpre_f_ref, whh_f_ref, bhhn_f_ref,
        wih_b_ref, bpre_b_ref, whh_b_ref, bhhn_b_ref,
        lin_wf_ref, lin_wb_ref, lin_b_ref, att_ref,
        gi_f_ref, gi_b_ref, enc_f_ref, enc_b_ref)

    doc_f = jnp.sum(w * enc_f, axis=0)           # [B, H]
    doc_b = jnp.sum(w * enc_b, axis=0)
    tok = tok_ref[...]                           # [T, B, 1]
    tokavg_f = jnp.sum(enc_f * tok, axis=0)
    tokavg_b = jnp.sum(enc_b * tok, axis=0)

    # gate: sigmoid(tokat([doc, tokavg])) * sigmoid(sum(tok_w)); the N=1
    # matvec is done as VPU multiplies + lane reduces (split-K, no concat).
    a_logit = (jnp.sum(doc_f * tokat_w_ref[0], axis=-1, keepdims=True)
               + jnp.sum(doc_b * tokat_w_ref[1], axis=-1, keepdims=True)
               + jnp.sum(tokavg_f * tokat_w_ref[2], axis=-1, keepdims=True)
               + jnp.sum(tokavg_b * tokat_w_ref[3], axis=-1, keepdims=True)
               + tokat_b_ref[...])
    a = jax.nn.sigmoid(a_logit) * jax.nn.sigmoid(jnp.sum(tok, axis=0))
    x_f = a * tokavg_f + (1.0 - a) * doc_f
    x_b = a * tokavg_b + (1.0 - a) * doc_b

    # output MLP (dropouts are eval-mode identity); wout/bout are pre-padded
    # to a 128-lane multiple so the final store is a single full store.
    h0 = jnp.maximum(jnp.dot(x_f, w0_ref[0], preferred_element_type=f32)
                     + jnp.dot(x_b, w0_ref[1], preferred_element_type=f32)
                     + b0_ref[...], 0.0)
    h1 = jnp.maximum(jnp.dot(h0, w1_ref[...], preferred_element_type=f32)
                     + b1_ref[...], 0.0)
    out_ref[...] = (jnp.dot(h1, wout_ref[...], preferred_element_type=f32)
                    + bout_ref[...])


# ----------------------------------------------------------------------------
# pallas_call wrappers (batch-axis grid, weights resident).
# ----------------------------------------------------------------------------
def _rnn_weight_args(rp):
    return (rp["wih_f"], rp["bpre_f"], rp["whh_f"], rp["bhhn_f"],
            rp["wih_b"], rp["bpre_b"], rp["whh_b"], rp["bhhn_b"],
            rp["lin_wf"], rp["lin_wb"], rp["lin_b"], rp["att_row"])


def _rnn_scratch(T, tile, H):
    return [pltpu.VMEM((T, tile, 3 * H), jnp.float32),
            pltpu.VMEM((T, tile, 3 * H), jnp.float32),
            pltpu.VMEM((T, tile, H), jnp.float32),
            pltpu.VMEM((T, tile, H), jnp.float32)]


def attentional_bigru_word(x_tbd, mask_tb1, rp):
    T, B, D = x_tbd.shape
    H = rp["whh_f"].shape[0]
    H2 = 2 * H
    OUT = _round_up(H2, 128)
    tile = _choose_b_tile(B, T, D, H)
    Bp = pl.cdiv(B, tile) * tile
    x_p = _pad_axis(x_tbd, Bp, 1)
    m_p = _pad_axis(mask_tb1, Bp, 1)
    weights = _rnn_weight_args(rp)

    out = pl.pallas_call(
        word_att_kernel,
        out_shape=jax.ShapeDtypeStruct((Bp, OUT), jnp.float32),
        grid=(Bp // tile,),
        in_specs=[pl.BlockSpec((T, tile, D), lambda i: (0, i, 0)),
                  pl.BlockSpec((T, tile, 1), lambda i: (0, i, 0))]
                 + [_full_spec(wt) for wt in weights],
        out_specs=pl.BlockSpec((tile, OUT), lambda i: (i, 0)),
        scratch_shapes=_rnn_scratch(T, tile, H),
        compiler_params=pltpu.CompilerParams(
            dimension_semantics=("parallel",)),
    )(x_p, m_p, *weights)
    return out[:B, :H2]


def sent_bigru_head(x_tbd, mask_tb1, tok_tb1, rp, hp):
    T, B, D = x_tbd.shape
    H = rp["whh_f"].shape[0]
    C = hp["num_class"]
    C_PAD = hp["w_out"].shape[1]
    tile = _choose_b_tile(B, T, D, H)
    Bp = pl.cdiv(B, tile) * tile
    x_p = _pad_axis(x_tbd, Bp, 1)
    m_p = _pad_axis(mask_tb1, Bp, 1)
    t_p = _pad_axis(tok_tb1, Bp, 1)
    weights = _rnn_weight_args(rp) + (
        hp["tokat_rows"], hp["tokat_b"], hp["w0"], hp["b0"],
        hp["w1"], hp["b1"], hp["w_out"], hp["b_out"])

    out = pl.pallas_call(
        sent_head_kernel,
        out_shape=jax.ShapeDtypeStruct((Bp, C_PAD), jnp.float32),
        grid=(Bp // tile,),
        in_specs=[pl.BlockSpec((T, tile, D), lambda i: (0, i, 0)),
                  pl.BlockSpec((T, tile, 1), lambda i: (0, i, 0)),
                  pl.BlockSpec((T, tile, 1), lambda i: (0, i, 0))]
                 + [_full_spec(wt) for wt in weights],
        out_specs=pl.BlockSpec((tile, C_PAD), lambda i: (i, 0)),
        scratch_shapes=_rnn_scratch(T, tile, H),
        compiler_params=pltpu.CompilerParams(
            dimension_semantics=("parallel",)),
    )(x_p, m_p, t_p, *weights)
    return out[:B, :C]


# ----------------------------------------------------------------------------
# Pre-process fused PyTorch-style weights into the kernel layout.
# ----------------------------------------------------------------------------
def prep_kernel_params(p):
    H = p["word"]["whh_f"].shape[0]
    bf16 = jnp.bfloat16

    def prep_rnn(rp):
        d = {}
        for tag in ("f", "b"):
            wih, whh = rp["wih_" + tag], rp["whh_" + tag]
            bih, bhh = rp["bih_" + tag], rp["bhh_" + tag]
            d["wih_" + tag] = wih.astype(bf16)                  # [D, 3H] (r,z,n)
            d["whh_" + tag] = whh                               # [H, 3H] f32
            # r/z input+hidden biases merge; n keeps bhh_n separate because it
            # is scaled by the reset gate.
            d["bpre_" + tag] = jnp.concatenate(
                [bih[:, :2 * H] + bhh[:, :2 * H], bih[:, 2 * H:]], axis=-1)
            d["bhhn_" + tag] = bhh[:, 2 * H:]                   # [1, H]
        d["lin_wf"] = rp["lin_w"][:H].astype(bf16)
        d["lin_wb"] = rp["lin_w"][H:].astype(bf16)
        d["lin_b"] = rp["lin_b"]
        d["att_row"] = rp["att_w"]                              # [1, 2H]
        return d

    hp = p["head"]
    C = hp["w_out"].shape[1]
    C_PAD = _round_up(C, 128)
    head = {
        "tokat_rows": jnp.stack(
            [hp["tokat_w"][:H].T, hp["tokat_w"][H:2 * H].T,
             hp["tokat_w"][2 * H:3 * H].T, hp["tokat_w"][3 * H:].T],
            axis=0),                                            # [4, 1, H]
        "tokat_b": hp["tokat_b"],
        "w0": jnp.stack([hp["w0"][:H], hp["w0"][H:]], axis=0),  # [2, H, H]
        "b0": hp["b0"], "w1": hp["w1"], "b1": hp["b1"],
        "w_out": jnp.pad(hp["w_out"], ((0, 0), (0, C_PAD - C))),
        "b_out": jnp.pad(hp["b_out"], ((0, 0), (0, C_PAD - C))),
        "num_class": C,
    }
    return {"word": prep_rnn(p["word"]), "sent": prep_rnn(p["sent"]), "head": head}


# ----------------------------------------------------------------------------
# HAN forward (glue in plain JAX: embedding lookup, reorder/gather, masks).
# ----------------------------------------------------------------------------
def han_forward(params, kparams, batch_reviews, sent_order, ls, lr, tokens):
    # token gate mask over sentences (first token of each sentence), with a
    # prepended 0 for the zero pad row used by _reorder_sent.
    first_col = batch_reviews[:, 0]
    tok_mask = first_col < 0
    for t in tokens:
        tok_mask = tok_mask | (first_col == t)
    tok_mask = tok_mask.astype(jnp.float32)
    tok_mask = jnp.concatenate([jnp.zeros((1,), jnp.float32), tok_mask], axis=0)

    # word level (dropout2d is identity in eval mode); embed directly into
    # time-major layout.
    x_word = params["embed"][batch_reviews.T]                      # [Lw, S, E]
    Tw = x_word.shape[0]
    mask_w = (jnp.arange(Tw)[:, None] < ls[None, :]).astype(jnp.float32)[:, :, None]
    sent_embs = attentional_bigru_word(x_word, mask_w, kparams["word"])  # [S, 2H]

    # reorder sentences into documents (index 0 -> padded zero row), gathered
    # directly into time-major layout with sent_order.T.
    padded = jnp.concatenate(
        [jnp.zeros((1, sent_embs.shape[1]), jnp.float32), sent_embs], axis=0)
    order_t = sent_order.T                                         # [Ls, D]
    x_sent = padded[order_t]                                       # [Ls, D, 2H]
    tok_s = tok_mask[order_t][:, :, None]                          # [Ls, D, 1]
    Ts = order_t.shape[0]
    mask_s = (jnp.arange(Ts)[:, None] < lr[None, :]).astype(jnp.float32)[:, :, None]

    # sentence level + gating + output MLP, fused in one kernel.
    return sent_bigru_head(x_sent, mask_s, tok_s, kparams["sent"], kparams["head"])


# ----------------------------------------------------------------------------
# Pure-JAX reference (same math, no Pallas) used for a correctness check.
# ----------------------------------------------------------------------------
def _gru_dir_ref(x, mask, wih, whh, bih, bhh, reverse):
    H = whh.shape[0]

    def step(h, inp):
        x_t, m_t = inp
        gi = x_t @ wih + bih
        gh = h @ whh + bhh
        r = jax.nn.sigmoid(gi[:, :H] + gh[:, :H])
        z = jax.nn.sigmoid(gi[:, H:2 * H] + gh[:, H:2 * H])
        n = jnp.tanh(gi[:, 2 * H:] + r * gh[:, 2 * H:])
        h_new = (1.0 - z) * n + z * h
        h = m_t * h_new + (1.0 - m_t) * h
        return h, h * m_t

    h0 = jnp.zeros((x.shape[1], H), jnp.float32)
    _, ys = lax.scan(step, h0, (x, mask), reverse=reverse)
    return ys


def attentional_bigru_ref(x, mask, tok, p):
    enc = jnp.concatenate([
        _gru_dir_ref(x, mask, p["wih_f"], p["whh_f"], p["bih_f"], p["bhh_f"], False),
        _gru_dir_ref(x, mask, p["wih_b"], p["whh_b"], p["bih_b"], p["bhh_b"], True)],
        axis=-1)
    emb = jnp.tanh(enc @ p["lin_w"] + p["lin_b"])
    att = jnp.sum(emb * p["att_w"].reshape(1, 1, -1), axis=-1, keepdims=True)
    e = jnp.exp(att) * mask
    w = e / (jnp.sum(e, axis=0, keepdims=True) + 1e-4)
    return jnp.sum(w * enc, axis=0), jnp.sum(enc * tok, axis=0)


def han_head_ref(doc, tokavg, tok_w, p):
    cat = jnp.concatenate([doc, tokavg], axis=-1)
    a = jax.nn.sigmoid(cat @ p["tokat_w"] + p["tokat_b"])
    a = a * jax.nn.sigmoid(jnp.sum(tok_w, axis=-1, keepdims=True))
    x = a * tokavg + (1.0 - a) * doc
    h0 = jax.nn.relu(x @ p["w0"] + p["b0"])
    h1 = jax.nn.relu(h0 @ p["w1"] + p["b1"])
    return h1 @ p["w_out"] + p["b_out"]


def han_forward_ref(params, batch_reviews, sent_order, ls, lr, tokens):
    first_col = batch_reviews[:, 0]
    tok_mask = first_col < 0
    for t in tokens:
        tok_mask = tok_mask | (first_col == t)
    tok_mask = tok_mask.astype(jnp.float32)
    tok_mask = jnp.concatenate([jnp.zeros((1,), jnp.float32), tok_mask], axis=0)

    emb_w = params["embed"][batch_reviews]
    x_word = jnp.transpose(emb_w, (1, 0, 2))
    Tw = x_word.shape[0]
    mask_w = (jnp.arange(Tw)[:, None] < ls[None, :]).astype(jnp.float32)[:, :, None]
    zeros_tok = jnp.zeros_like(mask_w)
    sent_embs, _ = attentional_bigru_ref(x_word, mask_w, zeros_tok, params["word"])

    padded = jnp.concatenate(
        [jnp.zeros((1, sent_embs.shape[1]), jnp.float32), sent_embs], axis=0)
    rev_embs = padded[sent_order.reshape(-1)].reshape(
        sent_order.shape[0], sent_order.shape[1], -1)
    tok_w = tok_mask[sent_order.reshape(-1)].reshape(sent_order.shape)

    x_sent = jnp.transpose(rev_embs, (1, 0, 2))
    Ts = x_sent.shape[0]
    mask_s = (jnp.arange(Ts)[:, None] < lr[None, :]).astype(jnp.float32)[:, :, None]
    tok_s = jnp.transpose(tok_w, (1, 0))[:, :, None]
    doc_embs, toked_avg = attentional_bigru_ref(x_sent, mask_s, tok_s, params["sent"])
    return han_head_ref(doc_embs, toked_avg, tok_w, params["head"])


# ----------------------------------------------------------------------------
# Deterministic parameter init (shapes from HAN.__init__).
# ----------------------------------------------------------------------------
def init_params(key, ntoken, num_class, emb_size, hid):
    H = hid
    H2 = 2 * hid
    keys = iter(jax.random.split(key, 64))

    def uni(shape, scale):
        return jax.random.uniform(next(keys), shape, jnp.float32, -scale, scale)

    def gru(inp):
        s = 1.0 / np.sqrt(H)
        d = {}
        for tag in ("f", "b"):
            d["wih_" + tag] = uni((inp, 3 * H), s)   # gate order (r, z, n)
            d["whh_" + tag] = uni((H, 3 * H), s)
            d["bih_" + tag] = uni((1, 3 * H), s)
            d["bhh_" + tag] = uni((1, 3 * H), s)
        return d

    def linear(inp, out):
        s = 1.0 / np.sqrt(inp)
        return uni((inp, out), s), uni((1, out), s)

    p = {}
    emb = uni((ntoken, emb_size), 0.1)
    p["embed"] = emb.at[0].set(0.0)                  # padding_idx = 0

    word = gru(emb_size)
    word["lin_w"], word["lin_b"] = linear(H2, H2)
    word["att_w"] = uni((1, H2), 1.0 / np.sqrt(H2))
    p["word"] = word

    sent = gru(H2)
    sent["lin_w"], sent["lin_b"] = linear(H2, H2)
    sent["att_w"] = uni((1, H2), 1.0 / np.sqrt(H2))
    p["sent"] = sent

    head = {}
    head["tokat_w"], head["tokat_b"] = linear(2 * H2, 1)
    head["w0"], head["b0"] = linear(H2, H)
    head["w1"], head["b1"] = linear(H, H)
    head["w_out"], head["b_out"] = linear(H, num_class)
    p["head"] = head
    return p


if __name__ == "__main__":
    ntoken, num_class, emb_size, hid = 50, 3, 32, 16
    tokens = [2, 3]
    num_sents, max_sent_len = 6, 8
    num_docs, max_doc_len = 2, 3

    key = jax.random.PRNGKey(0)
    k_param, k_data = jax.random.split(key)
    params = init_params(k_param, ntoken, num_class, emb_size, hid)
    kparams = prep_kernel_params(params)

    # lengths sorted descending (pack_padded_sequence requirement)
    ls = jnp.array([8, 7, 6, 5, 4, 3], dtype=jnp.int32)   # ls[0] == max_sent_len
    lr = jnp.array([3, 2], dtype=jnp.int32)               # lr[0] == max_doc_len
    sent_order = jnp.array([[1, 2, 3], [4, 5, 0]], dtype=jnp.int32)  # 0 = pad row

    br = jax.random.randint(k_data, (num_sents, max_sent_len), 1, ntoken,
                            dtype=jnp.int32)
    br = br.at[1, 0].set(2).at[4, 0].set(3)               # hit the "tokens" gate
    pad_mask = jnp.arange(max_sent_len)[None, :] < ls[:, None]
    br = jnp.where(pad_mask, br, 0)

    out = han_forward(params, kparams, br, sent_order, ls, lr, tokens)
    out = jax.block_until_ready(out)

    ref = han_forward_ref(params, br, sent_order, ls, lr, tokens)
    ref = jax.block_until_ready(ref)

    # Tolerance accounts for bf16 MXU matmuls (f32 accumulation) vs f32 ref.
    if not np.allclose(np.asarray(out), np.asarray(ref), rtol=2e-2, atol=2e-2):
        raise AssertionError(
            f"Pallas output mismatch vs reference:\n{np.asarray(out)}\nvs\n{np.asarray(ref)}")

    print("KERNEL_OK")
</pallas_src>

<mosaic_0001>
module attributes {stable_mosaic.version = 11 : i64} {
  func.func @word_att_kernel(%arg0: i32, %arg1: memref<8x8x32xf32, #tpu.memory_space<vmem>>, %arg2: memref<8x8x1xf32, #tpu.memory_space<vmem>>, %arg3: memref<32x48xbf16, #tpu.memory_space<vmem>>, %arg4: memref<1x48xf32, #tpu.memory_space<vmem>>, %arg5: memref<16x48xf32, #tpu.memory_space<vmem>>, %arg6: memref<1x16xf32, #tpu.memory_space<vmem>>, %arg7: memref<32x48xbf16, #tpu.memory_space<vmem>>, %arg8: memref<1x48xf32, #tpu.memory_space<vmem>>, %arg9: memref<16x48xf32, #tpu.memory_space<vmem>>, %arg10: memref<1x16xf32, #tpu.memory_space<vmem>>, %arg11: memref<16x32xbf16, #tpu.memory_space<vmem>>, %arg12: memref<16x32xbf16, #tpu.memory_space<vmem>>, %arg13: memref<1x32xf32, #tpu.memory_space<vmem>>, %arg14: memref<1x32xf32, #tpu.memory_space<vmem>>, %arg15: memref<8x128xf32, #tpu.memory_space<vmem>>, %arg16: memref<8x8x48xf32, #tpu.memory_space<vmem>>, %arg17: memref<8x8x48xf32, #tpu.memory_space<vmem>>, %arg18: memref<8x8x16xf32, #tpu.memory_space<vmem>>, %arg19: memref<8x8x16xf32, #tpu.memory_space<vmem>>) attributes {dimension_semantics = [#tpu.dimension_semantics<parallel>], iteration_bounds = array<i64: 1>, scalar_prefetch = 0 : i64, scratch_operands = 4 : i64, tpu.core_type = #tpu.core_type<tc>, window_params = [{transform_indices = @transform_0, window_bounds = array<i64: 8, 8, 32>}, {transform_indices = @transform_1, window_bounds = array<i64: 8, 8, 1>}, {pipeline_mode = #tpu.pipeline_mode<synchronous>, transform_indices = @transform_2, window_bounds = array<i64: 32, 48>}, {pipeline_mode = #tpu.pipeline_mode<synchronous>, transform_indices = @transform_3, window_bounds = array<i64: 1, 48>}, {pipeline_mode = #tpu.pipeline_mode<synchronous>, transform_indices = @transform_4, window_bounds = array<i64: 16, 48>}, {pipeline_mode = #tpu.pipeline_mode<synchronous>, transform_indices = @transform_5, window_bounds = array<i64: 1, 16>}, {pipeline_mode = #tpu.pipeline_mode<synchronous>, transform_indices = @transform_6, window_bounds = array<i64: 32, 48>}, {pipeline_mode = #tpu.pipeline_mode<synchronous>, transform_indices = @transform_7, window_bounds = array<i64: 1, 48>}, {pipeline_mode = #tpu.pipeline_mode<synchronous>, transform_indices = @transform_8, window_bounds = array<i64: 16, 48>}, {pipeline_mode = #tpu.pipeline_mode<synchronous>, transform_indices = @transform_9, window_bounds = array<i64: 1, 16>}, {pipeline_mode = #tpu.pipeline_mode<synchronous>, transform_indices = @transform_10, window_bounds = array<i64: 16, 32>}, {pipeline_mode = #tpu.pipeline_mode<synchronous>, transform_indices = @transform_11, window_bounds = array<i64: 16, 32>}, {pipeline_mode = #tpu.pipeline_mode<synchronous>, transform_indices = @transform_12, window_bounds = array<i64: 1, 32>}, {pipeline_mode = #tpu.pipeline_mode<synchronous>, transform_indices = @transform_13, window_bounds = array<i64: 1, 32>}, {transform_indices = @transform_14, window_bounds = array<i64: 8, 128>}]} {
    %c0 = arith.constant 0 : index
    %c0_0 = arith.constant 0 : index
    %c0_1 = arith.constant 0 : index
    %0 = vector.load %arg1[%c0, %c0_0, %c0_1] : memref<8x8x32xf32, #tpu.memory_space<vmem>>, vector<8x8x32xf32>
    %1 = vector.shape_cast %0 : vector<8x8x32xf32> to vector<64x32xf32>
    %2 = arith.truncf %1 : vector<64x32xf32> to vector<64x32xbf16>
    %c0_2 = arith.constant 0 : index
    %c0_3 = arith.constant 0 : index
    %3 = vector.load %arg3[%c0_2, %c0_3] : memref<32x48xbf16, #tpu.memory_space<vmem>>, vector<32x48xbf16>
    %cst = arith.constant dense<0.000000e+00> : vector<64x48xf32>
    %4 = tpu.matmul %2, %3, %cst {dimension_numbers = #tpu.dot_dimension_numbers<[1], [0], [0], [1], [0, 0, 1, 1], [], []>} : vector<64x32xbf16>, vector<32x48xbf16>, vector<64x48xf32> -> vector<64x48xf32>
    %c0_4 = arith.constant 0 : index
    %c0_5 = arith.constant 0 : index
    %5 = vector.load %arg4[%c0_4, %c0_5] : memref<1x48xf32, #tpu.memory_space<vmem>>, vector<1x48xf32>
    %6 = vector.broadcast %5 : vector<1x48xf32> to vector<64x48xf32>
    %7 = arith.addf %4, %6 : vector<64x48xf32>
    %8 = vector.shape_cast %7 : vector<64x48xf32> to vector<8x8x48xf32>
    %c0_6 = arith.constant 0 : index
    %c0_7 = arith.constant 0 : index
    %c0_8 = arith.constant 0 : index
    %9 = vector.load %arg16[%c0_6, %c0_7, %c0_8] : memref<8x8x48xf32, #tpu.memory_space<vmem>>, vector<8x8x48xf32>
    tpu.vector_store %arg16[%c0_6, %c0_7, %c0_8], %8 {strides = array<i32>} : memref<8x8x48xf32, #tpu.memory_space<vmem>>, vector<8x8x48xf32>,
    %c0_9 = arith.constant 0 : index
    %c0_10 = arith.constant 0 : index
    %10 = vector.load %arg7[%c0_9, %c0_10] : memref<32x48xbf16, #tpu.memory_space<vmem>>, vector<32x48xbf16>
    %cst_11 = arith.constant dense<0.000000e+00> : vector<64x48xf32>
    %11 = tpu.matmul %2, %10, %cst_11 {dimension_numbers = #tpu.dot_dimension_numbers<[1], [0], [0], [1], [0, 0, 1, 1], [], []>} : vector<64x32xbf16>, vector<32x48xbf16>, vector<64x48xf32> -> vector<64x48xf32>
    %c0_12 = arith.constant 0 : index
    %c0_13 = arith.constant 0 : index
    %12 = vector.load %arg8[%c0_12, %c0_13] : memref<1x48xf32, #tpu.memory_space<vmem>>, vector<1x48xf32>
    %13 = vector.broadcast %12 : vector<1x48xf32> to vector<64x48xf32>
    %14 = arith.addf %11, %13 : vector<64x48xf32>
    %15 = vector.shape_cast %14 : vector<64x48xf32> to vector<8x8x48xf32>
    %c0_14 = arith.constant 0 : index
    %c0_15 = arith.constant 0 : index
    %c0_16 = arith.constant 0 : index
    %16 = vector.load %arg17[%c0_14, %c0_15, %c0_16] : memref<8x8x48xf32, #tpu.memory_space<vmem>>, vector<8x8x48xf32>
    tpu.vector_store %arg17[%c0_14, %c0_15, %c0_16], %15 {strides = array<i32>} : memref<8x8x48xf32, #tpu.memory_space<vmem>>, vector<8x8x48xf32>,
    %c0_17 = arith.constant 0 : index
    %c0_18 = arith.constant 0 : index
    %17 = vector.load %arg5[%c0_17, %c0_18] : memref<16x48xf32, #tpu.memory_space<vmem>>, vector<16x48xf32>
    %c0_19 = arith.constant 0 : index
    %c0_20 = arith.constant 0 : index
    %18 = vector.load %arg9[%c0_19, %c0_20] : memref<16x48xf32, #tpu.memory_space<vmem>>, vector<16x48xf32>
    %c0_21 = arith.constant 0 : index
    %c0_22 = arith.constant 0 : index
    %19 = vector.load %arg6[%c0_21, %c0_22] : memref<1x16xf32, #tpu.memory_space<vmem>>, vector<1x16xf32>
    %c0_23 = arith.constant 0 : index
    %c0_24 = arith.constant 0 : index
    %20 = vector.load %arg10[%c0_23, %c0_24] : memref<1x16xf32, #tpu.memory_space<vmem>>, vector<1x16xf32>
    %cst_25 = arith.constant 0.000000e+00 : f32
    %21 = vector.broadcast %cst_25 : f32 to vector<8x16xf32>
    %c0_i32 = arith.constant 0 : i32
    %c7_i32 = arith.constant 7 : i32
    %22 = arith.subi %c7_i32, %c0_i32 : i32
    %23 = arith.index_cast %c0_i32 : i32 to index
    %c0_26 = arith.constant 0 : index
    %c0_27 = arith.constant 0 : index
    %24 = vector.load %arg2[%23, %c0_26, %c0_27] : memref<8x8x1xf32, #tpu.memory_space<vmem>>, vector<1x8x1xf32>
    %25 = vector.shape_cast %24 : vector<1x8x1xf32> to vector<8x1xf32>
    %26 = arith.index_cast %22 : i32 to index
    %c0_28 = arith.constant 0 : index
    %c0_29 = arith.constant 0 : index
    %27 = vector.load %arg2[%26, %c0_28, %c0_29] : memref<8x8x1xf32, #tpu.memory_space<vmem>>, vector<1x8x1xf32>
    %28 = vector.shape_cast %27 : vector<1x8x1xf32> to vector<8x1xf32>
    %29 = arith.index_cast %c0_i32 : i32 to index
    %c0_30 = arith.constant 0 : index
    %c0_31 = arith.constant 0 : index
    %30 = vector.load %arg16[%29, %c0_30, %c0_31] : memref<8x8x48xf32, #tpu.memory_space<vmem>>, vector<1x8x48xf32>
    %31 = vector.shape_cast %30 : vector<1x8x48xf32> to vector<8x48xf32>
    %cst_32 = arith.constant dense<0.000000e+00> : vector<8x48xf32>
    %32 = tpu.matmul %21, %17, %cst_32 {dimension_numbers = #tpu.dot_dimension_numbers<[1], [0], [0], [1], [0, 0, 1, 1], [], []>} : vector<8x16xf32>, vector<16x48xf32>, vector<8x48xf32> -> vector<8x48xf32>
    %33 = vector.extract_strided_slice %31 {offsets = [0, 0], sizes = [8, 32], strides = [1, 1]} : vector<8x48xf32> to vector<8x32xf32>
    %34 = vector.extract_strided_slice %32 {offsets = [0, 0], sizes = [8, 32], strides = [1, 1]} : vector<8x48xf32> to vector<8x32xf32>
    %35 = arith.addf %33, %34 : vector<8x32xf32>
    %36 = arith.negf %35 : vector<8x32xf32>
    %37 = math.exp %36 : vector<8x32xf32>
    %cst_33 = arith.constant 1.000000e+00 : f32
    %38 = vector.broadcast %cst_33 : f32 to vector<8x32xf32>
    %39 = arith.addf %38, %37 : vector<8x32xf32>
    %40 = arith.divf %38, %39 : vector<8x32xf32>
    %41 = vector.extract_strided_slice %40 {offsets = [0, 0], sizes = [8, 16], strides = [1, 1]} : vector<8x32xf32> to vector<8x16xf32>
    %42 = vector.extract_strided_slice %40 {offsets = [0, 16], sizes = [8, 16], strides = [1, 1]} : vector<8x32xf32> to vector<8x16xf32>
    %43 = vector.extract_strided_slice %31 {offsets = [0, 32], sizes = [8, 16], strides = [1, 1]} : vector<8x48xf32> to vector<8x16xf32>
    %44 = vector.extract_strided_slice %32 {offsets = [0, 32], sizes = [8, 16], strides = [1, 1]} : vector<8x48xf32> to vector<8x16xf32>
    %45 = vector.broadcast %19 : vector<1x16xf32> to vector<8x16xf32>
    %46 = arith.addf %44, %45 : vector<8x16xf32>
    %47 = arith.mulf %41, %46 : vector<8x16xf32>
    %48 = arith.addf %43, %47 : vector<8x16xf32>
    %49 = math.tanh %48 : vector<8x16xf32>
    %cst_34 = arith.constant 1.000000e+00 : f32
    %50 = vector.broadcast %cst_34 : f32 to vector<8x16xf32>
    %51 = arith.subf %50, %42 : vector<8x16xf32>
    %52 = arith.mulf %51, %49 : vector<8x16xf32>
    %53 = arith.mulf %42, %21 : vector<8x16xf32>
    %54 = arith.addf %52, %53 : vector<8x16xf32>
    %55 = arith.index_cast %22 : i32 to index
    %c0_35 = arith.constant 0 : index
    %c0_36 = arith.constant 0 : index
    %56 = vector.load %arg17[%55, %c0_35, %c0_36] : memref<8x8x48xf32, #tpu.memory_space<vmem>>, vector<1x8x48xf32>
    %57 = vector.shape_cast %56 : vector<1x8x48xf32> to vector<8x48xf32>
    %cst_37 = arith.constant dense<0.000000e+00> : vector<8x48xf32>
    %58 = tpu.matmul %21, %18, %cst_37 {dimension_numbers = #tpu.dot_dimension_numbers<[1], [0], [0], [1], [0, 0, 1, 1], [], []>} : vector<8x16xf32>, vector<16x48xf32>, vector<8x48xf32> -> vector<8x48xf32>
    %59 = vector.extract_strided_slice %57 {offsets = [0, 0], sizes = [8, 32], strides = [1, 1]} : vector<8x48xf32> to vector<8x32xf32>
    %60 = vector.extract_strided_slice %58 {offsets = [0, 0], sizes = [8, 32], strides = [1, 1]} : vector<8x48xf32> to vector<8x32xf32>
    %61 = arith.addf %59, %60 : vector<8x32xf32>
    %62 = arith.negf %61 : vector<8x32xf32>
    %63 = math.exp %62 : vector<8x32xf32>
    %cst_38 = arith.constant 1.000000e+00 : f32
    %64 = vector.broadcast %cst_38 : f32 to vector<8x32xf32>
    %65 = arith.addf %64, %63 : vector<8x32xf32>
    %66 = arith.divf %64, %65 : vector<8x32xf32>
    %67 = vector.extract_strided_slice %66 {offsets = [0, 0], sizes = [8, 16], strides = [1, 1]} : vector<8x32xf32> to vector<8x16xf32>
    %68 = vector.extract_strided_slice %66 {offsets = [0, 16], sizes = [8, 16], strides = [1, 1]} : vector<8x32xf32> to vector<8x16xf32>
    %69 = vector.extract_strided_slice %57 {offsets = [0, 32], sizes = [8, 16], strides = [1, 1]} : vector<8x48xf32> to vector<8x16xf32>
    %70 = vector.extract_strided_slice %58 {offsets = [0, 32], sizes = [8, 16], strides = [1, 1]} : vector<8x48xf32> to vector<8x16xf32>
    %71 = vector.broadcast %20 : vector<1x16xf32> to vector<8x16xf32>
    %72 = arith.addf %70, %71 : vector<8x16xf32>
    %73 = arith.mulf %67, %72 : vector<8x16xf32>
    %74 = arith.addf %69, %73 : vector<8x16xf32>
    %75 = math.tanh %74 : vector<8x16xf32>
    %cst_39 = arith.constant 1.000000e+00 : f32
    %76 = vector.broadcast %cst_39 : f32 to vector<8x16xf32>
    %77 = arith.subf %76, %68 : vector<8x16xf32>
    %78 = arith.mulf %77, %75 : vector<8x16xf32>
    %79 = arith.mulf %68, %21 : vector<8x16xf32>
    %80 = arith.addf %78, %79 : vector<8x16xf32>
    %cst_40 = arith.constant 0.000000e+00 : f32
    %81 = vector.broadcast %cst_40 : f32 to vector<8x1xf32>
    %82 = arith.cmpf ogt, %25, %81 : vector<8x1xf32>
    %83 = vector.shape_cast %82 : vector<8x1xi1> to vector<8x1xi1>
    %84 = vector.broadcast %83 : vector<8x1xi1> to vector<8x16xi1>
    %85 = arith.select %84, %54, %21 : vector<8x16xi1>, vector<8x16xf32>
    %cst_41 = arith.constant 0.000000e+00 : f32
    %86 = vector.broadcast %cst_41 : f32 to vector<8x1xf32>
    %87 = arith.cmpf ogt, %28, %86 : vector<8x1xf32>
    %88 = vector.shape_cast %87 : vector<8x1xi1> to vector<8x1xi1>
    %89 = vector.broadcast %88 : vector<8x1xi1> to vector<8x16xi1>
    %90 = arith.select %89, %80, %21 : vector<8x16xi1>, vector<8x16xf32>
    %cst_42 = arith.constant 0.000000e+00 : f32
    %91 = vector.broadcast %cst_42 : f32 to vector<8x1xf32>
    %92 = arith.cmpf ogt, %25, %91 : vector<8x1xf32>
    %cst_43 = arith.constant 0.000000e+00 : f32
    %93 = vector.shape_cast %92 : vector<8x1xi1> to vector<8x1xi1>
    %94 = vector.broadcast %93 : vector<8x1xi1> to vector<8x16xi1>
    %95 = vector.broadcast %cst_43 : f32 to vector<8x16xf32>
    %96 = arith.select %94, %85, %95 : vector<8x16xi1>, vector<8x16xf32>
    %97 = arith.index_cast %c0_i32 : i32 to index
    %c0_44 = arith.constant 0 : index
    %c0_45 = arith.constant 0 : index
    %98 = vector.load %arg18[%97, %c0_44, %c0_45] : memref<8x8x16xf32, #tpu.memory_space<vmem>>, vector<1x8x16xf32>
    %99 = vector.shape_cast %98 : vector<1x8x16xf32> to vector<8x16xf32>
    %100 = vector.shape_cast %96 : vector<8x16xf32> to vector<1x8x16xf32>
    tpu.vector_store %arg18[%97, %c0_44, %c0_45], %100 {strides = array<i32>} : memref<8x8x16xf32, #tpu.memory_space<vmem>>, vector<1x8x16xf32>,
    %cst_46 = arith.constant 0.000000e+00 : f32
    %101 = vector.broadcast %cst_46 : f32 to vector<8x1xf32>
    %102 = arith.cmpf ogt, %28, %101 : vector<8x1xf32>
    %cst_47 = arith.constant 0.000000e+00 : f32
    %103 = vector.shape_cast %102 : vector<8x1xi1> to vector<8x1xi1>
    %104 = vector.broadcast %103 : vector<8x1xi1> to vector<8x16xi1>
    %105 = vector.broadcast %cst_47 : f32 to vector<8x16xf32>
    %106 = arith.select %104, %90, %105 : vector<8x16xi1>, vector<8x16xf32>
    %107 = arith.index_cast %22 : i32 to index
    %c0_48 = arith.constant 0 : index
    %c0_49 = arith.constant 0 : index
    %108 = vector.load %arg19[%107, %c0_48, %c0_49] : memref<8x8x16xf32, #tpu.memory_space<vmem>>, vector<1x8x16xf32>
    %109 = vector.shape_cast %108 : vector<1x8x16xf32> to vector<8x16xf32>
    %110 = vector.shape_cast %106 : vector<8x16xf32> to vector<1x8x16xf32>
    tpu.vector_store %arg19[%107, %c0_48, %c0_49], %110 {strides = array<i32>} : memref<8x8x16xf32, #tpu.memory_space<vmem>>, vector<1x8x16xf32>,
    %c1_i32 = arith.constant 1 : i32
    %c7_i32_50 = arith.constant 7 : i32
    %111 = arith.subi %c7_i32_50, %c1_i32 : i32
    %112 = arith.index_cast %c1_i32 : i32 to index
    %c0_51 = arith.constant 0 : index
    %c0_52 = arith.constant 0 : index
    %113 = vector.load %arg2[%112, %c0_51, %c0_52] : memref<8x8x1xf32, #tpu.memory_space<vmem>>, vector<1x8x1xf32>
    %114 = vector.shape_cast %113 : vector<1x8x1xf32> to vector<8x1xf32>
    %115 = arith.index_cast %111 : i32 to index
    %c0_53 = arith.constant 0 : index
    %c0_54 = arith.constant 0 : index
    %116 = vector.load %arg2[%115, %c0_53, %c0_54] : memref<8x8x1xf32, #tpu.memory_space<vmem>>, vector<1x8x1xf32>
    %117 = vector.shape_cast %116 : vector<1x8x1xf32> to vector<8x1xf32>
    %118 = arith.index_cast %c1_i32 : i32 to index
    %c0_55 = arith.constant 0 : index
    %c0_56 = arith.constant 0 : index
    %119 = vector.load %arg16[%118, %c0_55, %c0_56] : memref<8x8x48xf32, #tpu.memory_space<vmem>>, vector<1x8x48xf32>
    %120 = vector.shape_cast %119 : vector<1x8x48xf32> to vector<8x48xf32>
    %cst_57 = arith.constant dense<0.000000e+00> : vector<8x48xf32>
    %121 = tpu.matmul %85, %17, %cst_57 {dimension_numbers = #tpu.dot_dimension_numbers<[1], [0], [0], [1], [0, 0, 1, 1], [], []>} : vector<8x16xf32>, vector<16x48xf32>, vector<8x48xf32> -> vector<8x48xf32>
    %122 = vector.extract_strided_slice %120 {offsets = [0, 0], sizes = [8, 32], strides = [1, 1]} : vector<8x48xf32> to vector<8x32xf32>
    %123 = vector.extract_strided_slice %121 {offsets = [0, 0], sizes = [8, 32], strides = [1, 1]} : vector<8x48xf32> to vector<8x32xf32>
    %124 = arith.addf %122, %123 : vector<8x32xf32>
    %125 = arith.negf %124 : vector<8x32xf32>
    %126 = math.exp %125 : vector<8x32xf32>
    %cst_58 = arith.constant 1.000000e+00 : f32
    %127 = vector.broadcast %cst_58 : f32 to vector<8x32xf32>
    %128 = arith.addf %127, %126 : vector<8x32xf32>
    %129 = arith.divf %127, %128 : vector<8x32xf32>
    %130 = vector.extract_strided_slice %129 {offsets = [0, 0], sizes = [8, 16], strides = [1, 1]} : vector<8x32xf32> to vector<8x16xf32>
    %131 = vector.extract_strided_slice %129 {offsets = [0, 16], sizes = [8, 16], strides = [1, 1]} : vector<8x32xf32> to vector<8x16xf32>
    %132 = vector.extract_strided_slice %120 {offsets = [0, 32], sizes = [8, 16], strides = [1, 1]} : vector<8x48xf32> to vector<8x16xf32>
    %133 = vector.extract_strided_slice %121 {offsets = [0, 32], sizes = [8, 16], strides = [1, 1]} : vector<8x48xf32> to vector<8x16xf32>
    %134 = vector.broadcast %19 : vector<1x16xf32> to vector<8x16xf32>
    %135 = arith.addf %133, %134 : vector<8x16xf32>
    %136 = arith.mulf %130, %135 : vector<8x16xf32>
    %137 = arith.addf %132, %136 : vector<8x16xf32>
    %138 = math.tanh %137 : vector<8x16xf32>
    %cst_59 = arith.constant 1.000000e+00 : f32
    %139 = vector.broadcast %cst_59 : f32 to vector<8x16xf32>
    %140 = arith.subf %139, %131 : vector<8x16xf32>
    %141 = arith.mulf %140, %138 : vector<8x16xf32>
    %142 = arith.mulf %131, %85 : vector<8x16xf32>
    %143 = arith.addf %141, %142 : vector<8x16xf32>
    %144 = arith.index_cast %111 : i32 to index
    %c0_60 = arith.constant 0 : index
    %c0_61 = arith.constant 0 : index
    %145 = vector.load %arg17[%144, %c0_60, %c0_61] : memref<8x8x48xf32, #tpu.memory_space<vmem>>, vector<1x8x48xf32>
    %146 = vector.shape_cast %145 : vector<1x8x48xf32> to vector<8x48xf32>
    %cst_62 = arith.constant dense<0.000000e+00> : vector<8x48xf32>
    %147 = tpu.matmul %90, %18, %cst_62 {dimension_numbers = #tpu.dot_dimension_numbers<[1], [0], [0], [1], [0, 0, 1, 1], [], []>} : vector<8x16xf32>, vector<16x48xf32>, vector<8x48xf32> -> vector<8x48xf32>
    %148 = vector.extract_strided_slice %146 {offsets = [0, 0], sizes = [8, 32], strides = [1, 1]} : vector<8x48xf32> to vector<8x32xf32>
    %149 = vector.extract_strided_slice %147 {offsets = [0, 0], sizes = [8, 32], strides = [1, 1]} : vector<8x48xf32> to vector<8x32xf32>
    %150 = arith.addf %148, %149 : vector<8x32xf32>
    %151 = arith.negf %150 : vector<8x32xf32>
    %152 = math.exp %151 : vector<8x32xf32>
    %cst_63 = arith.constant 1.000000e+00 : f32
    %153 = vector.broadcast %cst_63 : f32 to vector<8x32xf32>
    %154 = arith.addf %153, %152 : vector<8x32xf32>
    %155 = arith.divf %153, %154 : vector<8x32xf32>
    %156 = vector.extract_strided_slice %155 {offsets = [0, 0], sizes = [8, 16], strides = [1, 1]} : vector<8x32xf32> to vector<8x16xf32>
    %157 = vector.extract_strided_slice %155 {offsets = [0, 16], sizes = [8, 16], strides = [1, 1]} : vector<8x32xf32> to vector<8x16xf32>
    %158 = vector.extract_strided_slice %146 {offsets = [0, 32], sizes = [8, 16], strides = [1, 1]} : vector<8x48xf32> to vector<8x16xf32>
    %159 = vector.extract_strided_slice %147 {offsets = [0, 32], sizes = [8, 16], strides = [1, 1]} : vector<8x48xf32> to vector<8x16xf32>
    %160 = vector.broadcast %20 : vector<1x16xf32> to vector<8x16xf32>
    %161 = arith.addf %159, %160 : vector<8x16xf32>
    %162 = arith.mulf %156, %161 : vector<8x16xf32>
    %163 = arith.addf %158, %162 : vector<8x16xf32>
    %164 = math.tanh %163 : vector<8x16xf32>
    %cst_64 = arith.constant 1.000000e+00 : f32
    %165 = vector.broadcast %cst_64 : f32 to vector<8x16xf32>
    %166 = arith.subf %165, %157 : vector<8x16xf32>
    %167 = arith.mulf %166, %164 : vector<8x16xf32>
    %168 = arith.mulf %157, %90 : vector<8x16xf32>
    %169 = arith.addf %167, %168 : vector<8x16xf32>
    %cst_65 = arith.constant 0.000000e+00 : f32
    %170 = vector.broadcast %cst_65 : f32 to vector<8x1xf32>
    %171 = arith.cmpf ogt, %114, %170 : vector<8x1xf32>
    %172 = vector.shape_cast %171 : vector<8x1xi1> to vector<8x1xi1>
    %173 = vector.broadcast %172 : vector<8x1xi1> to vector<8x16xi1>
    %174 = arith.select %173, %143, %85 : vector<8x16xi1>, vector<8x16xf32>
    %cst_66 = arith.constant 0.000000e+00 : f32
    %175 = vector.broadcast %cst_66 : f32 to vector<8x1xf32>
    %176 = arith.cmpf ogt, %117, %175 : vector<8x1xf32>
    %177 = vector.shape_cast %176 : vector<8x1xi1> to vector<8x1xi1>
    %178 = vector.broadcast %177 : vector<8x1xi1> to vector<8x16xi1>
    %179 = arith.select %178, %169, %90 : vector<8x16xi1>, vector<8x16xf32>
    %cst_67 = arith.constant 0.000000e+00 : f32
    %180 = vector.broadcast %cst_67 : f32 to vector<8x1xf32>
    %181 = arith.cmpf ogt, %114, %180 : vector<8x1xf32>
    %cst_68 = arith.constant 0.000000e+00 : f32
    %182 = vector.shape_cast %181 : vector<8x1xi1> to vector<8x1xi1>
    %183 = vector.broadcast %182 : vector<8x1xi1> to vector<8x16xi1>
    %184 = vector.broadcast %cst_68 : f32 to vector<8x16xf32>
    %185 = arith.select %183, %174, %184 : vector<8x16xi1>, vector<8x16xf32>
    %186 = arith.index_cast %c1_i32 : i32 to index
    %c0_69 = arith.constant 0 : index
    %c0_70 = arith.constant 0 : index
    %187 = vector.load %arg18[%186, %c0_69, %c0_70] : memref<8x8x16xf32, #tpu.memory_space<vmem>>, vector<1x8x16xf32>
    %188 = vector.shape_cast %187 : vector<1x8x16xf32> to vector<8x16xf32>
    %189 = vector.shape_cast %185 : vector<8x16xf32> to vector<1x8x16xf32>
    tpu.vector_store %arg18[%186, %c0_69, %c0_70], %189 {strides = array<i32>} : memref<8x8x16xf32, #tpu.memory_space<vmem>>, vector<1x8x16xf32>,
    %cst_71 = arith.constant 0.000000e+00 : f32
    %190 = vector.broadcast %cst_71 : f32 to vector<8x1xf32>
    %191 = arith.cmpf ogt, %117, %190 : vector<8x1xf32>
    %cst_72 = arith.constant 0.000000e+00 : f32
    %192 = vector.shape_cast %191 : vector<8x1xi1> to vector<8x1xi1>
    %193 = vector.broadcast %192 : vector<8x1xi1> to vector<8x16xi1>
    %194 = vector.broadcast %cst_72 : f32 to vector<8x16xf32>
    %195 = arith.select %193, %179, %194 : vector<8x16xi1>, vector<8x16xf32>
    %196 = arith.index_cast %111 : i32 to index
    %c0_73 = arith.constant 0 : index
    %c0_74 = arith.constant 0 : index
    %197 = vector.load %arg19[%196, %c0_73, %c0_74] : memref<8x8x16xf32, #tpu.memory_space<vmem>>, vector<1x8x16xf32>
    %198 = vector.shape_cast %197 : vector<1x8x16xf32> to vector<8x16xf32>
    %199 = vector.shape_cast %195 : vector<8x16xf32> to vector<1x8x16xf32>
    tpu.vector_store %arg19[%196, %c0_73, %c0_74], %199 {strides = array<i32>} : memref<8x8x16xf32, #tpu.memory_space<vmem>>, vector<1x8x16xf32>,
    %c2_i32 = arith.constant 2 : i32
    %c7_i32_75 = arith.constant 7 : i32
    %200 = arith.subi %c7_i32_75, %c2_i32 : i32
    %201 = arith.index_cast %c2_i32 : i32 to index
    %c0_76 = arith.constant 0 : index
    %c0_77 = arith.constant 0 : index
    %202 = vector.load %arg2[%201, %c0_76, %c0_77] : memref<8x8x1xf32, #tpu.memory_space<vmem>>, vector<1x8x1xf32>
    %203 = vector.shape_cast %202 : vector<1x8x1xf32> to vector<8x1xf32>
    %204 = arith.index_cast %200 : i32 to index
    %c0_78 = arith.constant 0 : index
    %c0_79 = arith.constant 0 : index
    %205 = vector.load %arg2[%204, %c0_78, %c0_79] : memref<8x8x1xf32, #tpu.memory_space<vmem>>, vector<1x8x1xf32>
    %206 = vector.shape_cast %205 : vector<1x8x1xf32> to vector<8x1xf32>
    %207 = arith.index_cast %c2_i32 : i32 to index
    %c0_80 = arith.constant 0 : index
    %c0_81 = arith.constant 0 : index
    %208 = vector.load %arg16[%207, %c0_80, %c0_81] : memref<8x8x48xf32, #tpu.memory_space<vmem>>, vector<1x8x48xf32>
    %209 = vector.shape_cast %208 : vector<1x8x48xf32> to vector<8x48xf32>
    %cst_82 = arith.constant dense<0.000000e+00> : vector<8x48xf32>
    %210 = tpu.matmul %174, %17, %cst_82 {dimension_numbers = #tpu.dot_dimension_numbers<[1], [0], [0], [1], [0, 0, 1, 1], [], []>} : vector<8x16xf32>, vector<16x48xf32>, vector<8x48xf32> -> vector<8x48xf32>
    %211 = vector.extract_strided_slice %209 {offsets = [0, 0], sizes = [8, 32], strides = [1, 1]} : vector<8x48xf32> to vector<8x32xf32>
    %212 = vector.extract_strided_slice %210 {offsets = [0, 0], sizes = [8, 32], strides = [1, 1]} : vector<8x48xf32> to vector<8x32xf32>
    %213 = arith.addf %211, %212 : vector<8x32xf32>
    %214 = arith.negf %213 : vector<8x32xf32>
    %215 = math.exp %214 : vector<8x32xf32>
    %cst_83 = arith.constant 1.000000e+00 : f32
    %216 = vector.broadcast %cst_83 : f32 to vector<8x32xf32>
    %217 = arith.addf %216, %215 : vector<8x32xf32>
    %218 = arith.divf %216, %217 : vector<8x32xf32>
    %219 = vector.extract_strided_slice %218 {offsets = [0, 0], sizes = [8, 16], strides = [1, 1]} : vector<8x32xf32> to vector<8x16xf32>
    %220 = vector.extract_strided_slice %218 {offsets = [0, 16], sizes = [8, 16], strides = [1, 1]} : vector<8x32xf32> to vector<8x16xf32>
    %221 = vector.extract_strided_slice %209 {offsets = [0, 32], sizes = [8, 16], strides = [1, 1]} : vector<8x48xf32> to vector<8x16xf32>
    %222 = vector.extract_strided_slice %210 {offsets = [0, 32], sizes = [8, 16], strides = [1, 1]} : vector<8x48xf32> to vector<8x16xf32>
    %223 = vector.broadcast %19 : vector<1x16xf32> to vector<8x16xf32>
    %224 = arith.addf %222, %223 : vector<8x16xf32>
    %225 = arith.mulf %219, %224 : vector<8x16xf32>
    %226 = arith.addf %221, %225 : vector<8x16xf32>
    %227 = math.tanh %226 : vector<8x16xf32>
    %cst_84 = arith.constant 1.000000e+00 : f32
    %228 = vector.broadcast %cst_84 : f32 to vector<8x16xf32>
    %229 = arith.subf %228, %220 : vector<8x16xf32>
    %230 = arith.mulf %229, %227 : vector<8x16xf32>
    %231 = arith.mulf %220, %174 : vector<8x16xf32>
    %232 = arith.addf %230, %231 : vector<8x16xf32>
    %233 = arith.index_cast %200 : i32 to index
    %c0_85 = arith.constant 0 : index
    %c0_86 = arith.constant 0 : index
    %234 = vector.load %arg17[%233, %c0_85, %c0_86] : memref<8x8x48xf32, #tpu.memory_space<vmem>>, vector<1x8x48xf32>
    %235 = vector.shape_cast %234 : vector<1x8x48xf32> to vector<8x48xf32>
    %cst_87 = arith.constant dense<0.000000e+00> : vector<8x48xf32>
    %236 = tpu.matmul %179, %18, %cst_87 {dimension_numbers = #tpu.dot_dimension_numbers<[1], [0], [0], [1], [0, 0, 1, 1], [], []>} : vector<8x16xf32>, vector<16x48xf32>, vector<8x48xf32> -> vector<8x48xf32>
    %237 = vector.extract_strided_slice %235 {offsets = [0, 0], sizes = [8, 32], strides = [1, 1]} : vector<8x48xf32> to vector<8x32xf32>
    %238 = vector.extract_strided_slice %236 {offsets = [0, 0], sizes = [8, 32], strides = [1, 1]} : vector<8x48xf32> to vector<8x32xf32>
    %239 = arith.addf %237, %238 : vector<8x32xf32>
    %240 = arith.negf %239 : vector<8x32xf32>
    %241 = math.exp %240 : vector<8x32xf32>
    %cst_88 = arith.constant 1.000000e+00 : f32
    %242 = vector.broadcast %cst_88 : f32 to vector<8x32xf32>
    %243 = arith.addf %242, %241 : vector<8x32xf32>
    %244 = arith.divf %242, %243 : vector<8x32xf32>
    %245 = vector.extract_strided_slice %244 {offsets = [0, 0], sizes = [8, 16], strides = [1, 1]} : vector<8x32xf32> to vector<8x16xf32>
    %246 = vector.extract_strided_slice %244 {offsets = [0, 16], sizes = [8, 16], strides = [1, 1]} : vector<8x32xf32> to vector<8x16xf32>
    %247 = vector.extract_strided_slice %235 {offsets = [0, 32], sizes = [8, 16], strides = [1, 1]} : vector<8x48xf32> to vector<8x16xf32>
    %248 = vector.extract_strided_slice %236 {offsets = [0, 32], sizes = [8, 16], strides = [1, 1]} : vector<8x48xf32> to vector<8x16xf32>
    %249 = vector.broadcast %20 : vector<1x16xf32> to vector<8x16xf32>
    %250 = arith.addf %248, %249 : vector<8x16xf32>
    %251 = arith.mulf %245, %250 : vector<8x16xf32>
    %252 = arith.addf %247, %251 : vector<8x16xf32>
    %253 = math.tanh %252 : vector<8x16xf32>
    %cst_89 = arith.constant 1.000000e+00 : f32
    %254 = vector.broadcast %cst_89 : f32 to vector<8x16xf32>
    %255 = arith.subf %254, %246 : vector<8x16xf32>
    %256 = arith.mulf %255, %253 : vector<8x16xf32>
    %257 = arith.mulf %246, %179 : vector<8x16xf32>
    %258 = arith.addf %256, %257 : vector<8x16xf32>
    %cst_90 = arith.constant 0.000000e+00 : f32
    %259 = vector.broadcast %cst_90 : f32 to vector<8x1xf32>
    %260 = arith.cmpf ogt, %203, %259 : vector<8x1xf32>
    %261 = vector.shape_cast %260 : vector<8x1xi1> to vector<8x1xi1>
    %262 = vector.broadcast %261 : vector<8x1xi1> to vector<8x16xi1>
    %263 = arith.select %262, %232, %174 : vector<8x16xi1>, vector<8x16xf32>
    %cst_91 = arith.constant 0.000000e+00 : f32
    %264 = vector.broadcast %cst_91 : f32 to vector<8x1xf32>
    %265 = arith.cmpf ogt, %206, %264 : vector<8x1xf32>
    %266 = vector.shape_cast %265 : vector<8x1xi1> to vector<8x1xi1>
    %267 = vector.broadcast %266 : vector<8x1xi1> to vector<8x16xi1>
    %268 = arith.select %267, %258, %179 : vector<8x16xi1>, vector<8x16xf32>
    %cst_92 = arith.constant 0.000000e+00 : f32
    %269 = vector.broadcast %cst_92 : f32 to vector<8x1xf32>
    %270 = arith.cmpf ogt, %203, %269 : vector<8x1xf32>
    %cst_93 = arith.constant 0.000000e+00 : f32
    %271 = vector.shape_cast %270 : vector<8x1xi1> to vector<8x1xi1>
    %272 = vector.broadcast %271 : vector<8x1xi1> to vector<8x16xi1>
    %273 = vector.broadcast %cst_93 : f32 to vector<8x16xf32>
    %274 = arith.select %272, %263, %273 : vector<8x16xi1>, vector<8x16xf32>
    %275 = arith.index_cast %c2_i32 : i32 to index
    %c0_94 = arith.constant 0 : index
    %c0_95 = arith.constant 0 : index
    %276 = vector.load %arg18[%275, %c0_94, %c0_95] : memref<8x8x16xf32, #tpu.memory_space<vmem>>, vector<1x8x16xf32>
    %277 = vector.shape_cast %276 : vector<1x8x16xf32> to vector<8x16xf32>
    %278 = vector.shape_cast %274 : vector<8x16xf32> to vector<1x8x16xf32>
    tpu.vector_store %arg18[%275, %c0_94, %c0_95], %278 {strides = array<i32>} : memref<8x8x16xf32, #tpu.memory_space<vmem>>, vector<1x8x16xf32>,
    %cst_96 = arith.constant 0.000000e+00 : f32
    %279 = vector.broadcast %cst_96 : f32 to vector<8x1xf32>
    %280 = arith.cmpf ogt, %206, %279 : vector<8x1xf32>
    %cst_97 = arith.constant 0.000000e+00 : f32
    %281 = vector.shape_cast %280 : vector<8x1xi1> to vector<8x1xi1>
    %282 = vector.broadcast %281 : vector<8x1xi1> to vector<8x16xi1>
    %283 = vector.broadcast %cst_97 : f32 to vector<8x16xf32>
    %284 = arith.select %282, %268, %283 : vector<8x16xi1>, vector<8x16xf32>
    %285 = arith.index_cast %200 : i32 to index
    %c0_98 = arith.constant 0 : index
    %c0_99 = arith.constant 0 : index
    %286 = vector.load %arg19[%285, %c0_98, %c0_99] : memref<8x8x16xf32, #tpu.memory_space<vmem>>, vector<1x8x16xf32>
    %287 = vector.shape_cast %286 : vector<1x8x16xf32> to vector<8x16xf32>
    %288 = vector.shape_cast %284 : vector<8x16xf32> to vector<1x8x16xf32>
    tpu.vector_store %arg19[%285, %c0_98, %c0_99], %288 {strides = array<i32>} : memref<8x8x16xf32, #tpu.memory_space<vmem>>, vector<1x8x16xf32>,
    %c3_i32 = arith.constant 3 : i32
    %c7_i32_100 = arith.constant 7 : i32
    %289 = arith.subi %c7_i32_100, %c3_i32 : i32
    %290 = arith.index_cast %c3_i32 : i32 to index
    %c0_101 = arith.constant 0 : index
    %c0_102 = arith.constant 0 : index
    %291 = vector.load %arg2[%290, %c0_101, %c0_102] : memref<8x8x1xf32, #tpu.memory_space<vmem>>, vector<1x8x1xf32>
    %292 = vector.shape_cast %291 : vector<1x8x1xf32> to vector<8x1xf32>
    %293 = arith.index_cast %289 : i32 to index
    %c0_103 = arith.constant 0 : index
    %c0_104 = arith.constant 0 : index
    %294 = vector.load %arg2[%293, %c0_103, %c0_104] : memref<8x8x1xf32, #tpu.memory_space<vmem>>, vector<1x8x1xf32>
    %295 = vector.shape_cast %294 : vector<1x8x1xf32> to vector<8x1xf32>
    %296 = arith.index_cast %c3_i32 : i32 to index
    %c0_105 = arith.constant 0 : index
    %c0_106 = arith.constant 0 : index
    %297 = vector.load %arg16[%296, %c0_105, %c0_106] : memref<8x8x48xf32, #tpu.memory_space<vmem>>, vector<1x8x48xf32>
    %298 = vector.shape_cast %297 : vector<1x8x48xf32> to vector<8x48xf32>
    %cst_107 = arith.constant dense<0.000000e+00> : vector<8x48xf32>
    %299 = tpu.matmul %263, %17, %cst_107 {dimension_numbers = #tpu.dot_dimension_numbers<[1], [0], [0], [1], [0, 0, 1, 1], [], []>} : vector<8x16xf32>, vector<16x48xf32>, vector<8x48xf32> -> vector<8x48xf32>
    %300 = vector.extract_strided_slice %298 {offsets = [0, 0], sizes = [8, 32], strides = [1, 1]} : vector<8x48xf32> to vector<8x32xf32>
    %301 = vector.extract_strided_slice %299 {offsets = [0, 0], sizes = [8, 32], strides = [1, 1]} : vector<8x48xf32> to vector<8x32xf32>
    %302 = arith.addf %300, %301 : vector<8x32xf32>
    %303 = arith.negf %302 : vector<8x32xf32>
    %304 = math.exp %303 : vector<8x32xf32>
    %cst_108 = arith.constant 1.000000e+00 : f32
    %305 = vector.broadcast %cst_108 : f32 to vector<8x32xf32>
    %306 = arith.addf %305, %304 : vector<8x32xf32>
    %307 = arith.divf %305, %306 : vector<8x32xf32>
    %308 = vector.extract_strided_slice %307 {offsets = [0, 0], sizes = [8, 16], strides = [1, 1]} : vector<8x32xf32> to vector<8x16xf32>
    %309 = vector.extract_strided_slice %307 {offsets = [0, 16], sizes = [8, 16], strides = [1, 1]} : vector<8x32xf32> to vector<8x16xf32>
    %310 = vector.extract_strided_slice %298 {offsets = [0, 32], sizes = [8, 16], strides = [1, 1]} : vector<8x48xf32> to vector<8x16xf32>
    %311 = vector.extract_strided_slice %299 {offsets = [0, 32], sizes = [8, 16], strides = [1, 1]} : vector<8x48xf32> to vector<8x16xf32>
    %312 = vector.broadcast %19 : vector<1x16xf32> to vector<8x16xf32>
    %313 = arith.addf %311, %312 : vector<8x16xf32>
    %314 = arith.mulf %308, %313 : vector<8x16xf32>
    %315 = arith.addf %310, %314 : vector<8x16xf32>
    %316 = math.tanh %315 : vector<8x16xf32>
    %cst_109 = arith.constant 1.000000e+00 : f32
    %317 = vector.broadcast %cst_109 : f32 to vector<8x16xf32>
    %318 = arith.subf %317, %309 : vector<8x16xf32>
    %319 = arith.mulf %318, %316 : vector<8x16xf32>
    %320 = arith.mulf %309, %263 : vector<8x16xf32>
    %321 = arith.addf %319, %320 : vector<8x16xf32>
    %322 = arith.index_cast %289 : i32 to index
    %c0_110 = arith.constant 0 : index
    %c0_111 = arith.constant 0 : index
    %323 = vector.load %arg17[%322, %c0_110, %c0_111] : memref<8x8x48xf32, #tpu.memory_space<vmem>>, vector<1x8x48xf32>
    %324 = vector.shape_cast %323 : vector<1x8x48xf32> to vector<8x48xf32>
    %cst_112 = arith.constant dense<0.000000e+00> : vector<8x48xf32>
    %325 = tpu.matmul %268, %18, %cst_112 {dimension_numbers = #tpu.dot_dimension_numbers<[1], [0], [0], [1], [0, 0, 1, 1], [], []>} : vector<8x16xf32>, vector<16x48xf32>, vector<8x48xf32> -> vector<8x48xf32>
    %326 = vector.extract_strided_slice %324 {offsets = [0, 0], sizes = [8, 32], strides = [1, 1]} : vector<8x48xf32> to vector<8x32xf32>
    %327 = vector.extract_strided_slice %325 {offsets = [0, 0], sizes = [8, 32], strides = [1, 1]} : vector<8x48xf32> to vector<8x32xf32>
    %328 = arith.addf %326, %327 : vector<8x32xf32>
    %329 = arith.negf %328 : vector<8x32xf32>
    %330 = math.exp %329 : vector<8x32xf32>
    %cst_113 = arith.constant 1.000000e+00 : f32
    %331 = vector.broadcast %cst_113 : f32 to vector<8x32xf32>
    %332 = arith.addf %331, %330 : vector<8x32xf32>
    %333 = arith.divf %331, %332 : vector<8x32xf32>
    %334 = vector.extract_strided_slice %333 {offsets = [0, 0], sizes = [8, 16], strides = [1, 1]} : vector<8x32xf32> to vector<8x16xf32>
    %335 = vector.extract_strided_slice %333 {offsets = [0, 16], sizes = [8, 16], strides = [1, 1]} : vector<8x32xf32> to vector<8x16xf32>
    %336 = vector.extract_strided_slice %324 {offsets = [0, 32], sizes = [8, 16], strides = [1, 1]} : vector<8x48xf32> to vector<8x16xf32>
    %337 = vector.extract_strided_slice %325 {offsets = [0, 32], sizes = [8, 16], strides = [1, 1]} : vector<8x48xf32> to vector<8x16xf32>
    %338 = vector.broadcast %20 : vector<1x16xf32> to vector<8x16xf32>
    %339 = arith.addf %337, %338 : vector<8x16xf32>
    %340 = arith.mulf %334, %339 : vector<8x16xf32>
    %341 = arith.addf %336, %340 : vector<8x16xf32>
    %342 = math.tanh %341 : vector<8x16xf32>
    %cst_114 = arith.constant 1.000000e+00 : f32
    %343 = vector.broadcast %cst_114 : f32 to vector<8x16xf32>
    %344 = arith.subf %343, %335 : vector<8x16xf32>
    %345 = arith.mulf %344, %342 : vector<8x16xf32>
    %346 = arith.mulf %335, %268 : vector<8x16xf32>
    %347 = arith.addf %345, %346 : vector<8x16xf32>
    %cst_115 = arith.constant 0.000000e+00 : f32
    %348 = vector.broadcast %cst_115 : f32 to vector<8x1xf32>
    %349 = arith.cmpf ogt, %292, %348 : vector<8x1xf32>
    %350 = vector.shape_cast %349 : vector<8x1xi1> to vector<8x1xi1>
    %351 = vector.broadcast %350 : vector<8x1xi1> to vector<8x16xi1>
    %352 = arith.select %351, %321, %263 : vector<8x16xi1>, vector<8x16xf32>
    %cst_116 = arith.constant 0.000000e+00 : f32
    %353 = vector.broadcast %cst_116 : f32 to vector<8x1xf32>
    %354 = arith.cmpf ogt, %295, %353 : vector<8x1xf32>
    %355 = vector.shape_cast %354 : vector<8x1xi1> to vector<8x1xi1>
    %356 = vector.broadcast %355 : vector<8x1xi1> to vector<8x16xi1>
    %357 = arith.select %356, %347, %268 : vector<8x16xi1>, vector<8x16xf32>
    %cst_117 = arith.constant 0.000000e+00 : f32
    %358 = vector.broadcast %cst_117 : f32 to vector<8x1xf32>
    %359 = arith.cmpf ogt, %292, %358 : vector<8x1xf32>
    %cst_118 = arith.constant 0.000000e+00 : f32
    %360 = vector.shape_cast %359 : vector<8x1xi1> to vector<8x1xi1>
    %361 = vector.broadcast %360 : vector<8x1xi1> to vector<8x16xi1>
    %362 = vector.broadcast %cst_118 : f32 to vector<8x16xf32>
    %363 = arith.select %361, %352, %362 : vector<8x16xi1>, vector<8x16xf32>
    %364 = arith.index_cast %c3_i32 : i32 to index
    %c0_119 = arith.constant 0 : index
    %c0_120 = arith.constant 0 : index
    %365 = vector.load %arg18[%364, %c0_119, %c0_120] : memref<8x8x16xf32, #tpu.memory_space<vmem>>, vector<1x8x16xf32>
    %366 = vector.shape_cast %365 : vector<1x8x16xf32> to vector<8x16xf32>
    %367 = vector.shape_cast %363 : vector<8x16xf32> to vector<1x8x16xf32>
    tpu.vector_store %arg18[%364, %c0_119, %c0_120], %367 {strides = array<i32>} : memref<8x8x16xf32, #tpu.memory_space<vmem>>, vector<1x8x16xf32>,
    %cst_121 = arith.constant 0.000000e+00 : f32
    %368 = vector.broadcast %cst_121 : f32 to vector<8x1xf32>
    %369 = arith.cmpf ogt, %295, %368 : vector<8x1xf32>
    %cst_122 = arith.constant 0.000000e+00 : f32
    %370 = vector.shape_cast %369 : vector<8x1xi1> to vector<8x1xi1>
    %371 = vector.broadcast %370 : vector<8x1xi1> to vector<8x16xi1>
    %372 = vector.broadcast %cst_122 : f32 to vector<8x16xf32>
    %373 = arith.select %371, %357, %372 : vector<8x16xi1>, vector<8x16xf32>
    %374 = arith.index_cast %289 : i32 to index
    %c0_123 = arith.constant 0 : index
    %c0_124 = arith.constant 0 : index
    %375 = vector.load %arg19[%374, %c0_123, %c0_124] : memref<8x8x16xf32, #tpu.memory_space<vmem>>, vector<1x8x16xf32>
    %376 = vector.shape_cast %375 : vector<1x8x16xf32> to vector<8x16xf32>
    %377 = vector.shape_cast %373 : vector<8x16xf32> to vector<1x8x16xf32>
    tpu.vector_store %arg19[%374, %c0_123, %c0_124], %377 {strides = array<i32>} : memref<8x8x16xf32, #tpu.memory_space<vmem>>, vector<1x8x16xf32>,
    %c4_i32 = arith.constant 4 : i32
    %c7_i32_125 = arith.constant 7 : i32
    %378 = arith.subi %c7_i32_125, %c4_i32 : i32
    %379 = arith.index_cast %c4_i32 : i32 to index
    %c0_126 = arith.constant 0 : index
    %c0_127 = arith.constant 0 : index
    %380 = vector.load %arg2[%379, %c0_126, %c0_127] : memref<8x8x1xf32, #tpu.memory_space<vmem>>, vector<1x8x1xf32>
    %381 = vector.shape_cast %380 : vector<1x8x1xf32> to vector<8x1xf32>
    %382 = arith.index_cast %378 : i32 to index
    %c0_128 = arith.constant 0 : index
    %c0_129 = arith.constant 0 : index
    %383 = vector.load %arg2[%382, %c0_128, %c0_129] : memref<8x8x1xf32, #tpu.memory_space<vmem>>, vector<1x8x1xf32>
    %384 = vector.shape_cast %383 : vector<1x8x1xf32> to vector<8x1xf32>
    %385 = arith.index_cast %c4_i32 : i32 to index
    %c0_130 = arith.constant 0 : index
    %c0_131 = arith.constant 0 : index
    %386 = vector.load %arg16[%385, %c0_130, %c0_131] : memref<8x8x48xf32, #tpu.memory_space<vmem>>, vector<1x8x48xf32>
    %387 = vector.shape_cast %386 : vector<1x8x48xf32> to vector<8x48xf32>
    %cst_132 = arith.constant dense<0.000000e+00> : vector<8x48xf32>
    %388 = tpu.matmul %352, %17, %cst_132 {dimension_numbers = #tpu.dot_dimension_numbers<[1], [0], [0], [1], [0, 0, 1, 1], [], []>} : vector<8x16xf32>, vector<16x48xf32>, vector<8x48xf32> -> vector<8x48xf32>
    %389 = vector.extract_strided_slice %387 {offsets = [0, 0], sizes = [8, 32], strides = [1, 1]} : vector<8x48xf32> to vector<8x32xf32>
    %390 = vector.extract_strided_slice %388 {offsets = [0, 0], sizes = [8, 32], strides = [1, 1]} : vector<8x48xf32> to vector<8x32xf32>
    %391 = arith.addf %389, %390 : vector<8x32xf32>
    %392 = arith.negf %391 : vector<8x32xf32>
    %393 = math.exp %392 : vector<8x32xf32>
    %cst_133 = arith.constant 1.000000e+00 : f32
    %394 = vector.broadcast %cst_133 : f32 to vector<8x32xf32>
    %395 = arith.addf %394, %393 : vector<8x32xf32>
    %396 = arith.divf %394, %395 : vector<8x32xf32>
    %397 = vector.extract_strided_slice %396 {offsets = [0, 0], sizes = [8, 16], strides = [1, 1]} : vector<8x32xf32> to vector<8x16xf32>
    %398 = vector.extract_strided_slice %396 {offsets = [0, 16], sizes = [8, 16], strides = [1, 1]} : vector<8x32xf32> to vector<8x16xf32>
    %399 = vector.extract_strided_slice %387 {offsets = [0, 32], sizes = [8, 16], strides = [1, 1]} : vector<8x48xf32> to vector<8x16xf32>
    %400 = vector.extract_strided_slice %388 {offsets = [0, 32], sizes = [8, 16], strides = [1, 1]} : vector<8x48xf32> to vector<8x16xf32>
    %401 = vector.broadcast %19 : vector<1x16xf32> to vector<8x16xf32>
    %402 = arith.addf %400, %401 : vector<8x16xf32>
    %403 = arith.mulf %397, %402 : vector<8x16xf32>
    %404 = arith.addf %399, %403 : vector<8x16xf32>
    %405 = math.tanh %404 : vector<8x16xf32>
    %cst_134 = arith.constant 1.000000e+00 : f32
    %406 = vector.broadcast %cst_134 : f32 to vector<8x16xf32>
    %407 = arith.subf %406, %398 : vector<8x16xf32>
    %408 = arith.mulf %407, %405 : vector<8x16xf32>
    %409 = arith.mulf %398, %352 : vector<8x16xf32>
    %410 = arith.addf %408, %409 : vector<8x16xf32>
    %411 = arith.index_cast %378 : i32 to index
    %c0_135 = arith.constant 0 : index
    %c0_136 = arith.constant 0 : index
    %412 = vector.load %arg17[%411, %c0_135, %c0_136] : memref<8x8x48xf32, #tpu.memory_space<vmem>>, vector<1x8x48xf32>
    %413 = vector.shape_cast %412 : vector<1x8x48xf32> to vector<8x48xf32>
    %cst_137 = arith.constant dense<0.000000e+00> : vector<8x48xf32>
    %414 = tpu.matmul %357, %18, %cst_137 {dimension_numbers = #tpu.dot_dimension_numbers<[1], [0], [0], [1], [0, 0, 1, 1], [], []>} : vector<8x16xf32>, vector<16x48xf32>, vector<8x48xf32> -> vector<8x48xf32>
    %415 = vector.extract_strided_slice %413 {offsets = [0, 0], sizes = [8, 32], strides = [1, 1]} : vector<8x48xf32> to vector<8x32xf32>
    %416 = vector.extract_strided_slice %414 {offsets = [0, 0], sizes = [8, 32], strides = [1, 1]} : vector<8x48xf32> to vector<8x32xf32>
    %417 = arith.addf %415, %416 : vector<8x32xf32>
    %418 = arith.negf %417 : vector<8x32xf32>
    %419 = math.exp %418 : vector<8x32xf32>
    %cst_138 = arith.constant 1.000000e+00 : f32
    %420 = vector.broadcast %cst_138 : f32 to vector<8x32xf32>
    %421 = arith.addf %420, %419 : vector<8x32xf32>
    %422 = arith.divf %420, %421 : vector<8x32xf32>
    %423 = vector.extract_strided_slice %422 {offsets = [0, 0], sizes = [8, 16], strides = [1, 1]} : vector<8x32xf32> to vector<8x16xf32>
    %424 = vector.extract_strided_slice %422 {offsets = [0, 16], sizes = [8, 16], strides = [1, 1]} : vector<8x32xf32> to vector<8x16xf32>
    %425 = vector.extract_strided_slice %413 {offsets = [0, 32], sizes = [8, 16], strides = [1, 1]} : vector<8x48xf32> to vector<8x16xf32>
    %426 = vector.extract_strided_slice %414 {offsets = [0, 32], sizes = [8, 16], strides = [1, 1]} : vector<8x48xf32> to vector<8x16xf32>
    %427 = vector.broadcast %20 : vector<1x16xf32> to vector<8x16xf32>
    %428 = arith.addf %426, %427 : vector<8x16xf32>
    %429 = arith.mulf %423, %428 : vector<8x16xf32>
    %430 = arith.addf %425, %429 : vector<8x16xf32>
    %431 = math.tanh %430 : vector<8x16xf32>
    %cst_139 = arith.constant 1.000000e+00 : f32
    %432 = vector.broadcast %cst_139 : f32 to vector<8x16xf32>
    %433 = arith.subf %432, %424 : vector<8x16xf32>
    %434 = arith.mulf %433, %431 : vector<8x16xf32>
    %435 = arith.mulf %424, %357 : vector<8x16xf32>
    %436 = arith.addf %434, %435 : vector<8x16xf32>
    %cst_140 = arith.constant 0.000000e+00 : f32
    %437 = vector.broadcast %cst_140 : f32 to vector<8x1xf32>
    %438 = arith.cmpf ogt, %381, %437 : vector<8x1xf32>
    %439 = vector.shape_cast %438 : vector<8x1xi1> to vector<8x1xi1>
    %440 = vector.broadcast %439 : vector<8x1xi1> to vector<8x16xi1>
    %441 = arith.select %440, %410, %352 : vector<8x16xi1>, vector<8x16xf32>
    %cst_141 = arith.constant 0.000000e+00 : f32
    %442 = vector.broadcast %cst_141 : f32 to vector<8x1xf32>
    %443 = arith.cmpf ogt, %384, %442 : vector<8x1xf32>
    %444 = vector.shape_cast %443 : vector<8x1xi1> to vector<8x1xi1>
    %445 = vector.broadcast %444 : vector<8x1xi1> to vector<8x16xi1>
    %446 = arith.select %445, %436, %357 : vector<8x16xi1>, vector<8x16xf32>
    %cst_142 = arith.constant 0.000000e+00 : f32
    %447 = vector.broadcast %cst_142 : f32 to vector<8x1xf32>
    %448 = arith.cmpf ogt, %381, %447 : vector<8x1xf32>
    %cst_143 = arith.constant 0.000000e+00 : f32
    %449 = vector.shape_cast %448 : vector<8x1xi1> to vector<8x1xi1>
    %450 = vector.broadcast %449 : vector<8x1xi1> to vector<8x16xi1>
    %451 = vector.broadcast %cst_143 : f32 to vector<8x16xf32>
    %452 = arith.select %450, %441, %451 : vector<8x16xi1>, vector<8x16xf32>
    %453 = arith.index_cast %c4_i32 : i32 to index
    %c0_144 = arith.constant 0 : index
    %c0_145 = arith.constant 0 : index
    %454 = vector.load %arg18[%453, %c0_144, %c0_145] : memref<8x8x16xf32, #tpu.memory_space<vmem>>, vector<1x8x16xf32>
    %455 = vector.shape_cast %454 : vector<1x8x16xf32> to vector<8x16xf32>
    %456 = vector.shape_cast %452 : vector<8x16xf32> to vector<1x8x16xf32>
    tpu.vector_store %arg18[%453, %c0_144, %c0_145], %456 {strides = array<i32>} : memref<8x8x16xf32, #tpu.memory_space<vmem>>, vector<1x8x16xf32>,
    %cst_146 = arith.constant 0.000000e+00 : f32
    %457 = vector.broadcast %cst_146 : f32 to vector<8x1xf32>
    %458 = arith.cmpf ogt, %384, %457 : vector<8x1xf32>
    %cst_147 = arith.constant 0.000000e+00 : f32
    %459 = vector.shape_cast %458 : vector<8x1xi1> to vector<8x1xi1>
    %460 = vector.broadcast %459 : vector<8x1xi1> to vector<8x16xi1>
    %461 = vector.broadcast %cst_147 : f32 to vector<8x16xf32>
    %462 = arith.select %460, %446, %461 : vector<8x16xi1>, vector<8x16xf32>
    %463 = arith.index_cast %378 : i32 to index
    %c0_148 = arith.constant 0 : index
    %c0_149 = arith.constant 0 : index
    %464 = vector.load %arg19[%463, %c0_148, %c0_149] : memref<8x8x16xf32, #tpu.memory_space<vmem>>, vector<1x8x16xf32>
    %465 = vector.shape_cast %464 : vector<1x8x16xf32> to vector<8x16xf32>
    %466 = vector.shape_cast %462 : vector<8x16xf32> to vector<1x8x16xf32>
    tpu.vector_store %arg19[%463, %c0_148, %c0_149], %466 {strides = array<i32>} : memref<8x8x16xf32, #tpu.memory_space<vmem>>, vector<1x8x16xf32>,
    %c5_i32 = arith.constant 5 : i32
    %c7_i32_150 = arith.constant 7 : i32
    %467 = arith.subi %c7_i32_150, %c5_i32 : i32
    %468 = arith.index_cast %c5_i32 : i32 to index
    %c0_151 = arith.constant 0 : index
    %c0_152 = arith.constant 0 : index
    %469 = vector.load %arg2[%468, %c0_151, %c0_152] : memref<8x8x1xf32, #tpu.memory_space<vmem>>, vector<1x8x1xf32>
    %470 = vector.shape_cast %469 : vector<1x8x1xf32> to vector<8x1xf32>
    %471 = arith.index_cast %467 : i32 to index
    %c0_153 = arith.constant 0 : index
    %c0_154 = arith.constant 0 : index
    %472 = vector.load %arg2[%471, %c0_153, %c0_154] : memref<8x8x1xf32, #tpu.memory_space<vmem>>, vector<1x8x1xf32>
    %473 = vector.shape_cast %472 : vector<1x8x1xf32> to vector<8x1xf32>
    %474 = arith.index_cast %c5_i32 : i32 to index
    %c0_155 = arith.constant 0 : index
    %c0_156 = arith.constant 0 : index
    %475 = vector.load %arg16[%474, %c0_155, %c0_156] : memref<8x8x48xf32, #tpu.memory_space<vmem>>, vector<1x8x48xf32>
    %476 = vector.shape_cast %475 : vector<1x8x48xf32> to vector<8x48xf32>
    %cst_157 = arith.constant dense<0.000000e+00> : vector<8x48xf32>
    %477 = tpu.matmul %441, %17, %cst_157 {dimension_numbers = #tpu.dot_dimension_numbers<[1], [0], [0], [1], [0, 0, 1, 1], [], []>} : vector<8x16xf32>, vector<16x48xf32>, vector<8x48xf32> -> vector<8x48xf32>
    %478 = vector.extract_strided_slice %476 {offsets = [0, 0], sizes = [8, 32], strides = [1, 1]} : vector<8x48xf32> to vector<8x32xf32>
    %479 = vector.extract_strided_slice %477 {offsets = [0, 0], sizes = [8, 32], strides = [1, 1]} : vector<8x48xf32> to vector<8x32xf32>
    %480 = arith.addf %478, %479 : vector<8x32xf32>
    %481 = arith.negf %480 : vector<8x32xf32>
    %482 = math.exp %481 : vector<8x32xf32>
    %cst_158 = arith.constant 1.000000e+00 : f32
    %483 = vector.broadcast %cst_158 : f32 to vector<8x32xf32>
    %484 = arith.addf %483, %482 : vector<8x32xf32>
    %485 = arith.divf %483, %484 : vector<8x32xf32>
    %486 = vector.extract_strided_slice %485 {offsets = [0, 0], sizes = [8, 16], strides = [1, 1]} : vector<8x32xf32> to vector<8x16xf32>
    %487 = vector.extract_strided_slice %485 {offsets = [0, 16], sizes = [8, 16], strides = [1, 1]} : vector<8x32xf32> to vector<8x16xf32>
    %488 = vector.extract_strided_slice %476 {offsets = [0, 32], sizes = [8, 16], strides = [1, 1]} : vector<8x48xf32> to vector<8x16xf32>
    %489 = vector.extract_strided_slice %477 {offsets = [0, 32], sizes = [8, 16], strides = [1, 1]} : vector<8x48xf32> to vector<8x16xf32>
    %490 = vector.broadcast %19 : vector<1x16xf32> to vector<8x16xf32>
    %491 = arith.addf %489, %490 : vector<8x16xf32>
    %492 = arith.mulf %486, %491 : vector<8x16xf32>
    %493 = arith.addf %488, %492 : vector<8x16xf32>
    %494 = math.tanh %493 : vector<8x16xf32>
    %cst_159 = arith.constant 1.000000e+00 : f32
    %495 = vector.broadcast %cst_159 : f32 to vector<8x16xf32>
    %496 = arith.subf %495, %487 : vector<8x16xf32>
    %497 = arith.mulf %496, %494 : vector<8x16xf32>
    %498 = arith.mulf %487, %441 : vector<8x16xf32>
    %499 = arith.addf %497, %498 : vector<8x16xf32>
    %500 = arith.index_cast %467 : i32 to index
    %c0_160 = arith.constant 0 : index
    %c0_161 = arith.constant 0 : index
    %501 = vector.load %arg17[%500, %c0_160, %c0_161] : memref<8x8x48xf32, #tpu.memory_space<vmem>>, vector<1x8x48xf32>
    %502 = vector.shape_cast %501 : vector<1x8x48xf32> to vector<8x48xf32>
    %cst_162 = arith.constant dense<0.000000e+00> : vector<8x48xf32>
    %503 = tpu.matmul %446, %18, %cst_162 {dimension_numbers = #tpu.dot_dimension_numbers<[1], [0], [0], [1], [0, 0, 1, 1], [], []>} : vector<8x16xf32>, vector<16x48xf32>, vector<8x48xf32> -> vector<8x48xf32>
    %504 = vector.extract_strided_slice %502 {offsets = [0, 0], sizes = [8, 32], strides = [1, 1]} : vector<8x48xf32> to vector<8x32xf32>
    %505 = vector.extract_strided_slice %503 {offsets = [0, 0], sizes = [8, 32], strides = [1, 1]} : vector<8x48xf32> to vector<8x32xf32>
    %506 = arith.addf %504, %505 : vector<8x32xf32>
    %507 = arith.negf %506 : vector<8x32xf32>
    %508 = math.exp %507 : vector<8x32xf32>
    %cst_163 = arith.constant 1.000000e+00 : f32
    %509 = vector.broadcast %cst_163 : f32 to vector<8x32xf32>
    %510 = arith.addf %509, %508 : vector<8x32xf32>
    %511 = arith.divf %509, %510 : vector<8x32xf32>
    %512 = vector.extract_strided_slice %511 {offsets = [0, 0], sizes = [8, 16], strides = [1, 1]} : vector<8x32xf32> to vector<8x16xf32>
    %513 = vector.extract_strided_slice %511 {offsets = [0, 16], sizes = [8, 16], strides = [1, 1]} : vector<8x32xf32> to vector<8x16xf32>
    %514 = vector.extract_strided_slice %502 {offsets = [0, 32], sizes = [8, 16], strides = [1, 1]} : vector<8x48xf32> to vector<8x16xf32>
    %515 = vector.extract_strided_slice %503 {offsets = [0, 32], sizes = [8, 16], strides = [1, 1]} : vector<8x48xf32> to vector<8x16xf32>
    %516 = vector.broadcast %20 : vector<1x16xf32> to vector<8x16xf32>
    %517 = arith.addf %515, %516 : vector<8x16xf32>
    %518 = arith.mulf %512, %517 : vector<8x16xf32>
    %519 = arith.addf %514, %518 : vector<8x16xf32>
    %520 = math.tanh %519 : vector<8x16xf32>
    %cst_164 = arith.constant 1.000000e+00 : f32
    %521 = vector.broadcast %cst_164 : f32 to vector<8x16xf32>
    %522 = arith.subf %521, %513 : vector<8x16xf32>
    %523 = arith.mulf %522, %520 : vector<8x16xf32>
    %524 = arith.mulf %513, %446 : vector<8x16xf32>
    %525 = arith.addf %523, %524 : vector<8x16xf32>
    %cst_165 = arith.constant 0.000000e+00 : f32
    %526 = vector.broadcast %cst_165 : f32 to vector<8x1xf32>
    %527 = arith.cmpf ogt, %470, %526 : vector<8x1xf32>
    %528 = vector.shape_cast %527 : vector<8x1xi1> to vector<8x1xi1>
    %529 = vector.broadcast %528 : vector<8x1xi1> to vector<8x16xi1>
    %530 = arith.select %529, %499, %441 : vector<8x16xi1>, vector<8x16xf32>
    %cst_166 = arith.constant 0.000000e+00 : f32
    %531 = vector.broadcast %cst_166 : f32 to vector<8x1xf32>
    %532 = arith.cmpf ogt, %473, %531 : vector<8x1xf32>
    %533 = vector.shape_cast %532 : vector<8x1xi1> to vector<8x1xi1>
    %534 = vector.broadcast %533 : vector<8x1xi1> to vector<8x16xi1>
    %535 = arith.select %534, %525, %446 : vector<8x16xi1>, vector<8x16xf32>
    %cst_167 = arith.constant 0.000000e+00 : f32
    %536 = vector.broadcast %cst_167 : f32 to vector<8x1xf32>
    %537 = arith.cmpf ogt, %470, %536 : vector<8x1xf32>
    %cst_168 = arith.constant 0.000000e+00 : f32
    %538 = vector.shape_cast %537 : vector<8x1xi1> to vector<8x1xi1>
    %539 = vector.broadcast %538 : vector<8x1xi1> to vector<8x16xi1>
    %540 = vector.broadcast %cst_168 : f32 to vector<8x16xf32>
    %541 = arith.select %539, %530, %540 : vector<8x16xi1>, vector<8x16xf32>
    %542 = arith.index_cast %c5_i32 : i32 to index
    %c0_169 = arith.constant 0 : index
    %c0_170 = arith.constant 0 : index
    %543 = vector.load %arg18[%542, %c0_169, %c0_170] : memref<8x8x16xf32, #tpu.memory_space<vmem>>, vector<1x8x16xf32>
    %544 = vector.shape_cast %543 : vector<1x8x16xf32> to vector<8x16xf32>
    %545 = vector.shape_cast %541 : vector<8x16xf32> to vector<1x8x16xf32>
    tpu.vector_store %arg18[%542, %c0_169, %c0_170], %545 {strides = array<i32>} : memref<8x8x16xf32, #tpu.memory_space<vmem>>, vector<1x8x16xf32>,
    %cst_171 = arith.constant 0.000000e+00 : f32
    %546 = vector.broadcast %cst_171 : f32 to vector<8x1xf32>
    %547 = arith.cmpf ogt, %473, %546 : vector<8x1xf32>
    %cst_172 = arith.constant 0.000000e+00 : f32
    %548 = vector.shape_cast %547 : vector<8x1xi1> to vector<8x1xi1>
    %549 = vector.broadcast %548 : vector<8x1xi1> to vector<8x16xi1>
    %550 = vector.broadcast %cst_172 : f32 to vector<8x16xf32>
    %551 = arith.select %549, %535, %550 : vector<8x16xi1>, vector<8x16xf32>
    %552 = arith.index_cast %467 : i32 to index
    %c0_173 = arith.constant 0 : index
    %c0_174 = arith.constant 0 : index
    %553 = vector.load %arg19[%552, %c0_173, %c0_174] : memref<8x8x16xf32, #tpu.memory_space<vmem>>, vector<1x8x16xf32>
    %554 = vector.shape_cast %553 : vector<1x8x16xf32> to vector<8x16xf32>
    %555 = vector.shape_cast %551 : vector<8x16xf32> to vector<1x8x16xf32>
    tpu.vector_store %arg19[%552, %c0_173, %c0_174], %555 {strides = array<i32>} : memref<8x8x16xf32, #tpu.memory_space<vmem>>, vector<1x8x16xf32>,
    %c6_i32 = arith.constant 6 : i32
    %c7_i32_175 = arith.constant 7 : i32
    %556 = arith.subi %c7_i32_175, %c6_i32 : i32
    %557 = arith.index_cast %c6_i32 : i32 to index
    %c0_176 = arith.constant 0 : index
    %c0_177 = arith.constant 0 : index
    %558 = vector.load %arg2[%557, %c0_176, %c0_177] : memref<8x8x1xf32, #tpu.memory_space<vmem>>, vector<1x8x1xf32>
    %559 = vector.shape_cast %558 : vector<1x8x1xf32> to vector<8x1xf32>
    %560 = arith.index_cast %556 : i32 to index
    %c0_178 = arith.constant 0 : index
    %c0_179 = arith.constant 0 : index
    %561 = vector.load %arg2[%560, %c0_178, %c0_179] : memref<8x8x1xf32, #tpu.memory_space<vmem>>, vector<1x8x1xf32>
    %562 = vector.shape_cast %561 : vector<1x8x1xf32> to vector<8x1xf32>
    %563 = arith.index_cast %c6_i32 : i32 to index
    %c0_180 = arith.constant 0 : index
    %c0_181 = arith.constant 0 : index
    %564 = vector.load %arg16[%563, %c0_180, %c0_181] : memref<8x8x48xf32, #tpu.memory_space<vmem>>, vector<1x8x48xf32>
    %565 = vector.shape_cast %564 : vector<1x8x48xf32> to vector<8x48xf32>
    %cst_182 = arith.constant dense<0.000000e+00> : vector<8x48xf32>
    %566 = tpu.matmul %530, %17, %cst_182 {dimension_numbers = #tpu.dot_dimension_numbers<[1], [0], [0], [1], [0, 0, 1, 1], [], []>} : vector<8x16xf32>, vector<16x48xf32>, vector<8x48xf32> -> vector<8x48xf32>
    %567 = vector.extract_strided_slice %565 {offsets = [0, 0], sizes = [8, 32], strides = [1, 1]} : vector<8x48xf32> to vector<8x32xf32>
    %568 = vector.extract_strided_slice %566 {offsets = [0, 0], sizes = [8, 32], strides = [1, 1]} : vector<8x48xf32> to vector<8x32xf32>
    %569 = arith.addf %567, %568 : vector<8x32xf32>
    %570 = arith.negf %569 : vector<8x32xf32>
    %571 = math.exp %570 : vector<8x32xf32>
    %cst_183 = arith.constant 1.000000e+00 : f32
    %572 = vector.broadcast %cst_183 : f32 to vector<8x32xf32>
    %573 = arith.addf %572, %571 : vector<8x32xf32>
    %574 = arith.divf %572, %573 : vector<8x32xf32>
    %575 = vector.extract_strided_slice %574 {offsets = [0, 0], sizes = [8, 16], strides = [1, 1]} : vector<8x32xf32> to vector<8x16xf32>
    %576 = vector.extract_strided_slice %574 {offsets = [0, 16], sizes = [8, 16], strides = [1, 1]} : vector<8x32xf32> to vector<8x16xf32>
    %577 = vector.extract_strided_slice %565 {offsets = [0, 32], sizes = [8, 16], strides = [1, 1]} : vector<8x48xf32> to vector<8x16xf32>
    %578 = vector.extract_strided_slice %566 {offsets = [0, 32], sizes = [8, 16], strides = [1, 1]} : vector<8x48xf32> to vector<8x16xf32>
    %579 = vector.broadcast %19 : vector<1x16xf32> to vector<8x16xf32>
    %580 = arith.addf %578, %579 : vector<8x16xf32>
    %581 = arith.mulf %575, %580 : vector<8x16xf32>
    %582 = arith.addf %577, %581 : vector<8x16xf32>
    %583 = math.tanh %582 : vector<8x16xf32>
    %cst_184 = arith.constant 1.000000e+00 : f32
    %584 = vector.broadcast %cst_184 : f32 to vector<8x16xf32>
    %585 = arith.subf %584, %576 : vector<8x16xf32>
    %586 = arith.mulf %585, %583 : vector<8x16xf32>
    %587 = arith.mulf %576, %530 : vector<8x16xf32>
    %588 = arith.addf %586, %587 : vector<8x16xf32>
    %589 = arith.index_cast %556 : i32 to index
    %c0_185 = arith.constant 0 : index
    %c0_186 = arith.constant 0 : index
    %590 = vector.load %arg17[%589, %c0_185, %c0_186] : memref<8x8x48xf32, #tpu.memory_space<vmem>>, vector<1x8x48xf32>
    %591 = vector.shape_cast %590 : vector<1x8x48xf32> to vector<8x48xf32>
    %cst_187 = arith.constant dense<0.000000e+00> : vector<8x48xf32>
    %592 = tpu.matmul %535, %18, %cst_187 {dimension_numbers = #tpu.dot_dimension_numbers<[1], [0], [0], [1], [0, 0, 1, 1], [], []>} : vector<8x16xf32>, vector<16x48xf32>, vector<8x48xf32> -> vector<8x48xf32>
    %593 = vector.extract_strided_slice %591 {offsets = [0, 0], sizes = [8, 32], strides = [1, 1]} : vector<8x48xf32> to vector<8x32xf32>
    %594 = vector.extract_strided_slice %592 {offsets = [0, 0], sizes = [8, 32], strides = [1, 1]} : vector<8x48xf32> to vector<8x32xf32>
    %595 = arith.addf %593, %594 : vector<8x32xf32>
    %596 = arith.negf %595 : vector<8x32xf32>
    %597 = math.exp %596 : vector<8x32xf32>
    %cst_188 = arith.constant 1.000000e+00 : f32
    %598 = vector.broadcast %cst_188 : f32 to vector<8x32xf32>
    %599 = arith.addf %598, %597 : vector<8x32xf32>
    %600 = arith.divf %598, %599 : vector<8x32xf32>
    %601 = vector.extract_strided_slice %600 {offsets = [0, 0], sizes = [8, 16], strides = [1, 1]} : vector<8x32xf32> to vector<8x16xf32>
    %602 = vector.extract_strided_slice %600 {offsets = [0, 16], sizes = [8, 16], strides = [1, 1]} : vector<8x32xf32> to vector<8x16xf32>
    %603 = vector.extract_strided_slice %591 {offsets = [0, 32], sizes = [8, 16], strides = [1, 1]} : vector<8x48xf32> to vector<8x16xf32>
    %604 = vector.extract_strided_slice %592 {offsets = [0, 32], sizes = [8, 16], strides = [1, 1]} : vector<8x48xf32> to vector<8x16xf32>
    %605 = vector.broadcast %20 : vector<1x16xf32> to vector<8x16xf32>
    %606 = arith.addf %604, %605 : vector<8x16xf32>
    %607 = arith.mulf %601, %606 : vector<8x16xf32>
    %608 = arith.addf %603, %607 : vector<8x16xf32>
    %609 = math.tanh %608 : vector<8x16xf32>
    %cst_189 = arith.constant 1.000000e+00 : f32
    %610 = vector.broadcast %cst_189 : f32 to vector<8x16xf32>
    %611 = arith.subf %610, %602 : vector<8x16xf32>
    %612 = arith.mulf %611, %609 : vector<8x16xf32>
    %613 = arith.mulf %602, %535 : vector<8x16xf32>
    %614 = arith.addf %612, %613 : vector<8x16xf32>
    %cst_190 = arith.constant 0.000000e+00 : f32
    %615 = vector.broadcast %cst_190 : f32 to vector<8x1xf32>
    %616 = arith.cmpf ogt, %559, %615 : vector<8x1xf32>
    %617 = vector.shape_cast %616 : vector<8x1xi1> to vector<8x1xi1>
    %618 = vector.broadcast %617 : vector<8x1xi1> to vector<8x16xi1>
    %619 = arith.select %618, %588, %530 : vector<8x16xi1>, vector<8x16xf32>
    %cst_191 = arith.constant 0.000000e+00 : f32
    %620 = vector.broadcast %cst_191 : f32 to vector<8x1xf32>
    %621 = arith.cmpf ogt, %562, %620 : vector<8x1xf32>
    %622 = vector.shape_cast %621 : vector<8x1xi1> to vector<8x1xi1>
    %623 = vector.broadcast %622 : vector<8x1xi1> to vector<8x16xi1>
    %624 = arith.select %623, %614, %535 : vector<8x16xi1>, vector<8x16xf32>
    %cst_192 = arith.constant 0.000000e+00 : f32
    %625 = vector.broadcast %cst_192 : f32 to vector<8x1xf32>
    %626 = arith.cmpf ogt, %559, %625 : vector<8x1xf32>
    %cst_193 = arith.constant 0.000000e+00 : f32
    %627 = vector.shape_cast %626 : vector<8x1xi1> to vector<8x1xi1>
    %628 = vector.broadcast %627 : vector<8x1xi1> to vector<8x16xi1>
    %629 = vector.broadcast %cst_193 : f32 to vector<8x16xf32>
    %630 = arith.select %628, %619, %629 : vector<8x16xi1>, vector<8x16xf32>
    %631 = arith.index_cast %c6_i32 : i32 to index
    %c0_194 = arith.constant 0 : index
    %c0_195 = arith.constant 0 : index
    %632 = vector.load %arg18[%631, %c0_194, %c0_195] : memref<8x8x16xf32, #tpu.memory_space<vmem>>, vector<1x8x16xf32>
    %633 = vector.shape_cast %632 : vector<1x8x16xf32> to vector<8x16xf32>
    %634 = vector.shape_cast %630 : vector<8x16xf32> to vector<1x8x16xf32>
    tpu.vector_store %arg18[%631, %c0_194, %c0_195], %634 {strides = array<i32>} : memref<8x8x16xf32, #tpu.memory_space<vmem>>, vector<1x8x16xf32>,
    %cst_196 = arith.constant 0.000000e+00 : f32
    %635 = vector.broadcast %cst_196 : f32 to vector<8x1xf32>
    %636 = arith.cmpf ogt, %562, %635 : vector<8x1xf32>
    %cst_197 = arith.constant 0.000000e+00 : f32
    %637 = vector.shape_cast %636 : vector<8x1xi1> to vector<8x1xi1>
    %638 = vector.broadcast %637 : vector<8x1xi1> to vector<8x16xi1>
    %639 = vector.broadcast %cst_197 : f32 to vector<8x16xf32>
    %640 = arith.select %638, %624, %639 : vector<8x16xi1>, vector<8x16xf32>
    %641 = arith.index_cast %556 : i32 to index
    %c0_198 = arith.constant 0 : index
    %c0_199 = arith.constant 0 : index
    %642 = vector.load %arg19[%641, %c0_198, %c0_199] : memref<8x8x16xf32, #tpu.memory_space<vmem>>, vector<1x8x16xf32>
    %643 = vector.shape_cast %642 : vector<1x8x16xf32> to vector<8x16xf32>
    %644 = vector.shape_cast %640 : vector<8x16xf32> to vector<1x8x16xf32>
    tpu.vector_store %arg19[%641, %c0_198, %c0_199], %644 {strides = array<i32>} : memref<8x8x16xf32, #tpu.memory_space<vmem>>, vector<1x8x16xf32>,
    %c7_i32_200 = arith.constant 7 : i32
    %c7_i32_201 = arith.constant 7 : i32
    %645 = arith.subi %c7_i32_201, %c7_i32_200 : i32
    %646 = arith.index_cast %c7_i32_200 : i32 to index
    %c0_202 = arith.constant 0 : index
    %c0_203 = arith.constant 0 : index
    %647 = vector.load %arg2[%646, %c0_202, %c0_203] : memref<8x8x1xf32, #tpu.memory_space<vmem>>, vector<1x8x1xf32>
    %648 = vector.shape_cast %647 : vector<1x8x1xf32> to vector<8x1xf32>
    %649 = arith.index_cast %645 : i32 to index
    %c0_204 = arith.constant 0 : index
    %c0_205 = arith.constant 0 : index
    %650 = vector.load %arg2[%649, %c0_204, %c0_205] : memref<8x8x1xf32, #tpu.memory_space<vmem>>, vector<1x8x1xf32>
    %651 = vector.shape_cast %650 : vector<1x8x1xf32> to vector<8x1xf32>
    %652 = arith.index_cast %c7_i32_200 : i32 to index
    %c0_206 = arith.constant 0 : index
    %c0_207 = arith.constant 0 : index
    %653 = vector.load %arg16[%652, %c0_206, %c0_207] : memref<8x8x48xf32, #tpu.memory_space<vmem>>, vector<1x8x48xf32>
    %654 = vector.shape_cast %653 : vector<1x8x48xf32> to vector<8x48xf32>
    %cst_208 = arith.constant dense<0.000000e+00> : vector<8x48xf32>
    %655 = tpu.matmul %619, %17, %cst_208 {dimension_numbers = #tpu.dot_dimension_numbers<[1], [0], [0], [1], [0, 0, 1, 1], [], []>} : vector<8x16xf32>, vector<16x48xf32>, vector<8x48xf32> -> vector<8x48xf32>
    %656 = vector.extract_strided_slice %654 {offsets = [0, 0], sizes = [8, 32], strides = [1, 1]} : vector<8x48xf32> to vector<8x32xf32>
    %657 = vector.extract_strided_slice %655 {offsets = [0, 0], sizes = [8, 32], strides = [1, 1]} : vector<8x48xf32> to vector<8x32xf32>
    %658 = arith.addf %656, %657 : vector<8x32xf32>
    %659 = arith.negf %658 : vector<8x32xf32>
    %660 = math.exp %659 : vector<8x32xf32>
    %cst_209 = arith.constant 1.000000e+00 : f32
    %661 = vector.broadcast %cst_209 : f32 to vector<8x32xf32>
    %662 = arith.addf %661, %660 : vector<8x32xf32>
    %663 = arith.divf %661, %662 : vector<8x32xf32>
    %664 = vector.extract_strided_slice %663 {offsets = [0, 0], sizes = [8, 16], strides = [1, 1]} : vector<8x32xf32> to vector<8x16xf32>
    %665 = vector.extract_strided_slice %663 {offsets = [0, 16], sizes = [8, 16], strides = [1, 1]} : vector<8x32xf32> to vector<8x16xf32>
    %666 = vector.extract_strided_slice %654 {offsets = [0, 32], sizes = [8, 16], strides = [1, 1]} : vector<8x48xf32> to vector<8x16xf32>
    %667 = vector.extract_strided_slice %655 {offsets = [0, 32], sizes = [8, 16], strides = [1, 1]} : vector<8x48xf32> to vector<8x16xf32>
    %668 = vector.broadcast %19 : vector<1x16xf32> to vector<8x16xf32>
    %669 = arith.addf %667, %668 : vector<8x16xf32>
    %670 = arith.mulf %664, %669 : vector<8x16xf32>
    %671 = arith.addf %666, %670 : vector<8x16xf32>
    %672 = math.tanh %671 : vector<8x16xf32>
    %cst_210 = arith.constant 1.000000e+00 : f32
    %673 = vector.broadcast %cst_210 : f32 to vector<8x16xf32>
    %674 = arith.subf %673, %665 : vector<8x16xf32>
    %675 = arith.mulf %674, %672 : vector<8x16xf32>
    %676 = arith.mulf %665, %619 : vector<8x16xf32>
    %677 = arith.addf %675, %676 : vector<8x16xf32>
    %678 = arith.index_cast %645 : i32 to index
    %c0_211 = arith.constant 0 : index
    %c0_212 = arith.constant 0 : index
    %679 = vector.load %arg17[%678, %c0_211, %c0_212] : memref<8x8x48xf32, #tpu.memory_space<vmem>>, vector<1x8x48xf32>
    %680 = vector.shape_cast %679 : vector<1x8x48xf32> to vector<8x48xf32>
    %cst_213 = arith.constant dense<0.000000e+00> : vector<8x48xf32>
    %681 = tpu.matmul %624, %18, %cst_213 {dimension_numbers = #tpu.dot_dimension_numbers<[1], [0], [0], [1], [0, 0, 1, 1], [], []>} : vector<8x16xf32>, vector<16x48xf32>, vector<8x48xf32> -> vector<8x48xf32>
    %682 = vector.extract_strided_slice %680 {offsets = [0, 0], sizes = [8, 32], strides = [1, 1]} : vector<8x48xf32> to vector<8x32xf32>
    %683 = vector.extract_strided_slice %681 {offsets = [0, 0], sizes = [8, 32], strides = [1, 1]} : vector<8x48xf32> to vector<8x32xf32>
    %684 = arith.addf %682, %683 : vector<8x32xf32>
    %685 = arith.negf %684 : vector<8x32xf32>
    %686 = math.exp %685 : vector<8x32xf32>
    %cst_214 = arith.constant 1.000000e+00 : f32
    %687 = vector.broadcast %cst_214 : f32 to vector<8x32xf32>
    %688 = arith.addf %687, %686 : vector<8x32xf32>
    %689 = arith.divf %687, %688 : vector<8x32xf32>
    %690 = vector.extract_strided_slice %689 {offsets = [0, 0], sizes = [8, 16], strides = [1, 1]} : vector<8x32xf32> to vector<8x16xf32>
    %691 = vector.extract_strided_slice %689 {offsets = [0, 16], sizes = [8, 16], strides = [1, 1]} : vector<8x32xf32> to vector<8x16xf32>
    %692 = vector.extract_strided_slice %680 {offsets = [0, 32], sizes = [8, 16], strides = [1, 1]} : vector<8x48xf32> to vector<8x16xf32>
    %693 = vector.extract_strided_slice %681 {offsets = [0, 32], sizes = [8, 16], strides = [1, 1]} : vector<8x48xf32> to vector<8x16xf32>
    %694 = vector.broadcast %20 : vector<1x16xf32> to vector<8x16xf32>
    %695 = arith.addf %693, %694 : vector<8x16xf32>
    %696 = arith.mulf %690, %695 : vector<8x16xf32>
    %697 = arith.addf %692, %696 : vector<8x16xf32>
    %698 = math.tanh %697 : vector<8x16xf32>
    %cst_215 = arith.constant 1.000000e+00 : f32
    %699 = vector.broadcast %cst_215 : f32 to vector<8x16xf32>
    %700 = arith.subf %699, %691 : vector<8x16xf32>
    %701 = arith.mulf %700, %698 : vector<8x16xf32>
    %702 = arith.mulf %691, %624 : vector<8x16xf32>
    %703 = arith.addf %701, %702 : vector<8x16xf32>
    %cst_216 = arith.constant 0.000000e+00 : f32
    %704 = vector.broadcast %cst_216 : f32 to vector<8x1xf32>
    %705 = arith.cmpf ogt, %648, %704 : vector<8x1xf32>
    %706 = vector.shape_cast %705 : vector<8x1xi1> to vector<8x1xi1>
    %707 = vector.broadcast %706 : vector<8x1xi1> to vector<8x16xi1>
    %708 = arith.select %707, %677, %619 : vector<8x16xi1>, vector<8x16xf32>
    %cst_217 = arith.constant 0.000000e+00 : f32
    %709 = vector.broadcast %cst_217 : f32 to vector<8x1xf32>
    %710 = arith.cmpf ogt, %651, %709 : vector<8x1xf32>
    %711 = vector.shape_cast %710 : vector<8x1xi1> to vector<8x1xi1>
    %712 = vector.broadcast %711 : vector<8x1xi1> to vector<8x16xi1>
    %713 = arith.select %712, %703, %624 : vector<8x16xi1>, vector<8x16xf32>
    %cst_218 = arith.constant 0.000000e+00 : f32
    %714 = vector.broadcast %cst_218 : f32 to vector<8x1xf32>
    %715 = arith.cmpf ogt, %648, %714 : vector<8x1xf32>
    %cst_219 = arith.constant 0.000000e+00 : f32
    %716 = vector.shape_cast %715 : vector<8x1xi1> to vector<8x1xi1>
    %717 = vector.broadcast %716 : vector<8x1xi1> to vector<8x16xi1>
    %718 = vector.broadcast %cst_219 : f32 to vector<8x16xf32>
    %719 = arith.select %717, %708, %718 : vector<8x16xi1>, vector<8x16xf32>
    %720 = arith.index_cast %c7_i32_200 : i32 to index
    %c0_220 = arith.constant 0 : index
    %c0_221 = arith.constant 0 : index
    %721 = vector.load %arg18[%720, %c0_220, %c0_221] : memref<8x8x16xf32, #tpu.memory_space<vmem>>, vector<1x8x16xf32>
    %722 = vector.shape_cast %721 : vector<1x8x16xf32> to vector<8x16xf32>
    %723 = vector.shape_cast %719 : vector<8x16xf32> to vector<1x8x16xf32>
    tpu.vector_store %arg18[%720, %c0_220, %c0_221], %723 {strides = array<i32>} : memref<8x8x16xf32, #tpu.memory_space<vmem>>, vector<1x8x16xf32>,
    %cst_222 = arith.constant 0.000000e+00 : f32
    %724 = vector.broadcast %cst_222 : f32 to vector<8x1xf32>
    %725 = arith.cmpf ogt, %651, %724 : vector<8x1xf32>
    %cst_223 = arith.constant 0.000000e+00 : f32
    %726 = vector.shape_cast %725 : vector<8x1xi1> to vector<8x1xi1>
    %727 = vector.broadcast %726 : vector<8x1xi1> to vector<8x16xi1>
    %728 = vector.broadcast %cst_223 : f32 to vector<8x16xf32>
    %729 = arith.select %727, %713, %728 : vector<8x16xi1>, vector<8x16xf32>
    %730 = arith.index_cast %645 : i32 to index
    %c0_224 = arith.constant 0 : index
    %c0_225 = arith.constant 0 : index
    %731 = vector.load %arg19[%730, %c0_224, %c0_225] : memref<8x8x16xf32, #tpu.memory_space<vmem>>, vector<1x8x16xf32>
    %732 = vector.shape_cast %731 : vector<1x8x16xf32> to vector<8x16xf32>
    %733 = vector.shape_cast %729 : vector<8x16xf32> to vector<1x8x16xf32>
    tpu.vector_store %arg19[%730, %c0_224, %c0_225], %733 {strides = array<i32>} : memref<8x8x16xf32, #tpu.memory_space<vmem>>, vector<1x8x16xf32>,
    %c8_i32 = arith.constant 8 : i32
    %c0_226 = arith.constant 0 : index
    %c0_227 = arith.constant 0 : index
    %c0_228 = arith.constant 0 : index
    %734 = vector.load %arg18[%c0_226, %c0_227, %c0_228] : memref<8x8x16xf32, #tpu.memory_space<vmem>>, vector<8x8x16xf32>
    %c0_229 = arith.constant 0 : index
    %c0_230 = arith.constant 0 : index
    %c0_231 = arith.constant 0 : index
    %735 = vector.load %arg19[%c0_229, %c0_230, %c0_231] : memref<8x8x16xf32, #tpu.memory_space<vmem>>, vector<8x8x16xf32>
    %736 = vector.shape_cast %734 : vector<8x8x16xf32> to vector<64x16xf32>
    %737 = arith.truncf %736 : vector<64x16xf32> to vector<64x16xbf16>
    %c0_232 = arith.constant 0 : index
    %c0_233 = arith.constant 0 : index
    %738 = vector.load %arg11[%c0_232, %c0_233] : memref<16x32xbf16, #tpu.memory_space<vmem>>, vector<16x32xbf16>
    %cst_234 = arith.constant dense<0.000000e+00> : vector<64x32xf32>
    %739 = tpu.matmul %737, %738, %cst_234 {dimension_numbers = #tpu.dot_dimension_numbers<[1], [0], [0], [1], [0, 0, 1, 1], [], []>} : vector<64x16xbf16>, vector<16x32xbf16>, vector<64x32xf32> -> vector<64x32xf32>
    %740 = vector.shape_cast %735 : vector<8x8x16xf32> to vector<64x16xf32>
    %741 = arith.truncf %740 : vector<64x16xf32> to vector<64x16xbf16>
    %c0_235 = arith.constant 0 : index
    %c0_236 = arith.constant 0 : index
    %742 = vector.load %arg12[%c0_235, %c0_236] : memref<16x32xbf16, #tpu.memory_space<vmem>>, vector<16x32xbf16>
    %cst_237 = arith.constant dense<0.000000e+00> : vector<64x32xf32>
    %743 = tpu.matmul %741, %742, %cst_237 {dimension_numbers = #tpu.dot_dimension_numbers<[1], [0], [0], [1], [0, 0, 1, 1], [], []>} : vector<64x16xbf16>, vector<16x32xbf16>, vector<64x32xf32> -> vector<64x32xf32>
    %744 = arith.addf %739, %743 : vector<64x32xf32>
    %c0_238 = arith.constant 0 : index
    %c0_239 = arith.constant 0 : index
    %745 = vector.load %arg13[%c0_238, %c0_239] : memref<1x32xf32, #tpu.memory_space<vmem>>, vector<1x32xf32>
    %746 = vector.broadcast %745 : vector<1x32xf32> to vector<64x32xf32>
    %747 = arith.addf %744, %746 : vector<64x32xf32>
    %748 = math.tanh %747 : vector<64x32xf32>
    %c0_240 = arith.constant 0 : index
    %c0_241 = arith.constant 0 : index
    %749 = vector.load %arg14[%c0_240, %c0_241] : memref<1x32xf32, #tpu.memory_space<vmem>>, vector<1x32xf32>
    %750 = vector.broadcast %749 : vector<1x32xf32> to vector<64x32xf32>
    %751 = arith.mulf %748, %750 : vector<64x32xf32>
    %cst_242 = arith.constant dense<0.000000e+00> : vector<64xf32>
    %752 = vector.multi_reduction <add>, %751, %cst_242 [1] : vector<64x32xf32> to vector<64xf32>
    %753 = vector.shape_cast %752 : vector<64xf32> to vector<64x1xf32>
    %754 = vector.shape_cast %753 : vector<64x1xf32> to vector<8x8x1xf32>
    %c0_243 = arith.constant 0 : index
    %c0_244 = arith.constant 0 : index
    %c0_245 = arith.constant 0 : index
    %755 = vector.load %arg2[%c0_243, %c0_244, %c0_245] : memref<8x8x1xf32, #tpu.memory_space<vmem>>, vector<8x8x1xf32>
    %cst_246 = arith.constant 0.000000e+00 : f32
    %756 = vector.broadcast %cst_246 : f32 to vector<8x8x1xf32>
    %757 = arith.cmpf ogt, %755, %756 : vector<8x8x1xf32>
    %cst_247 = arith.constant 0.000000e+00 : f32
    %758 = vector.broadcast %cst_247 : f32 to vector<8x8x1xf32>
    %759 = arith.select %757, %754, %758 : vector<8x8x1xi1>, vector<8x8x1xf32>
    %cst_248 = arith.constant dense<0xFF800000> : vector<8x1xf32>
    %760 = vector.multi_reduction <maximumf>, %759, %cst_248 [0] : vector<8x8x1xf32> to vector<8x1xf32>
    %761 = vector.shape_cast %760 : vector<8x1xf32> to vector<1x8x1xf32>
    %762 = vector.broadcast %761 : vector<1x8x1xf32> to vector<8x8x1xf32>
    %763 = arith.subf %754, %762 : vector<8x8x1xf32>
    %764 = math.exp %763 : vector<8x8x1xf32>
    %765 = arith.mulf %764, %755 : vector<8x8x1xf32>
    %cst_249 = arith.constant dense<0.000000e+00> : vector<8x1xf32>
    %766 = vector.multi_reduction <add>, %765, %cst_249 [0] : vector<8x8x1xf32> to vector<8x1xf32>
    %767 = vector.shape_cast %766 : vector<8x1xf32> to vector<1x8x1xf32>
    %cst_250 = arith.constant 0.000000e+00 : f32
    %768 = vector.broadcast %cst_250 : f32 to vector<1x8x1xf32>
    %769 = arith.subf %768, %761 : vector<1x8x1xf32>
    %770 = math.exp %769 : vector<1x8x1xf32>
    %cst_251 = arith.constant 9.99999974E-5 : f32
    %771 = vector.broadcast %cst_251 : f32 to vector<1x8x1xf32>
    %772 = arith.mulf %771, %770 : vector<1x8x1xf32>
    %773 = arith.addf %767, %772 : vector<1x8x1xf32>
    %774 = vector.broadcast %773 : vector<1x8x1xf32> to vector<8x8x1xf32>
    %775 = arith.divf %765, %774 : vector<8x8x1xf32>
    %776 = vector.broadcast %775 : vector<8x8x1xf32> to vector<8x8x16xf32>
    %777 = arith.mulf %776, %734 : vector<8x8x16xf32>
    %cst_252 = arith.constant dense<0.000000e+00> : vector<8x16xf32>
    %778 = vector.multi_reduction <add>, %777, %cst_252 [0] : vector<8x8x16xf32> to vector<8x16xf32>
    %779 = vector.broadcast %775 : vector<8x8x1xf32> to vector<8x8x16xf32>
    %780 = arith.mulf %779, %735 : vector<8x8x16xf32>
    %cst_253 = arith.constant dense<0.000000e+00> : vector<8x16xf32>
    %781 = vector.multi_reduction <add>, %780, %cst_253 [0] : vector<8x8x16xf32> to vector<8x16xf32>
    %cst_254 = arith.constant 0.000000e+00 : f32
    %782 = vector.broadcast %cst_254 : f32 to vector<8x96xf32>
    %783 = tpu.concatenate %778, %781, %782 in 1 : vector<8x16xf32>, vector<8x16xf32>, vector<8x96xf32> -> vector<8x128xf32>
    %c0_255 = arith.constant 0 : index
    %c0_256 = arith.constant 0 : index
    %784 = vector.load %arg15[%c0_255, %c0_256] : memref<8x128xf32, #tpu.memory_space<vmem>>, vector<8x128xf32>
    tpu.vector_store %arg15[%c0_255, %c0_256], %783 {strides = array<i32>} : memref<8x128xf32, #tpu.memory_space<vmem>>, vector<8x128xf32>,
    return
  }
  func.func @transform_0(%arg0: i32) -> (i32, i32, i32) {
    %c0_i32 = arith.constant 0 : i32
    %c0_i32_0 = arith.constant 0 : i32
    %c0_i32_1 = arith.constant 0 : i32
    return %c0_i32, %arg0, %c0_i32_0 : i32, i32, i32
  }
  func.func @transform_1(%arg0: i32) -> (i32, i32, i32) {
    %c0_i32 = arith.constant 0 : i32
    %c0_i32_0 = arith.constant 0 : i32
    %c0_i32_1 = arith.constant 0 : i32
    return %c0_i32, %arg0, %c0_i32_0 : i32, i32, i32
  }
  func.func @transform_2(%arg0: i32) -> (i32, i32) {
    %c0_i32 = arith.constant 0 : i32
    %c0_i32_0 = arith.constant 0 : i32
    %c0_i32_1 = arith.constant 0 : i32
    return %c0_i32, %c0_i32_0 : i32, i32
  }
  func.func @transform_3(%arg0: i32) -> (i32, i32) {
    %c0_i32 = arith.constant 0 : i32
    %c0_i32_0 = arith.constant 0 : i32
    %c0_i32_1 = arith.constant 0 : i32
    return %c0_i32, %c0_i32_0 : i32, i32
  }
  func.func @transform_4(%arg0: i32) -> (i32, i32) {
    %c0_i32 = arith.constant 0 : i32
    %c0_i32_0 = arith.constant 0 : i32
    %c0_i32_1 = arith.constant 0 : i32
    return %c0_i32, %c0_i32_0 : i32, i32
  }
  func.func @transform_5(%arg0: i32) -> (i32, i32) {
    %c0_i32 = arith.constant 0 : i32
    %c0_i32_0 = arith.constant 0 : i32
    %c0_i32_1 = arith.constant 0 : i32
    return %c0_i32, %c0_i32_0 : i32, i32
  }
  func.func @transform_6(%arg0: i32) -> (i32, i32) {
    %c0_i32 = arith.constant 0 : i32
    %c0_i32_0 = arith.constant 0 : i32
    %c0_i32_1 = arith.constant 0 : i32
    return %c0_i32, %c0_i32_0 : i32, i32
  }
  func.func @transform_7(%arg0: i32) -> (i32, i32) {
    %c0_i32 = arith.constant 0 : i32
    %c0_i32_0 = arith.constant 0 : i32
    %c0_i32_1 = arith.constant 0 : i32
    return %c0_i32, %c0_i32_0 : i32, i32
  }
  func.func @transform_8(%arg0: i32) -> (i32, i32) {
    %c0_i32 = arith.constant 0 : i32
    %c0_i32_0 = arith.constant 0 : i32
    %c0_i32_1 = arith.constant 0 : i32
    return %c0_i32, %c0_i32_0 : i32, i32
  }
  func.func @transform_9(%arg0: i32) -> (i32, i32) {
    %c0_i32 = arith.constant 0 : i32
    %c0_i32_0 = arith.constant 0 : i32
    %c0_i32_1 = arith.constant 0 : i32
    return %c0_i32, %c0_i32_0 : i32, i32
  }
  func.func @transform_10(%arg0: i32) -> (i32, i32) {
    %c0_i32 = arith.constant 0 : i32
    %c0_i32_0 = arith.constant 0 : i32
    %c0_i32_1 = arith.constant 0 : i32
    return %c0_i32, %c0_i32_0 : i32, i32
  }
  func.func @transform_11(%arg0: i32) -> (i32, i32) {
    %c0_i32 = arith.constant 0 : i32
    %c0_i32_0 = arith.constant 0 : i32
    %c0_i32_1 = arith.constant 0 : i32
    return %c0_i32, %c0_i32_0 : i32, i32
  }
  func.func @transform_12(%arg0: i32) -> (i32, i32) {
    %c0_i32 = arith.constant 0 : i32
    %c0_i32_0 = arith.constant 0 : i32
    %c0_i32_1 = arith.constant 0 : i32
    return %c0_i32, %c0_i32_0 : i32, i32
  }
  func.func @transform_13(%arg0: i32) -> (i32, i32) {
    %c0_i32 = arith.constant 0 : i32
    %c0_i32_0 = arith.constant 0 : i32
    %c0_i32_1 = arith.constant 0 : i32
    return %c0_i32, %c0_i32_0 : i32, i32
  }
  func.func @transform_14(%arg0: i32) -> (i32, i32) {
    %c0_i32 = arith.constant 0 : i32
    %c0_i32_0 = arith.constant 0 : i32
    return %arg0, %c0_i32 : i32, i32
  }
}

</mosaic_0001>

<llo_original>
// kernel: tpu_custom_call.1
$region0: #{tpu_custom_call.1}
  #allocation0 [shape = 'u32[]', space=smem, size = 0x4, offset = 0x4, fixed_abs, tag = 'smem constant byte address 0x4 - core index']
  #allocation1 [shape = 'u32[72,128]{1,0:T(1,128)}', space=vmem, size = 0x9000, scoped, tag = 'internal scratch']
  #allocation2 [shape = 'f32[8,8,48]{2,1,0:T(8,128)}', space=vmem, size = 0x8000, scoped, tag = 'scratch operand']
  #allocation3 [shape = 'f32[8,8,48]{2,1,0:T(8,128)}', space=vmem, size = 0x8000, scoped, tag = 'scratch operand']
  #allocation4 [shape = 'f32[8,8,16]{2,1,0:T(8,128)}', space=vmem, size = 0x8000, scoped, tag = 'scratch operand']
  #allocation5 [shape = 'f32[8,8,16]{2,1,0:T(8,128)}', space=vmem, size = 0x8000, scoped, tag = 'scratch operand']
  %s0 = inlined_call_operand.vmem [shape: f32[8,8,32], index: 0, kind: input, shape index: {}]
  %s1 = inlined_call_operand.vmem [shape: f32[8,8,1], index: 1, kind: input, shape index: {}]
  %s2 = inlined_call_operand.hbm [shape: bf16[32,48], index: 2, kind: input, shape index: {}]
  %s3 = inlined_call_operand.hbm [shape: f32[1,48], index: 3, kind: input, shape index: {}]
  %s4 = inlined_call_operand.hbm [shape: f32[16,48], index: 4, kind: input, shape index: {}]
  %s5 = inlined_call_operand.hbm [shape: f32[1,16], index: 5, kind: input, shape index: {}]
  %s6 = inlined_call_operand.hbm [shape: bf16[32,48], index: 6, kind: input, shape index: {}]
  %s7 = inlined_call_operand.hbm [shape: f32[1,48], index: 7, kind: input, shape index: {}]
  %s8 = inlined_call_operand.hbm [shape: f32[16,48], index: 8, kind: input, shape index: {}]
  %s9 = inlined_call_operand.hbm [shape: f32[1,16], index: 9, kind: input, shape index: {}]
  %s10 = inlined_call_operand.vmem [shape: bf16[16,32], index: 10, kind: input, shape index: {}]
  %s11 = inlined_call_operand.vmem [shape: bf16[16,32], index: 11, kind: input, shape index: {}]
  %s12 = inlined_call_operand.vmem [shape: f32[1,32], index: 12, kind: input, shape index: {}]
  %s13 = inlined_call_operand.vmem [shape: f32[1,32], index: 13, kind: input, shape index: {}]
  %s14 = inlined_call_operand.hbm [shape: f32[8,128], index: 14, kind: output, shape index: {}]
  %s15 = sld [smem:[#allocation0]]
  $region98: #{tpu_custom_call.1} parent=0
    _
  %s17 = ssub.s32 1, %s15
  %s18 = scalar_select 0, %s17, %s15
  $region1: #{tpu_custom_call.1} parent=0
    #allocation6 [shape = 'u8[8192]{0}', space=vmem, size = 0x2000, scoped, tag = 'input window, operand 2, single buffered']
    #allocation7 [shape = 's32[1]{0}', space=sflag, size = 0x4, scoped, tag = 'scoped memory for tpu_custom_call.1']
    #allocation8 [shape = 's32[1]{0}', space=sflag, size = 0x4, scoped, tag = 'scoped memory for tpu_custom_call.1']
    #allocation9 [shape = 'u8[512]{0}', space=vmem, size = 0x400, scoped, tag = 'input window, operand 3, single buffered']
    #allocation10 [shape = 's32[1]{0}', space=sflag, size = 0x4, scoped, tag = 'scoped memory for tpu_custom_call.1']
    #allocation11 [shape = 'u8[8192]{0}', space=vmem, size = 0x2000, scoped, tag = 'input window, operand 4, single buffered']
    #allocation12 [shape = 'u8[512]{0}', space=vmem, size = 0x400, scoped, tag = 'input window, operand 5, single buffered']
    #allocation13 [shape = 's32[1]{0}', space=sflag, size = 0x4, scoped, tag = 'scoped memory for tpu_custom_call.1']
    #allocation14 [shape = 'u8[8192]{0}', space=vmem, size = 0x2000, scoped, tag = 'input window, operand 6, single buffered']
    #allocation15 [shape = 'u8[512]{0}', space=vmem, size = 0x400, scoped, tag = 'input window, operand 7, single buffered']
    #allocation16 [shape = 's32[1]{0}', space=sflag, size = 0x4, scoped, tag = 'scoped memory for tpu_custom_call.1']
    #allocation17 [shape = 'u8[8192]{0}', space=vmem, size = 0x2000, scoped, tag = 'input window, operand 8, single buffered']
    #allocation18 [shape = 'u8[512]{0}', space=vmem, size = 0x400, scoped, tag = 'input window, operand 9, single buffered']
    #allocation19 [shape = 's32[1]{0}', space=sflag, size = 0x4, scoped, tag = 'scoped memory for tpu_custom_call.1']
    #allocation20 [shape = 'u8[4096]{0}', space=vmem, size = 0x1000, scoped, tag = 'output window, operand 0, single buffered']
    %19 = vsyncpa [#allocation7], 0
    %20 = vsyncpa [#allocation10], 0
    %21 = vsyncpa [#allocation13], 0
    %22 = vsyncpa [#allocation16], 0
    %23 = vsyncpa [#allocation19], 0
    %24 = vsyncpa [#allocation8], 0
    // Predicated region
    $region2: #{tpu_custom_call.1} parent=1 // pred_check
      _
    $region3: #{tpu_custom_call.1} parent=1 // pred_check_branch
      %26 = sbr.rel (0) target = $region5
    $region4: #{tpu_custom_call.1} parent=1 // pred_region
      _
    $region5: #{tpu_custom_call.1} parent=1 // pred_fallthru
      _
    // Predicated region
    $region6: #{tpu_custom_call.1} parent=1 // pred_check
      _
    $region7: #{tpu_custom_call.1} parent=1 // pred_check_branch
      %28 = sbr.rel (0) target = $region9
    $region8: #{tpu_custom_call.1} parent=1 // pred_region
      _
    $region9: #{tpu_custom_call.1} parent=1 // pred_fallthru
      _
    // Predicated region
    $region10: #{tpu_custom_call.1} parent=1 // pred_check
      _
    $region11: #{tpu_custom_call.1} parent=1 // pred_check_branch
      %30 = sbr.rel (0) target = $region13
    $region12: #{tpu_custom_call.1} parent=1 // pred_region
      %32 = vsyncadd [#allocation7], 0
      %s33 = sshll.u32 %s2, 4
      %s34 = int_to_ptr.hbm [resolvable:$true] %s33
      %s35 = sshll.u32 [#allocation6], 4
      %s36 = int_to_ptr.vmem [resolvable:$true] %s35
      %41 = dma.hbm_to_vmem [thread:$0]  %s34, 256, %s36, [#allocation7], 64, 64, 4
    $region13: #{tpu_custom_call.1} parent=1 // pred_fallthru
      _
    // Predicated region
    $region14: #{tpu_custom_call.1} parent=1 // pred_check
      _
    $region15: #{tpu_custom_call.1} parent=1 // pred_check_branch
      %43 = sbr.rel (0) target = $region17
    $region16: #{tpu_custom_call.1} parent=1 // pred_region
      %45 = vsyncadd [#allocation10], 0
      %s47 = sshll.u32 %s3, 4
      %s48 = int_to_ptr.hbm [resolvable:$true] %s47
      %s49 = sshll.u32 [#allocation9], 4
      %s50 = int_to_ptr.vmem [resolvable:$true] %s49
      %52 = dma.hbm_to_vmem [thread:$0]  %s48, 16, %s50, [#allocation10]
    $region17: #{tpu_custom_call.1} parent=1 // pred_fallthru
      _
    // Predicated region
    $region18: #{tpu_custom_call.1} parent=1 // pred_check
      _
    $region19: #{tpu_custom_call.1} parent=1 // pred_check_branch
      %54 = sbr.rel (0) target = $region21
    $region20: #{tpu_custom_call.1} parent=1 // pred_region
      %56 = vsyncadd [#allocation10], 0
      %s57 = sshll.u32 %s4, 4
      %s58 = int_to_ptr.hbm [resolvable:$true] %s57
      %s59 = sshll.u32 [#allocation11], 4
      %s60 = int_to_ptr.vmem [resolvable:$true] %s59
      %65 = dma.hbm_to_vmem [thread:$0]  %s58, 256, %s60, [#allocation10], 128, 128, 8
    $region21: #{tpu_custom_call.1} parent=1 // pred_fallthru
      _
    // Predicated region
    $region22: #{tpu_custom_call.1} parent=1 // pred_check
      _
    $region23: #{tpu_custom_call.1} parent=1 // pred_check_branch
      %67 = sbr.rel (0) target = $region25
    $region24: #{tpu_custom_call.1} parent=1 // pred_region
      %69 = vsyncadd [#allocation13], 0
      %s71 = sshll.u32 %s5, 4
      %s72 = int_to_ptr.hbm [resolvable:$true] %s71
      %s73 = sshll.u32 [#allocation12], 4
      %s74 = int_to_ptr.vmem [resolvable:$true] %s73
      %76 = dma.hbm_to_vmem [thread:$0]  %s72, 16, %s74, [#allocation13]
    $region25: #{tpu_custom_call.1} parent=1 // pred_fallthru
      _
    // Predicated region
    $region26: #{tpu_custom_call.1} parent=1 // pred_check
      _
    $region27: #{tpu_custom_call.1} parent=1 // pred_check_branch
      %78 = sbr.rel (0) target = $region29
    $region28: #{tpu_custom_call.1} parent=1 // pred_region
      %80 = vsyncadd [#allocation13], 0
      %s81 = sshll.u32 %s6, 4
      %s82 = int_to_ptr.hbm [resolvable:$true] %s81
      %s83 = sshll.u32 [#allocation14], 4
      %s84 = int_to_ptr.vmem [resolvable:$true] %s83
      %89 = dma.hbm_to_vmem [thread:$0]  %s82, 256, %s84, [#allocation13], 64, 64, 4
    $region29: #{tpu_custom_call.1} parent=1 // pred_fallthru
      _
    // Predicated region
    $region30: #{tpu_custom_call.1} parent=1 // pred_check
      _
    $region31: #{tpu_custom_call.1} parent=1 // pred_check_branch
      %91 = sbr.rel (0) target = $region33
    $region32: #{tpu_custom_call.1} parent=1 // pred_region
      %93 = vsyncadd [#allocation16], 0
      %s95 = sshll.u32 %s7, 4
      %s96 = int_to_ptr.hbm [resolvable:$true] %s95
      %s97 = sshll.u32 [#allocation15], 4
      %s98 = int_to_ptr.vmem [resolvable:$true] %s97
      %100 = dma.hbm_to_vmem [thread:$0]  %s96, 16, %s98, [#allocation16]
    $region33: #{tpu_custom_call.1} parent=1 // pred_fallthru
      _
    // Predicated region
    $region34: #{tpu_custom_call.1} parent=1 // pred_check
      _
    $region35: #{tpu_custom_call.1} parent=1 // pred_check_branch
      %102 = sbr.rel (0) target = $region37
    $region36: #{tpu_custom_call.1} parent=1 // pred_region
      %104 = vsyncadd [#allocation16], 0
      %s105 = sshll.u32 %s8, 4
      %s106 = int_to_ptr.hbm [resolvable:$true] %s105
      %s107 = sshll.u32 [#allocation17], 4
      %s108 = int_to_ptr.vmem [resolvable:$true] %s107
      %113 = dma.hbm_to_vmem [thread:$0]  %s106, 256, %s108, [#allocation16], 128, 128, 8
    $region37: #{tpu_custom_call.1} parent=1 // pred_fallthru
      _
    // Predicated region
    $region38: #{tpu_custom_call.1} parent=1 // pred_check
      _
    $region39: #{tpu_custom_call.1} parent=1 // pred_check_branch
      %115 = sbr.rel (0) target = $region41
    $region40: #{tpu_custom_call.1} parent=1 // pred_region
      %117 = vsyncadd [#allocation19], 0
      %s119 = sshll.u32 %s9, 4
      %s120 = int_to_ptr.hbm [resolvable:$true] %s119
      %s121 = sshll.u32 [#allocation18], 4
      %s122 = int_to_ptr.vmem [resolvable:$true] %s121
      %124 = dma.hbm_to_vmem [thread:$0]  %s120, 16, %s122, [#allocation19]
    $region41: #{tpu_custom_call.1} parent=1 // pred_fallthru
      _
    // Predicated region
    $region42: #{tpu_custom_call.1} parent=1 // pred_check
      _
    $region43: #{tpu_custom_call.1} parent=1 // pred_check_branch
      %126 = sbr.rel (0) target = $region45
    $region44: #{tpu_custom_call.1} parent=1 // pred_region
      _
    $region45: #{tpu_custom_call.1} parent=1 // pred_fallthru
      _
    // Predicated region
    $region46: #{tpu_custom_call.1} parent=1 // pred_check
      _
    $region47: #{tpu_custom_call.1} parent=1 // pred_check_branch
      %128 = sbr.rel (0) target = $region49
    $region48: #{tpu_custom_call.1} parent=1 // pred_region
      _
    $region49: #{tpu_custom_call.1} parent=1 // pred_fallthru
      _
    // Predicated region
    $region50: #{tpu_custom_call.1} parent=1 // pred_check
      _
    $region51: #{tpu_custom_call.1} parent=1 // pred_check_branch
      %130 = sbr.rel (0) target = $region53
    $region52: #{tpu_custom_call.1} parent=1 // pred_region
      _
    $region53: #{tpu_custom_call.1} parent=1 // pred_fallthru
      _
    // Predicated region
    $region54: #{tpu_custom_call.1} parent=1 // pred_check
      _
    $region55: #{tpu_custom_call.1} parent=1 // pred_check_branch
      %132 = sbr.rel (0) target = $region57
    $region56: #{tpu_custom_call.1} parent=1 // pred_region
      _
    $region57: #{tpu_custom_call.1} parent=1 // pred_fallthru
      _
    // Predicated region
    $region58: #{tpu_custom_call.1} parent=1 // pred_check
      _
    $region59: #{tpu_custom_call.1} parent=1 // pred_check_branch
      %134 = sbr.rel (0) target = $region61
    $region60: #{tpu_custom_call.1} parent=1 // pred_region
      %136 = dma.done [#allocation7], 256
    $region61: #{tpu_custom_call.1} parent=1 // pred_fallthru
      _
    // Predicated region
    $region62: #{tpu_custom_call.1} parent=1 // pred_check
      _
    $region63: #{tpu_custom_call.1} parent=1 // pred_check_branch
      %138 = sbr.rel (0) target = $region65
    $region64: #{tpu_custom_call.1} parent=1 // pred_region
      %140 = dma.done [#allocation10], 16
    $region65: #{tpu_custom_call.1} parent=1 // pred_fallthru
      _
    // Predicated region
    $region66: #{tpu_custom_call.1} parent=1 // pred_check
      _
    $region67: #{tpu_custom_call.1} parent=1 // pred_check_branch
      %142 = sbr.rel (0) target = $region69
    $region68: #{tpu_custom_call.1} parent=1 // pred_region
      %144 = dma.done [#allocation10], 256
    $region69: #{tpu_custom_call.1} parent=1 // pred_fallthru
      _
    // Predicated region
    $region70: #{tpu_custom_call.1} parent=1 // pred_check
      _
    $region71: #{tpu_custom_call.1} parent=1 // pred_check_branch
      %146 = sbr.rel (0) target = $region73
    $region72: #{tpu_custom_call.1} parent=1 // pred_region
      %148 = dma.done [#allocation13], 16
    $region73: #{tpu_custom_call.1} parent=1 // pred_fallthru
      _
    // Predicated region
    $region74: #{tpu_custom_call.1} parent=1 // pred_check
      _
    $region75: #{tpu_custom_call.1} parent=1 // pred_check_branch
      %150 = sbr.rel (0) target = $region77
    $region76: #{tpu_custom_call.1} parent=1 // pred_region
      %152 = dma.done [#allocation13], 256
    $region77: #{tpu_custom_call.1} parent=1 // pred_fallthru
      _
    // Predicated region
    $region78: #{tpu_custom_call.1} parent=1 // pred_check
      _
    $region79: #{tpu_custom_call.1} parent=1 // pred_check_branch
      %154 = sbr.rel (0) target = $region81
    $region80: #{tpu_custom_call.1} parent=1 // pred_region
      %156 = dma.done [#allocation16], 16
    $region81: #{tpu_custom_call.1} parent=1 // pred_fallthru
      _
    // Predicated region
    $region82: #{tpu_custom_call.1} parent=1 // pred_check
      _
    $region83: #{tpu_custom_call.1} parent=1 // pred_check_branch
      %158 = sbr.rel (0) target = $region85
    $region84: #{tpu_custom_call.1} parent=1 // pred_region
      %160 = dma.done [#allocation16], 256
    $region85: #{tpu_custom_call.1} parent=1 // pred_fallthru
      _
    // Predicated region
    $region86: #{tpu_custom_call.1} parent=1 // pred_check
      _
    $region87: #{tpu_custom_call.1} parent=1 // pred_check_branch
      %162 = sbr.rel (0) target = $region89
    $region88: #{tpu_custom_call.1} parent=1 // pred_region
      %164 = dma.done [#allocation19], 16
    $region89: #{tpu_custom_call.1} parent=1 // pred_fallthru
      _
    %v166 = vld [vmem:[%s0] sm:$0xff]
    %v167 = vld [vmem:[%s0 + $0x8] sm:$0xff]
    %v168 = vld [vmem:[%s0 + $0x10] sm:$0xff]
    %v169 = vld [vmem:[%s0 + $0x18] sm:$0xff]
    %v170 = vld [vmem:[%s0 + $0x20] sm:$0xff]
    %v171 = vld [vmem:[%s0 + $0x28] sm:$0xff]
    %v172 = vld [vmem:[%s0 + $0x30] sm:$0xff]
    %v173 = vld [vmem:[%s0 + $0x38] sm:$0xff]
    %v174 = vpack.c.bf16 %v167, %v166
    %v175 = vpack.c.bf16 %v169, %v168
    %v176 = vpack.c.bf16 %v171, %v170
    %v177 = vpack.c.bf16 %v173, %v172
    %v178 = vld [vmem:[#allocation6] sm:$0xf]
    %v179 = vld [vmem:[#allocation6 + $0x4] sm:$0xf]
    %v180 = vld [vmem:[#allocation6 + $0x8] sm:$0xf]
    %v181 = vld [vmem:[#allocation6 + $0xc] sm:$0xf]
    %v182 = vld [vmem:[#allocation9] sm:$0x1]
    %v184 = vperm.slane %v182, 0
    %v190 = vunpack.c.l.b16 %v178
    %v191 = vunpack.c.l.b16 %v179
    %v192 = vunpack.c.l.b16 %v180
    %v193 = vunpack.c.l.b16 %v181
    %v194 = vpack.c.b16 %v191, %v190
    %v195 = vpack.c.b16 %v193, %v192
    %vm198 = vcmask 261120
    %v200 = vsel %vm198, %v174, 0
    %v203 = vsel %vm198, %v175, 0
    %v206 = vsel %vm198, %v176, 0
    %v209 = vsel %vm198, %v177, 0
    %211 = vmatpush.bf16.msra.mxu0 0
    %212 = vmatpush.bf16.msra.mxu0 0
    %213 = vmatpush.bf16.msra.mxu0 0
    %214 = vmatpush.bf16.msra.mxu0 0
    %215 = vmatpush.bf16.msra.mxu0 0
    %216 = vmatpush.bf16.msra.mxu0 0
    %217 = vmatpush.bf16.msra.mxu0 %v195
    %218 = vmatpush.bf16.msra.mxu0 %v194
    %219 = vmatmul.bf16.gmra.mxu0 %v200
    %v220 = vpop.f32.mrf.mxu0
    %v221 = vadd.f32 %v184, %v220
    %v222 = vpop.f32.mrf.mxu0
    %v223 = vadd.f32 %v184, %v222
    %224 = vmatmul.bf16.gmra.mxu0 %v203
    %v225 = vpop.f32.mrf.mxu0
    %v226 = vadd.f32 %v184, %v225
    %v227 = vpop.f32.mrf.mxu0
    %v228 = vadd.f32 %v184, %v227
    %229 = vmatmul.bf16.gmra.mxu0 %v206
    %v230 = vpop.f32.mrf.mxu0
    %v231 = vadd.f32 %v184, %v230
    %v232 = vpop.f32.mrf.mxu0
    %v233 = vadd.f32 %v184, %v232
    %234 = vmatmul.bf16.gmra.mxu0 %v209
    %v235 = vpop.f32.mrf.mxu0
    %v236 = vadd.f32 %v184, %v235
    %v237 = vpop.f32.mrf.mxu0
    %v238 = vadd.f32 %v184, %v237
    %239 = vdwg.mxu0
    %vm240 = vcmask 392192
    %241 = vst.msk [vmem:[#allocation2] sm:$0xff] %vm240, %v221
    %242 = vst.msk [vmem:[#allocation2 + $0x8] sm:$0xff] %vm240, %v223
    %243 = vst.msk [vmem:[#allocation2 + $0x10] sm:$0xff] %vm240, %v226
    %244 = vst.msk [vmem:[#allocation2 + $0x18] sm:$0xff] %vm240, %v228
    %245 = vst.msk [vmem:[#allocation2 + $0x20] sm:$0xff] %vm240, %v231
    %246 = vst.msk [vmem:[#allocation2 + $0x28] sm:$0xff] %vm240, %v233
    %247 = vst.msk [vmem:[#allocation2 + $0x30] sm:$0xff] %vm240, %v236
    %248 = vst.msk [vmem:[#allocation2 + $0x38] sm:$0xff] %vm240, %v238
    %v249 = vld [vmem:[#allocation14] sm:$0xf]
    %v250 = vld [vmem:[#allocation14 + $0x4] sm:$0xf]
    %v251 = vld [vmem:[#allocation14 + $0x8] sm:$0xf]
    %v252 = vld [vmem:[#allocation14 + $0xc] sm:$0xf]
    %v253 = vld [vmem:[#allocation15] sm:$0x1]
    %v255 = vperm.slane %v253, 0
    %v261 = vunpack.c.l.b16 %v249
    %v262 = vunpack.c.l.b16 %v250
    %v263 = vunpack.c.l.b16 %v251
    %v264 = vunpack.c.l.b16 %v252
    %v265 = vpack.c.b16 %v262, %v261
    %v266 = vpack.c.b16 %v264, %v263
    %269 = vmatpush.bf16.msra.mxu0 0
    %270 = vmatpush.bf16.msra.mxu0 0
    %271 = vmatpush.bf16.msra.mxu0 0
    %272 = vmatpush.bf16.msra.mxu0 0
    %273 = vmatpush.bf16.msra.mxu0 0
    %274 = vmatpush.bf16.msra.mxu0 0
    %275 = vmatpush.bf16.msra.mxu0 %v266
    %276 = vmatpush.bf16.msra.mxu0 %v265
    %277 = vmatmul.bf16.gmra.mxu0 %v200
    %v278 = vpop.f32.mrf.mxu0
    %v279 = vadd.f32 %v255, %v278
    %v280 = vpop.f32.mrf.mxu0
    %v281 = vadd.f32 %v255, %v280
    %282 = vmatmul.bf16.gmra.mxu0 %v203
    %v283 = vpop.f32.mrf.mxu0
    %v284 = vadd.f32 %v255, %v283
    %v285 = vpop.f32.mrf.mxu0
    %v286 = vadd.f32 %v255, %v285
    %287 = vmatmul.bf16.gmra.mxu0 %v206
    %v288 = vpop.f32.mrf.mxu0
    %v289 = vadd.f32 %v255, %v288
    %v290 = vpop.f32.mrf.mxu0
    %v291 = vadd.f32 %v255, %v290
    %292 = vmatmul.bf16.gmra.mxu0 %v209
    %v293 = vpop.f32.mrf.mxu0
    %v294 = vadd.f32 %v255, %v293
    %v295 = vpop.f32.mrf.mxu0
    %v296 = vadd.f32 %v255, %v295
    %297 = vdwg.mxu0
    %298 = vst.msk [vmem:[#allocation3] sm:$0xff] %vm240, %v279
    %299 = vst.msk [vmem:[#allocation3 + $0x8] sm:$0xff] %vm240, %v281
    %300 = vst.msk [vmem:[#allocation3 + $0x10] sm:$0xff] %vm240, %v284
    %301 = vst.msk [vmem:[#allocation3 + $0x18] sm:$0xff] %vm240, %v286
    %302 = vst.msk [vmem:[#allocation3 + $0x20] sm:$0xff] %vm240, %v289
    %303 = vst.msk [vmem:[#allocation3 + $0x28] sm:$0xff] %vm240, %v291
    %304 = vst.msk [vmem:[#allocation3 + $0x30] sm:$0xff] %vm240, %v294
    %305 = vst.msk [vmem:[#allocation3 + $0x38] sm:$0xff] %vm240, %v296
    %v306 = vld [vmem:[#allocation11] sm:$0xff]
    %v307 = vld [vmem:[#allocation11 + $0x8] sm:$0xff]
    %v308 = vld [vmem:[#allocation17] sm:$0xff]
    %v309 = vld [vmem:[#allocation17 + $0x8] sm:$0xff]
    %v310 = vld [vmem:[#allocation12] sm:$0x1]
    %v311 = vld [vmem:[#allocation18] sm:$0x1]
    %v312 = vld [vmem:[%s1] sm:$0xff]
    %s313 = scalar_lea.vmem %s1, 56
    %v314 = vld [vmem:[%s313] sm:$0xff]
    %v315 = vld [vmem:[#allocation2] sm:$0xff]
    %vm316 = vcmask 130048
    %v318 = vsel %vm316, 0.0, 0
    %320 = vmatpush.msra.mxu0 0.0
    %321 = vmatpush.msra.mxu0 0.0
    %322 = vmatpush.msra.mxu0 0.0
    %323 = vmatpush.msra.mxu0 0.0
    %324 = vmatpush.msra.mxu0 0.0
    %325 = vmatpush.msra.mxu0 0.0
    %326 = vmatpush.msra.mxu0 0.0
    %327 = vmatpush.msra.mxu0 0.0
    %328 = vmatpush.msra.mxu0 0.0
    %329 = vmatpush.msra.mxu0 0.0
    %330 = vmatpush.msra.mxu0 0.0
    %331 = vmatpush.msra.mxu0 0.0
    %332 = vmatpush.msra.mxu0 0.0
    %333 = vmatpush.msra.mxu0 0.0
    %334 = vmatpush.msra.mxu0 %v307
    %335 = vmatpush.msra.mxu0 %v306
    %336 = vmatmul.f32.gmra.mxu0 %v318
    %v337 = vpop.f32.mrf.mxu0
    %v338 = vadd.f32 0.0, %v337
    %339 = vdwg.mxu0
    %v340 = vadd.f32 %v315, %v338
    %v341 = vxor.u32 %v340, 2147483648
    %v342 = vmul.f32 %v341, 1.442695
    %v343 = vpow.pop %v342
    %v344 = vadd.f32 %v343, 1.0
    %v345 = vrcp.pop %v344
    %v346 = vmul.f32 %v344, %v345
    %v347 = vsub.f32 1.0, %v346
    %v348 = vmul.f32 %v345, %v347
    %v349 = vadd.f32 %v345, %v348
    %vm350 = vweird.f32 %v344
    %vm351 = vweird.f32 %v345
    %vm352 = vmor %vm350, %vm351
    %v353 = vsel %vm352, %v345, %v349
    %v354 = vand.u32 2147483647, %v344
    %vm355 = vcmp.eq.f32.partialorder %v354, 8.507059e+37
    %v356 = vand.u32 %v344, 2147483648
    %v357 = vor.u32 1.1754944e-38, %v356
    %v358 = vsel %vm355, %v357, %v353
    %v359 = vmul.f32 1.0, %v358
    %v361 = vperm.slane %v310, 0
    %362 = vrot.lane.b32.xlu0 %v361, 32
    %v363 = vpop.permute.xlu0 %362
    %v365 = vadd.f32 %v338, %v363
    %367 = vrot.lane.b32.xlu0 %v365, 96
    %v368 = vpop.permute.xlu0 %367
    %v370 = vmul.f32 %v359, %v368
    %372 = vrot.lane.b32.xlu0 %v370, 32
    %v373 = vpop.permute.xlu0 %372
    %v375 = vadd.f32 %v315, %v373
    %v376 = vtanh.pop %v375
    %v377 = vsub.f32 1.0, %v359
    %379 = vrot.lane.b32.xlu0 %v376, 112
    %v380 = vpop.permute.xlu0 %379
    %v382 = vmul.f32 %v377, %v380
    %v383 = vmul.f32 %v359, 0.0
    %v384 = vadd.f32 %v382, %v383
    %s385 = scalar_lea.vmem [#allocation3], 56
    %v386 = vld [vmem:[%s385] sm:$0xff]
    %387 = vmatpush.msra.mxu0 0.0
    %388 = vmatpush.msra.mxu0 0.0
    %389 = vmatpush.msra.mxu0 0.0
    %390 = vmatpush.msra.mxu0 0.0
    %391 = vmatpush.msra.mxu0 0.0
    %392 = vmatpush.msra.mxu0 0.0
    %393 = vmatpush.msra.mxu0 0.0
    %394 = vmatpush.msra.mxu0 0.0
    %395 = vmatpush.msra.mxu0 0.0
    %396 = vmatpush.msra.mxu0 0.0
    %397 = vmatpush.msra.mxu0 0.0
    %398 = vmatpush.msra.mxu0 0.0
    %399 = vmatpush.msra.mxu0 0.0
    %400 = vmatpush.msra.mxu0 0.0
    %401 = vmatpush.msra.mxu0 %v309
    %402 = vmatpush.msra.mxu0 %v308
    %403 = vmatmul.f32.gmra.mxu0 %v318
    %v404 = vpop.f32.mrf.mxu0
    %v405 = vadd.f32 0.0, %v404
    %406 = vdwg.mxu0
    %v407 = vadd.f32 %v386, %v405
    %v408 = vxor.u32 %v407, 2147483648
    %v409 = vmul.f32 %v408, 1.442695
    %v410 = vpow.pop %v409
    %v411 = vadd.f32 %v410, 1.0
    %v412 = vrcp.pop %v411
    %v413 = vmul.f32 %v411, %v412
    %v414 = vsub.f32 1.0, %v413
    %v415 = vmul.f32 %v412, %v414
    %v416 = vadd.f32 %v412, %v415
    %vm417 = vweird.f32 %v411
    %vm418 = vweird.f32 %v412
    %vm419 = vmor %vm417, %vm418
    %v420 = vsel %vm419, %v412, %v416
    %v421 = vand.u32 2147483647, %v411
    %vm422 = vcmp.eq.f32.partialorder %v421, 8.507059e+37
    %v423 = vand.u32 %v411, 2147483648
    %v424 = vor.u32 1.1754944e-38, %v423
    %v425 = vsel %vm422, %v424, %v420
    %v426 = vmul.f32 1.0, %v425
    %v428 = vperm.slane %v311, 0
    %429 = vrot.lane.b32.xlu0 %v428, 32
    %v430 = vpop.permute.xlu0 %429
    %v432 = vadd.f32 %v405, %v430
    %434 = vrot.lane.b32.xlu0 %v432, 96
    %v435 = vpop.permute.xlu0 %434
    %v437 = vmul.f32 %v426, %v435
    %439 = vrot.lane.b32.xlu0 %v437, 32
    %v440 = vpop.permute.xlu0 %439
    %v442 = vadd.f32 %v386, %v440
    %v443 = vtanh.pop %v442
    %v444 = vsub.f32 1.0, %v426
    %446 = vrot.lane.b32.xlu0 %v443, 112
    %v447 = vpop.permute.xlu0 %446
    %v449 = vmul.f32 %v444, %v447
    %v450 = vmul.f32 %v426, 0.0
    %v451 = vadd.f32 %v449, %v450
    %vm452 = vcmp.gt.f32.partialorder %v312, 0.0
    %v453 = vsel %vm452, 1, 0
    %454 = vset.pattern.permute.xlu0 0
    %455 = vperm.xlu0 %454, %v453
    %v456 = vpop.permute.xlu0 %455
    %vm457 = vcmp.eq.s32.totalorder %v456, 1
    %v458 = vsel %vm457, %v384, 0.0
    %vm459 = vcmp.gt.f32.partialorder %v314, 0.0
    %v460 = vsel %vm459, 1, 0
    %461 = vset.pattern.permute.xlu0 0
    %462 = vperm.xlu0 %461, %v460
    %v463 = vpop.permute.xlu0 %462
    %vm464 = vcmp.eq.s32.totalorder %v463, 1
    %v465 = vsel %vm464, %v451, 0.0
    %467 = vrot.lane.b32.xlu0 %v458, 112
    %v468 = vpop.permute.xlu0 %467
    %470 = vst.msk [vmem:[#allocation4] sm:$0xff] %vm316, %v468
    %472 = vrot.lane.b32.xlu0 %v465, 112
    %v473 = vpop.permute.xlu0 %472
    %s475 = scalar_lea.vmem [#allocation5], 56
    %476 = vst.msk [vmem:[%s475] sm:$0xff] %vm316, %v473
    %s477 = scalar_lea.vmem %s1, 8
    %v478 = vld [vmem:[%s477] sm:$0xff]
    %s479 = scalar_lea.vmem %s1, 48
    %v480 = vld [vmem:[%s479] sm:$0xff]
    %s481 = scalar_lea.vmem [#allocation2], 8
    %v482 = vld [vmem:[%s481] sm:$0xff]
    %v483 = vsel %vm316, %v468, 0
    %485 = vmatpush.msra.mxu0 0.0
    %486 = vmatpush.msra.mxu0 0.0
    %487 = vmatpush.msra.mxu0 0.0
    %488 = vmatpush.msra.mxu0 0.0
    %489 = vmatpush.msra.mxu0 0.0
    %490 = vmatpush.msra.mxu0 0.0
    %491 = vmatpush.msra.mxu0 0.0
    %492 = vmatpush.msra.mxu0 0.0
    %493 = vmatpush.msra.mxu0 0.0
    %494 = vmatpush.msra.mxu0 0.0
    %495 = vmatpush.msra.mxu0 0.0
    %496 = vmatpush.msra.mxu0 0.0
    %497 = vmatpush.msra.mxu0 0.0
    %498 = vmatpush.msra.mxu0 0.0
    %499 = vmatpush.msra.mxu0 %v307
    %500 = vmatpush.msra.mxu0 %v306
    %501 = vmatmul.f32.gmra.mxu0 %v483
    %v502 = vpop.f32.mrf.mxu0
    %v503 = vadd.f32 0.0, %v502
    %504 = vdwg.mxu0
    %v505 = vadd.f32 %v482, %v503
    %v506 = vxor.u32 %v505, 2147483648
    %v507 = vmul.f32 %v506, 1.442695
    %v508 = vpow.pop %v507
    %v509 = vadd.f32 %v508, 1.0
    %v510 = vrcp.pop %v509
    %v511 = vmul.f32 %v509, %v510
    %v512 = vsub.f32 1.0, %v511
    %v513 = vmul.f32 %v510, %v512
    %v514 = vadd.f32 %v510, %v513
    %vm515 = vweird.f32 %v509
    %vm516 = vweird.f32 %v510
    %vm517 = vmor %vm515, %vm516
    %v518 = vsel %vm517, %v510, %v514
    %v519 = vand.u32 2147483647, %v509
    %vm520 = vcmp.eq.f32.partialorder %v519, 8.507059e+37
    %v521 = vand.u32 %v509, 2147483648
    %v522 = vor.u32 1.1754944e-38, %v521
    %v523 = vsel %vm520, %v522, %v518
    %v524 = vmul.f32 1.0, %v523
    %v525 = vadd.f32 %v503, %v363
    %527 = vrot.lane.b32.xlu0 %v525, 96
    %v528 = vpop.permute.xlu0 %527
    %v530 = vmul.f32 %v524, %v528
    %532 = vrot.lane.b32.xlu0 %v530, 32
    %v533 = vpop.permute.xlu0 %532
    %v535 = vadd.f32 %v482, %v533
    %v536 = vtanh.pop %v535
    %v537 = vsub.f32 1.0, %v524
    %539 = vrot.lane.b32.xlu0 %v536, 112
    %v540 = vpop.permute.xlu0 %539
    %v542 = vmul.f32 %v537, %v540
    %v543 = vmul.f32 %v524, %v458
    %v544 = vadd.f32 %v542, %v543
    %s545 = scalar_lea.vmem [#allocation3], 48
    %v546 = vld [vmem:[%s545] sm:$0xff]
    %v547 = vsel %vm316, %v473, 0
    %549 = vmatpush.msra.mxu0 0.0
    %550 = vmatpush.msra.mxu0 0.0
    %551 = vmatpush.msra.mxu0 0.0
    %552 = vmatpush.msra.mxu0 0.0
    %553 = vmatpush.msra.mxu0 0.0
    %554 = vmatpush.msra.mxu0 0.0
    %555 = vmatpush.msra.mxu0 0.0
    %556 = vmatpush.msra.mxu0 0.0
    %557 = vmatpush.msra.mxu0 0.0
    %558 = vmatpush.msra.mxu0 0.0
    %559 = vmatpush.msra.mxu0 0.0
    %560 = vmatpush.msra.mxu0 0.0
    %561 = vmatpush.msra.mxu0 0.0
    %562 = vmatpush.msra.mxu0 0.0
    %563 = vmatpush.msra.mxu0 %v309
    %564 = vmatpush.msra.mxu0 %v308
    %565 = vmatmul.f32.gmra.mxu0 %v547
    %v566 = vpop.f32.mrf.mxu0
    %v567 = vadd.f32 0.0, %v566
    %568 = vdwg.mxu0
    %v569 = vadd.f32 %v546, %v567
    %v570 = vxor.u32 %v569, 2147483648
    %v571 = vmul.f32 %v570, 1.442695
    %v572 = vpow.pop %v571
    %v573 = vadd.f32 %v572, 1.0
    %v574 = vrcp.pop %v573
    %v575 = vmul.f32 %v573, %v574
    %v576 = vsub.f32 1.0, %v575
    %v577 = vmul.f32 %v574, %v576
    %v578 = vadd.f32 %v574, %v577
    %vm579 = vweird.f32 %v573
    %vm580 = vweird.f32 %v574
    %vm581 = vmor %vm579, %vm580
    %v582 = vsel %vm581, %v574, %v578
    %v583 = vand.u32 2147483647, %v573
    %vm584 = vcmp.eq.f32.partialorder %v583, 8.507059e+37
    %v585 = vand.u32 %v573, 2147483648
    %v586 = vor.u32 1.1754944e-38, %v585
    %v587 = vsel %vm584, %v586, %v582
    %v588 = vmul.f32 1.0, %v587
    %v589 = vadd.f32 %v567, %v430
    %591 = vrot.lane.b32.xlu0 %v589, 96
    %v592 = vpop.permute.xlu0 %591
    %v594 = vmul.f32 %v588, %v592
    %596 = vrot.lane.b32.xlu0 %v594, 32
    %v597 = vpop.permute.xlu0 %596
    %v599 = vadd.f32 %v546, %v597
    %v600 = vtanh.pop %v599
    %v601 = vsub.f32 1.0, %v588
    %603 = vrot.lane.b32.xlu0 %v600, 112
    %v604 = vpop.permute.xlu0 %603
    %v606 = vmul.f32 %v601, %v604
    %v607 = vmul.f32 %v588, %v465
    %v608 = vadd.f32 %v606, %v607
    %vm609 = vcmp.gt.f32.partialorder %v478, 0.0
    %v610 = vsel %vm609, 1, 0
    %611 = vset.pattern.permute.xlu0 0
    %612 = vperm.xlu0 %611, %v610
    %v613 = vpop.permute.xlu0 %612
    %vm614 = vcmp.eq.s32.totalorder %v613, 1
    %v615 = vsel %vm614, %v544, %v458
    %vm616 = vcmp.gt.f32.partialorder %v480, 0.0
    %v617 = vsel %vm616, 1, 0
    %618 = vset.pattern.permute.xlu0 0
    %619 = vperm.xlu0 %618, %v617
    %v620 = vpop.permute.xlu0 %619
    %vm621 = vcmp.eq.s32.totalorder %v620, 1
    %v622 = vsel %vm621, %v608, %v465
    %v623 = vsel %vm614, %v544, 0.0
    %625 = vrot.lane.b32.xlu0 %v623, 112
    %v626 = vpop.permute.xlu0 %625
    %s628 = scalar_lea.vmem [#allocation4], 8
    %629 = vst.msk [vmem:[%s628] sm:$0xff] %vm316, %v626
    %v630 = vsel %vm621, %v608, 0.0
    %632 = vrot.lane.b32.xlu0 %v630, 112
    %v633 = vpop.permute.xlu0 %632
    %s635 = scalar_lea.vmem [#allocation5], 48
    %636 = vst.msk [vmem:[%s635] sm:$0xff] %vm316, %v633
    %s637 = scalar_lea.vmem %s1, 16
    %v638 = vld [vmem:[%s637] sm:$0xff]
    %s639 = scalar_lea.vmem %s1, 40
    %v640 = vld [vmem:[%s639] sm:$0xff]
    %s641 = scalar_lea.vmem [#allocation2], 16
    %v642 = vld [vmem:[%s641] sm:$0xff]
    %644 = vrot.lane.b32.xlu0 %v615, 112
    %v645 = vpop.permute.xlu0 %644
    %v646 = vsel %vm316, %v645, 0
    %648 = vmatpush.msra.mxu0 0.0
    %649 = vmatpush.msra.mxu0 0.0
    %650 = vmatpush.msra.mxu0 0.0
    %651 = vmatpush.msra.mxu0 0.0
    %652 = vmatpush.msra.mxu0 0.0
    %653 = vmatpush.msra.mxu0 0.0
    %654 = vmatpush.msra.mxu0 0.0
    %655 = vmatpush.msra.mxu0 0.0
    %656 = vmatpush.msra.mxu0 0.0
    %657 = vmatpush.msra.mxu0 0.0
    %658 = vmatpush.msra.mxu0 0.0
    %659 = vmatpush.msra.mxu0 0.0
    %660 = vmatpush.msra.mxu0 0.0
    %661 = vmatpush.msra.mxu0 0.0
    %662 = vmatpush.msra.mxu0 %v307
    %663 = vmatpush.msra.mxu0 %v306
    %664 = vmatmul.f32.gmra.mxu0 %v646
    %v665 = vpop.f32.mrf.mxu0
    %v666 = vadd.f32 0.0, %v665
    %667 = vdwg.mxu0
    %v668 = vadd.f32 %v642, %v666
    %v669 = vxor.u32 %v668, 2147483648
    %v670 = vmul.f32 %v669, 1.442695
    %v671 = vpow.pop %v670
    %v672 = vadd.f32 %v671, 1.0
    %v673 = vrcp.pop %v672
    %v674 = vmul.f32 %v672, %v673
    %v675 = vsub.f32 1.0, %v674
    %v676 = vmul.f32 %v673, %v675
    %v677 = vadd.f32 %v673, %v676
    %vm678 = vweird.f32 %v672
    %vm679 = vweird.f32 %v673
    %vm680 = vmor %vm678, %vm679
    %v681 = vsel %vm680, %v673, %v677
    %v682 = vand.u32 2147483647, %v672
    %vm683 = vcmp.eq.f32.partialorder %v682, 8.507059e+37
    %v684 = vand.u32 %v672, 2147483648
    %v685 = vor.u32 1.1754944e-38, %v684
    %v686 = vsel %vm683, %v685, %v681
    %v687 = vmul.f32 1.0, %v686
    %v688 = vadd.f32 %v666, %v363
    %690 = vrot.lane.b32.xlu0 %v688, 96
    %v691 = vpop.permute.xlu0 %690
    %v693 = vmul.f32 %v687, %v691
    %695 = vrot.lane.b32.xlu0 %v693, 32
    %v696 = vpop.permute.xlu0 %695
    %v698 = vadd.f32 %v642, %v696
    %v699 = vtanh.pop %v698
    %v700 = vsub.f32 1.0, %v687
    %702 = vrot.lane.b32.xlu0 %v699, 112
    %v703 = vpop.permute.xlu0 %702
    %v705 = vmul.f32 %v700, %v703
    %v706 = vmul.f32 %v687, %v615
    %v707 = vadd.f32 %v705, %v706
    %s708 = scalar_lea.vmem [#allocation3], 40
    %v709 = vld [vmem:[%s708] sm:$0xff]
    %711 = vrot.lane.b32.xlu0 %v622, 112
    %v712 = vpop.permute.xlu0 %711
    %v713 = vsel %vm316, %v712, 0
    %715 = vmatpush.msra.mxu0 0.0
    %716 = vmatpush.msra.mxu0 0.0
    %717 = vmatpush.msra.mxu0 0.0
    %718 = vmatpush.msra.mxu0 0.0
    %719 = vmatpush.msra.mxu0 0.0
    %720 = vmatpush.msra.mxu0 0.0
    %721 = vmatpush.msra.mxu0 0.0
    %722 = vmatpush.msra.mxu0 0.0
    %723 = vmatpush.msra.mxu0 0.0
    %724 = vmatpush.msra.mxu0 0.0
    %725 = vmatpush.msra.mxu0 0.0
    %726 = vmatpush.msra.mxu0 0.0
    %727 = vmatpush.msra.mxu0 0.0
    %728 = vmatpush.msra.mxu0 0.0
    %729 = vmatpush.msra.mxu0 %v309
    %730 = vmatpush.msra.mxu0 %v308
    %731 = vmatmul.f32.gmra.mxu0 %v713
    %v732 = vpop.f32.mrf.mxu0
    %v733 = vadd.f32 0.0, %v732
    %734 = vdwg.mxu0
    %v735 = vadd.f32 %v709, %v733
    %v736 = vxor.u32 %v735, 2147483648
    %v737 = vmul.f32 %v736, 1.442695
    %v738 = vpow.pop %v737
    %v739 = vadd.f32 %v738, 1.0
    %v740 = vrcp.pop %v739
    %v741 = vmul.f32 %v739, %v740
    %v742 = vsub.f32 1.0, %v741
    %v743 = vmul.f32 %v740, %v742
    %v744 = vadd.f32 %v740, %v743
    %vm745 = vweird.f32 %v739
    %vm746 = vweird.f32 %v740
    %vm747 = vmor %vm745, %vm746
    %v748 = vsel %vm747, %v740, %v744
    %v749 = vand.u32 2147483647, %v739
    %vm750 = vcmp.eq.f32.partialorder %v749, 8.507059e+37
    %v751 = vand.u32 %v739, 2147483648
    %v752 = vor.u32 1.1754944e-38, %v751
    %v753 = vsel %vm750, %v752, %v748
    %v754 = vmul.f32 1.0, %v753
    %v755 = vadd.f32 %v733, %v430
    %757 = vrot.lane.b32.xlu0 %v755, 96
    %v758 = vpop.permute.xlu0 %757
    %v760 = vmul.f32 %v754, %v758
    %762 = vrot.lane.b32.xlu0 %v760, 32
    %v763 = vpop.permute.xlu0 %762
    %v765 = vadd.f32 %v709, %v763
    %v766 = vtanh.pop %v765
    %v767 = vsub.f32 1.0, %v754
    %769 = vrot.lane.b32.xlu0 %v766, 112
    %v770 = vpop.permute.xlu0 %769
    %v772 = vmul.f32 %v767, %v770
    %v773 = vmul.f32 %v754, %v622
    %v774 = vadd.f32 %v772, %v773
    %vm775 = vcmp.gt.f32.partialorder %v638, 0.0
    %v776 = vsel %vm775, 1, 0
    %777 = vset.pattern.permute.xlu0 0
    %778 = vperm.xlu0 %777, %v776
    %v779 = vpop.permute.xlu0 %778
    %vm780 = vcmp.eq.s32.totalorder %v779, 1
    %v781 = vsel %vm780, %v707, %v615
    %vm782 = vcmp.gt.f32.partialorder %v640, 0.0
    %v783 = vsel %vm782, 1, 0
    %784 = vset.pattern.permute.xlu0 0
    %785 = vperm.xlu0 %784, %v783
    %v786 = vpop.permute.xlu0 %785
    %vm787 = vcmp.eq.s32.totalorder %v786, 1
    %v788 = vsel %vm787, %v774, %v622
    %v789 = vsel %vm780, %v707, 0.0
    %791 = vrot.lane.b32.xlu0 %v789, 112
    %v792 = vpop.permute.xlu0 %791
    %s794 = scalar_lea.vmem [#allocation4], 16
    %795 = vst.msk [vmem:[%s794] sm:$0xff] %vm316, %v792
    %v796 = vsel %vm787, %v774, 0.0
    %798 = vrot.lane.b32.xlu0 %v796, 112
    %v799 = vpop.permute.xlu0 %798
    %s801 = scalar_lea.vmem [#allocation5], 40
    %802 = vst.msk [vmem:[%s801] sm:$0xff] %vm316, %v799
    %s803 = scalar_lea.vmem %s1, 24
    %v804 = vld [vmem:[%s803] sm:$0xff]
    %s805 = scalar_lea.vmem %s1, 32
    %v806 = vld [vmem:[%s805] sm:$0xff]
    %s807 = scalar_lea.vmem [#allocation2], 24
    %v808 = vld [vmem:[%s807] sm:$0xff]
    %810 = vrot.lane.b32.xlu0 %v781, 112
    %v811 = vpop.permute.xlu0 %810
    %v812 = vsel %vm316, %v811, 0
    %814 = vmatpush.msra.mxu0 0.0
    %815 = vmatpush.msra.mxu0 0.0
    %816 = vmatpush.msra.mxu0 0.0
    %817 = vmatpush.msra.mxu0 0.0
    %818 = vmatpush.msra.mxu0 0.0
    %819 = vmatpush.msra.mxu0 0.0
    %820 = vmatpush.msra.mxu0 0.0
    %821 = vmatpush.msra.mxu0 0.0
    %822 = vmatpush.msra.mxu0 0.0
    %823 = vmatpush.msra.mxu0 0.0
    %824 = vmatpush.msra.mxu0 0.0
    %825 = vmatpush.msra.mxu0 0.0
    %826 = vmatpush.msra.mxu0 0.0
    %827 = vmatpush.msra.mxu0 0.0
    %828 = vmatpush.msra.mxu0 %v307
    %829 = vmatpush.msra.mxu0 %v306
    %830 = vmatmul.f32.gmra.mxu0 %v812
    %v831 = vpop.f32.mrf.mxu0
    %v832 = vadd.f32 0.0, %v831
    %833 = vdwg.mxu0
    %v834 = vadd.f32 %v808, %v832
    %v835 = vxor.u32 %v834, 2147483648
    %v836 = vmul.f32 %v835, 1.442695
    %v837 = vpow.pop %v836
    %v838 = vadd.f32 %v837, 1.0
    %v839 = vrcp.pop %v838
    %v840 = vmul.f32 %v838, %v839
    %v841 = vsub.f32 1.0, %v840
    %v842 = vmul.f32 %v839, %v841
    %v843 = vadd.f32 %v839, %v842
    %vm844 = vweird.f32 %v838
    %vm845 = vweird.f32 %v839
    %vm846 = vmor %vm844, %vm845
    %v847 = vsel %vm846, %v839, %v843
    %v848 = vand.u32 2147483647, %v838
    %vm849 = vcmp.eq.f32.partialorder %v848, 8.507059e+37
    %v850 = vand.u32 %v838, 2147483648
    %v851 = vor.u32 1.1754944e-38, %v850
    %v852 = vsel %vm849, %v851, %v847
    %v853 = vmul.f32 1.0, %v852
    %v854 = vadd.f32 %v832, %v363
    %856 = vrot.lane.b32.xlu0 %v854, 96
    %v857 = vpop.permute.xlu0 %856
    %v859 = vmul.f32 %v853, %v857
    %861 = vrot.lane.b32.xlu0 %v859, 32
    %v862 = vpop.permute.xlu0 %861
    %v864 = vadd.f32 %v808, %v862
    %v865 = vtanh.pop %v864
    %v866 = vsub.f32 1.0, %v853
    %868 = vrot.lane.b32.xlu0 %v865, 112
    %v869 = vpop.permute.xlu0 %868
    %v871 = vmul.f32 %v866, %v869
    %v872 = vmul.f32 %v853, %v781
    %v873 = vadd.f32 %v871, %v872
    %s874 = scalar_lea.vmem [#allocation3], 32
    %v875 = vld [vmem:[%s874] sm:$0xff]
    %877 = vrot.lane.b32.xlu0 %v788, 112
    %v878 = vpop.permute.xlu0 %877
    %v879 = vsel %vm316, %v878, 0
    %881 = vmatpush.msra.mxu0 0.0
    %882 = vmatpush.msra.mxu0 0.0
    %883 = vmatpush.msra.mxu0 0.0
    %884 = vmatpush.msra.mxu0 0.0
    %885 = vmatpush.msra.mxu0 0.0
    %886 = vmatpush.msra.mxu0 0.0
    %887 = vmatpush.msra.mxu0 0.0
    %888 = vmatpush.msra.mxu0 0.0
    %889 = vmatpush.msra.mxu0 0.0
    %890 = vmatpush.msra.mxu0 0.0
    %891 = vmatpush.msra.mxu0 0.0
    %892 = vmatpush.msra.mxu0 0.0
    %893 = vmatpush.msra.mxu0 0.0
    %894 = vmatpush.msra.mxu0 0.0
    %895 = vmatpush.msra.mxu0 %v309
    %896 = vmatpush.msra.mxu0 %v308
    %897 = vmatmul.f32.gmra.mxu0 %v879
    %v898 = vpop.f32.mrf.mxu0
    %v899 = vadd.f32 0.0, %v898
    %900 = vdwg.mxu0
    %v901 = vadd.f32 %v875, %v899
    %v902 = vxor.u32 %v901, 2147483648
    %v903 = vmul.f32 %v902, 1.442695
    %v904 = vpow.pop %v903
    %v905 = vadd.f32 %v904, 1.0
    %v906 = vrcp.pop %v905
    %v907 = vmul.f32 %v905, %v906
    %v908 = vsub.f32 1.0, %v907
    %v909 = vmul.f32 %v906, %v908
    %v910 = vadd.f32 %v906, %v909
    %vm911 = vweird.f32 %v905
    %vm912 = vweird.f32 %v906
    %vm913 = vmor %vm911, %vm912
    %v914 = vsel %vm913, %v906, %v910
    %v915 = vand.u32 2147483647, %v905
    %vm916 = vcmp.eq.f32.partialorder %v915, 8.507059e+37
    %v917 = vand.u32 %v905, 2147483648
    %v918 = vor.u32 1.1754944e-38, %v917
    %v919 = vsel %vm916, %v918, %v914
    %v920 = vmul.f32 1.0, %v919
    %v921 = vadd.f32 %v899, %v430
    %923 = vrot.lane.b32.xlu0 %v921, 96
    %v924 = vpop.permute.xlu0 %923
    %v926 = vmul.f32 %v920, %v924
    %928 = vrot.lane.b32.xlu0 %v926, 32
    %v929 = vpop.permute.xlu0 %928
    %v931 = vadd.f32 %v875, %v929
    %v932 = vtanh.pop %v931
    %v933 = vsub.f32 1.0, %v920
    %935 = vrot.lane.b32.xlu0 %v932, 112
    %v936 = vpop.permute.xlu0 %935
    %v938 = vmul.f32 %v933, %v936
    %v939 = vmul.f32 %v920, %v788
    %v940 = vadd.f32 %v938, %v939
    %vm941 = vcmp.gt.f32.partialorder %v804, 0.0
    %v942 = vsel %vm941, 1, 0
    %943 = vset.pattern.permute.xlu0 0
    %944 = vperm.xlu0 %943, %v942
    %v945 = vpop.permute.xlu0 %944
    %vm946 = vcmp.eq.s32.totalorder %v945, 1
    %v947 = vsel %vm946, %v873, %v781
    %vm948 = vcmp.gt.f32.partialorder %v806, 0.0
    %v949 = vsel %vm948, 1, 0
    %950 = vset.pattern.permute.xlu0 0
    %951 = vperm.xlu0 %950, %v949
    %v952 = vpop.permute.xlu0 %951
    %vm953 = vcmp.eq.s32.totalorder %v952, 1
    %v954 = vsel %vm953, %v940, %v788
    %v955 = vsel %vm946, %v873, 0.0
    %957 = vrot.lane.b32.xlu0 %v955, 112
    %v958 = vpop.permute.xlu0 %957
    %s960 = scalar_lea.vmem [#allocation4], 24
    %961 = vst.msk [vmem:[%s960] sm:$0xff] %vm316, %v958
    %v962 = vsel %vm953, %v940, 0.0
    %964 = vrot.lane.b32.xlu0 %v962, 112
    %v965 = vpop.permute.xlu0 %964
    %s967 = scalar_lea.vmem [#allocation5], 32
    %968 = vst.msk [vmem:[%s967] sm:$0xff] %vm316, %v965
    %v969 = vld [vmem:[%s805] sm:$0xff]
    %v970 = vld [vmem:[%s803] sm:$0xff]
    %s971 = scalar_lea.vmem [#allocation2], 32
    %v972 = vld [vmem:[%s971] sm:$0xff]
    %974 = vrot.lane.b32.xlu0 %v947, 112
    %v975 = vpop.permute.xlu0 %974
    %v976 = vsel %vm316, %v975, 0
    %978 = vmatpush.msra.mxu0 0.0
    %979 = vmatpush.msra.mxu0 0.0
    %980 = vmatpush.msra.mxu0 0.0
    %981 = vmatpush.msra.mxu0 0.0
    %982 = vmatpush.msra.mxu0 0.0
    %983 = vmatpush.msra.mxu0 0.0
    %984 = vmatpush.msra.mxu0 0.0
    %985 = vmatpush.msra.mxu0 0.0
    %986 = vmatpush.msra.mxu0 0.0
    %987 = vmatpush.msra.mxu0 0.0
    %988 = vmatpush.msra.mxu0 0.0
    %989 = vmatpush.msra.mxu0 0.0
    %990 = vmatpush.msra.mxu0 0.0
    %991 = vmatpush.msra.mxu0 0.0
    %992 = vmatpush.msra.mxu0 %v307
    %993 = vmatpush.msra.mxu0 %v306
    %994 = vmatmul.f32.gmra.mxu0 %v976
    %v995 = vpop.f32.mrf.mxu0
    %v996 = vadd.f32 0.0, %v995
    %997 = vdwg.mxu0
    %v998 = vadd.f32 %v972, %v996
    %v999 = vxor.u32 %v998, 2147483648
    %v1000 = vmul.f32 %v999, 1.442695
    %v1001 = vpow.pop %v1000
    %v1002 = vadd.f32 %v1001, 1.0
    %v1003 = vrcp.pop %v1002
    %v1004 = vmul.f32 %v1002, %v1003
    %v1005 = vsub.f32 1.0, %v1004
    %v1006 = vmul.f32 %v1003, %v1005
    %v1007 = vadd.f32 %v1003, %v1006
    %vm1008 = vweird.f32 %v1002
    %vm1009 = vweird.f32 %v1003
    %vm1010 = vmor %vm1008, %vm1009
    %v1011 = vsel %vm1010, %v1003, %v1007
    %v1012 = vand.u32 2147483647, %v1002
    %vm1013 = vcmp.eq.f32.partialorder %v1012, 8.507059e+37
    %v1014 = vand.u32 %v1002, 2147483648
    %v1015 = vor.u32 1.1754944e-38, %v1014
    %v1016 = vsel %vm1013, %v1015, %v1011
    %v1017 = vmul.f32 1.0, %v1016
    %v1018 = vadd.f32 %v996, %v363
    %1020 = vrot.lane.b32.xlu0 %v1018, 96
    %v1021 = vpop.permute.xlu0 %1020
    %v1023 = vmul.f32 %v1017, %v1021
    %1025 = vrot.lane.b32.xlu0 %v1023, 32
    %v1026 = vpop.permute.xlu0 %1025
    %v1028 = vadd.f32 %v972, %v1026
    %v1029 = vtanh.pop %v1028
    %v1030 = vsub.f32 1.0, %v1017
    %1032 = vrot.lane.b32.xlu0 %v1029, 112
    %v1033 = vpop.permute.xlu0 %1032
    %v1035 = vmul.f32 %v1030, %v1033
    %v1036 = vmul.f32 %v1017, %v947
    %v1037 = vadd.f32 %v1035, %v1036
    %s1038 = scalar_lea.vmem [#allocation3], 24
    %v1039 = vld [vmem:[%s1038] sm:$0xff]
    %1041 = vrot.lane.b32.xlu0 %v954, 112
    %v1042 = vpop.permute.xlu0 %1041
    %v1043 = vsel %vm316, %v1042, 0
    %1045 = vmatpush.msra.mxu0 0.0
    %1046 = vmatpush.msra.mxu0 0.0
    %1047 = vmatpush.msra.mxu0 0.0
    %1048 = vmatpush.msra.mxu0 0.0
    %1049 = vmatpush.msra.mxu0 0.0
    %1050 = vmatpush.msra.mxu0 0.0
    %1051 = vmatpush.msra.mxu0 0.0
    %1052 = vmatpush.msra.mxu0 0.0
    %1053 = vmatpush.msra.mxu0 0.0
    %1054 = vmatpush.msra.mxu0 0.0
    %1055 = vmatpush.msra.mxu0 0.0
    %1056 = vmatpush.msra.mxu0 0.0
    %1057 = vmatpush.msra.mxu0 0.0
    %1058 = vmatpush.msra.mxu0 0.0
    %1059 = vmatpush.msra.mxu0 %v309
    %1060 = vmatpush.msra.mxu0 %v308
    %1061 = vmatmul.f32.gmra.mxu0 %v1043
    %v1062 = vpop.f32.mrf.mxu0
    %v1063 = vadd.f32 0.0, %v1062
    %1064 = vdwg.mxu0
    %v1065 = vadd.f32 %v1039, %v1063
    %v1066 = vxor.u32 %v1065, 2147483648
    %v1067 = vmul.f32 %v1066, 1.442695
    %v1068 = vpow.pop %v1067
    %v1069 = vadd.f32 %v1068, 1.0
    %v1070 = vrcp.pop %v1069
    %v1071 = vmul.f32 %v1069, %v1070
    %v1072 = vsub.f32 1.0, %v1071
    %v1073 = vmul.f32 %v1070, %v1072
    %v1074 = vadd.f32 %v1070, %v1073
    %vm1075 = vweird.f32 %v1069
    %vm1076 = vweird.f32 %v1070
    %vm1077 = vmor %vm1075, %vm1076
    %v1078 = vsel %vm1077, %v1070, %v1074
    %v1079 = vand.u32 2147483647, %v1069
    %vm1080 = vcmp.eq.f32.partialorder %v1079, 8.507059e+37
    %v1081 = vand.u32 %v1069, 2147483648
    %v1082 = vor.u32 1.1754944e-38, %v1081
    %v1083 = vsel %vm1080, %v1082, %v1078
    %v1084 = vmul.f32 1.0, %v1083
    %v1085 = vadd.f32 %v1063, %v430
    %1087 = vrot.lane.b32.xlu0 %v1085, 96
    %v1088 = vpop.permute.xlu0 %1087
    %v1090 = vmul.f32 %v1084, %v1088
    %1092 = vrot.lane.b32.xlu0 %v1090, 32
    %v1093 = vpop.permute.xlu0 %1092
    %v1095 = vadd.f32 %v1039, %v1093
    %v1096 = vtanh.pop %v1095
    %v1097 = vsub.f32 1.0, %v1084
    %1099 = vrot.lane.b32.xlu0 %v1096, 112
    %v1100 = vpop.permute.xlu0 %1099
    %v1102 = vmul.f32 %v1097, %v1100
    %v1103 = vmul.f32 %v1084, %v954
    %v1104 = vadd.f32 %v1102, %v1103
    %vm1105 = vcmp.gt.f32.partialorder %v969, 0.0
    %v1106 = vsel %vm1105, 1, 0
    %1107 = vset.pattern.permute.xlu0 0
    %1108 = vperm.xlu0 %1107, %v1106
    %v1109 = vpop.permute.xlu0 %1108
    %vm1110 = vcmp.eq.s32.totalorder %v1109, 1
    %v1111 = vsel %vm1110, %v1037, %v947
    %vm1112 = vcmp.gt.f32.partialorder %v970, 0.0
    %v1113 = vsel %vm1112, 1, 0
    %1114 = vset.pattern.permute.xlu0 0
    %1115 = vperm.xlu0 %1114, %v1113
    %v1116 = vpop.permute.xlu0 %1115
    %vm1117 = vcmp.eq.s32.totalorder %v1116, 1
    %v1118 = vsel %vm1117, %v1104, %v954
    %v1119 = vsel %vm1110, %v1037, 0.0
    %1121 = vrot.lane.b32.xlu0 %v1119, 112
    %v1122 = vpop.permute.xlu0 %1121
    %s1124 = scalar_lea.vmem [#allocation4], 32
    %1125 = vst.msk [vmem:[%s1124] sm:$0xff] %vm316, %v1122
    %v1126 = vsel %vm1117, %v1104, 0.0
    %1128 = vrot.lane.b32.xlu0 %v1126, 112
    %v1129 = vpop.permute.xlu0 %1128
    %s1131 = scalar_lea.vmem [#allocation5], 24
    %1132 = vst.msk [vmem:[%s1131] sm:$0xff] %vm316, %v1129
    %v1133 = vld [vmem:[%s639] sm:$0xff]
    %v1134 = vld [vmem:[%s637] sm:$0xff]
    %s1135 = scalar_lea.vmem [#allocation2], 40
    %v1136 = vld [vmem:[%s1135] sm:$0xff]
    %1138 = vrot.lane.b32.xlu0 %v1111, 112
    %v1139 = vpop.permute.xlu0 %1138
    %v1140 = vsel %vm316, %v1139, 0
    %1142 = vmatpush.msra.mxu0 0.0
    %1143 = vmatpush.msra.mxu0 0.0
    %1144 = vmatpush.msra.mxu0 0.0
    %1145 = vmatpush.msra.mxu0 0.0
    %1146 = vmatpush.msra.mxu0 0.0
    %1147 = vmatpush.msra.mxu0 0.0
    %1148 = vmatpush.msra.mxu0 0.0
    %1149 = vmatpush.msra.mxu0 0.0
    %1150 = vmatpush.msra.mxu0 0.0
    %1151 = vmatpush.msra.mxu0 0.0
    %1152 = vmatpush.msra.mxu0 0.0
    %1153 = vmatpush.msra.mxu0 0.0
    %1154 = vmatpush.msra.mxu0 0.0
    %1155 = vmatpush.msra.mxu0 0.0
    %1156 = vmatpush.msra.mxu0 %v307
    %1157 = vmatpush.msra.mxu0 %v306
    %1158 = vmatmul.f32.gmra.mxu0 %v1140
    %v1159 = vpop.f32.mrf.mxu0
    %v1160 = vadd.f32 0.0, %v1159
    %1161 = vdwg.mxu0
    %v1162 = vadd.f32 %v1136, %v1160
    %v1163 = vxor.u32 %v1162, 2147483648
    %v1164 = vmul.f32 %v1163, 1.442695
    %v1165 = vpow.pop %v1164
    %v1166 = vadd.f32 %v1165, 1.0
    %v1167 = vrcp.pop %v1166
    %v1168 = vmul.f32 %v1166, %v1167
    %v1169 = vsub.f32 1.0, %v1168
    %v1170 = vmul.f32 %v1167, %v1169
    %v1171 = vadd.f32 %v1167, %v1170
    %vm1172 = vweird.f32 %v1166
    %vm1173 = vweird.f32 %v1167
    %vm1174 = vmor %vm1172, %vm1173
    %v1175 = vsel %vm1174, %v1167, %v1171
    %v1176 = vand.u32 2147483647, %v1166
    %vm1177 = vcmp.eq.f32.partialorder %v1176, 8.507059e+37
    %v1178 = vand.u32 %v1166, 2147483648
    %v1179 = vor.u32 1.1754944e-38, %v1178
    %v1180 = vsel %vm1177, %v1179, %v1175
    %v1181 = vmul.f32 1.0, %v1180
    %v1182 = vadd.f32 %v1160, %v363
    %1184 = vrot.lane.b32.xlu0 %v1182, 96
    %v1185 = vpop.permute.xlu0 %1184
    %v1187 = vmul.f32 %v1181, %v1185
    %1189 = vrot.lane.b32.xlu0 %v1187, 32
    %v1190 = vpop.permute.xlu0 %1189
    %v1192 = vadd.f32 %v1136, %v1190
    %v1193 = vtanh.pop %v1192
    %v1194 = vsub.f32 1.0, %v1181
    %1196 = vrot.lane.b32.xlu0 %v1193, 112
    %v1197 = vpop.permute.xlu0 %1196
    %v1199 = vmul.f32 %v1194, %v1197
    %v1200 = vmul.f32 %v1181, %v1111
    %v1201 = vadd.f32 %v1199, %v1200
    %s1202 = scalar_lea.vmem [#allocation3], 16
    %v1203 = vld [vmem:[%s1202] sm:$0xff]
    %1205 = vrot.lane.b32.xlu0 %v1118, 112
    %v1206 = vpop.permute.xlu0 %1205
    %v1207 = vsel %vm316, %v1206, 0
    %1209 = vmatpush.msra.mxu0 0.0
    %1210 = vmatpush.msra.mxu0 0.0
    %1211 = vmatpush.msra.mxu0 0.0
    %1212 = vmatpush.msra.mxu0 0.0
    %1213 = vmatpush.msra.mxu0 0.0
    %1214 = vmatpush.msra.mxu0 0.0
    %1215 = vmatpush.msra.mxu0 0.0
    %1216 = vmatpush.msra.mxu0 0.0
    %1217 = vmatpush.msra.mxu0 0.0
    %1218 = vmatpush.msra.mxu0 0.0
    %1219 = vmatpush.msra.mxu0 0.0
    %1220 = vmatpush.msra.mxu0 0.0
    %1221 = vmatpush.msra.mxu0 0.0
    %1222 = vmatpush.msra.mxu0 0.0
    %1223 = vmatpush.msra.mxu0 %v309
    %1224 = vmatpush.msra.mxu0 %v308
    %1225 = vmatmul.f32.gmra.mxu0 %v1207
    %v1226 = vpop.f32.mrf.mxu0
    %v1227 = vadd.f32 0.0, %v1226
    %1228 = vdwg.mxu0
    %v1229 = vadd.f32 %v1203, %v1227
    %v1230 = vxor.u32 %v1229, 2147483648
    %v1231 = vmul.f32 %v1230, 1.442695
    %v1232 = vpow.pop %v1231
    %v1233 = vadd.f32 %v1232, 1.0
    %v1234 = vrcp.pop %v1233
    %v1235 = vmul.f32 %v1233, %v1234
    %v1236 = vsub.f32 1.0, %v1235
    %v1237 = vmul.f32 %v1234, %v1236
    %v1238 = vadd.f32 %v1234, %v1237
    %vm1239 = vweird.f32 %v1233
    %vm1240 = vweird.f32 %v1234
    %vm1241 = vmor %vm1239, %vm1240
    %v1242 = vsel %vm1241, %v1234, %v1238
    %v1243 = vand.u32 2147483647, %v1233
    %vm1244 = vcmp.eq.f32.partialorder %v1243, 8.507059e+37
    %v1245 = vand.u32 %v1233, 2147483648
    %v1246 = vor.u32 1.1754944e-38, %v1245
    %v1247 = vsel %vm1244, %v1246, %v1242
    %v1248 = vmul.f32 1.0, %v1247
    %v1249 = vadd.f32 %v1227, %v430
    %1251 = vrot.lane.b32.xlu0 %v1249, 96
    %v1252 = vpop.permute.xlu0 %1251
    %v1254 = vmul.f32 %v1248, %v1252
    %1256 = vrot.lane.b32.xlu0 %v1254, 32
    %v1257 = vpop.permute.xlu0 %1256
    %v1259 = vadd.f32 %v1203, %v1257
    %v1260 = vtanh.pop %v1259
    %v1261 = vsub.f32 1.0, %v1248
    %1263 = vrot.lane.b32.xlu0 %v1260, 112
    %v1264 = vpop.permute.xlu0 %1263
    %v1266 = vmul.f32 %v1261, %v1264
    %v1267 = vmul.f32 %v1248, %v1118
    %v1268 = vadd.f32 %v1266, %v1267
    %vm1269 = vcmp.gt.f32.partialorder %v1133, 0.0
    %v1270 = vsel %vm1269, 1, 0
    %1271 = vset.pattern.permute.xlu0 0
    %1272 = vperm.xlu0 %1271, %v1270
    %v1273 = vpop.permute.xlu0 %1272
    %vm1274 = vcmp.eq.s32.totalorder %v1273, 1
    %v1275 = vsel %vm1274, %v1201, %v1111
    %vm1276 = vcmp.gt.f32.partialorder %v1134, 0.0
    %v1277 = vsel %vm1276, 1, 0
    %1278 = vset.pattern.permute.xlu0 0
    %1279 = vperm.xlu0 %1278, %v1277
    %v1280 = vpop.permute.xlu0 %1279
    %vm1281 = vcmp.eq.s32.totalorder %v1280, 1
    %v1282 = vsel %vm1281, %v1268, %v1118
    %v1283 = vsel %vm1274, %v1201, 0.0
    %1285 = vrot.lane.b32.xlu0 %v1283, 112
    %v1286 = vpop.permute.xlu0 %1285
    %s1288 = scalar_lea.vmem [#allocation4], 40
    %1289 = vst.msk [vmem:[%s1288] sm:$0xff] %vm316, %v1286
    %v1290 = vsel %vm1281, %v1268, 0.0
    %1292 = vrot.lane.b32.xlu0 %v1290, 112
    %v1293 = vpop.permute.xlu0 %1292
    %s1295 = scalar_lea.vmem [#allocation5], 16
    %1296 = vst.msk [vmem:[%s1295] sm:$0xff] %vm316, %v1293
    %v1297 = vld [vmem:[%s479] sm:$0xff]
    %v1298 = vld [vmem:[%s477] sm:$0xff]
    %s1299 = scalar_lea.vmem [#allocation2], 48
    %v1300 = vld [vmem:[%s1299] sm:$0xff]
    %1302 = vrot.lane.b32.xlu0 %v1275, 112
    %v1303 = vpop.permute.xlu0 %1302
    %v1304 = vsel %vm316, %v1303, 0
    %1306 = vmatpush.msra.mxu0 0.0
    %1307 = vmatpush.msra.mxu0 0.0
    %1308 = vmatpush.msra.mxu0 0.0
    %1309 = vmatpush.msra.mxu0 0.0
    %1310 = vmatpush.msra.mxu0 0.0
    %1311 = vmatpush.msra.mxu0 0.0
    %1312 = vmatpush.msra.mxu0 0.0
    %1313 = vmatpush.msra.mxu0 0.0
    %1314 = vmatpush.msra.mxu0 0.0
    %1315 = vmatpush.msra.mxu0 0.0
    %1316 = vmatpush.msra.mxu0 0.0
    %1317 = vmatpush.msra.mxu0 0.0
    %1318 = vmatpush.msra.mxu0 0.0
    %1319 = vmatpush.msra.mxu0 0.0
    %1320 = vmatpush.msra.mxu0 %v307
    %1321 = vmatpush.msra.mxu0 %v306
    %1322 = vmatmul.f32.gmra.mxu0 %v1304
    %v1323 = vpop.f32.mrf.mxu0
    %v1324 = vadd.f32 0.0, %v1323
    %1325 = vdwg.mxu0
    %v1326 = vadd.f32 %v1300, %v1324
    %v1327 = vxor.u32 %v1326, 2147483648
    %v1328 = vmul.f32 %v1327, 1.442695
    %v1329 = vpow.pop %v1328
    %v1330 = vadd.f32 %v1329, 1.0
    %v1331 = vrcp.pop %v1330
    %v1332 = vmul.f32 %v1330, %v1331
    %v1333 = vsub.f32 1.0, %v1332
    %v1334 = vmul.f32 %v1331, %v1333
    %v1335 = vadd.f32 %v1331, %v1334
    %vm1336 = vweird.f32 %v1330
    %vm1337 = vweird.f32 %v1331
    %vm1338 = vmor %vm1336, %vm1337
    %v1339 = vsel %vm1338, %v1331, %v1335
    %v1340 = vand.u32 2147483647, %v1330
    %vm1341 = vcmp.eq.f32.partialorder %v1340, 8.507059e+37
    %v1342 = vand.u32 %v1330, 2147483648
    %v1343 = vor.u32 1.1754944e-38, %v1342
    %v1344 = vsel %vm1341, %v1343, %v1339
    %v1345 = vmul.f32 1.0, %v1344
    %v1346 = vadd.f32 %v1324, %v363
    %1348 = vrot.lane.b32.xlu0 %v1346, 96
    %v1349 = vpop.permute.xlu0 %1348
    %v1351 = vmul.f32 %v1345, %v1349
    %1353 = vrot.lane.b32.xlu0 %v1351, 32
    %v1354 = vpop.permute.xlu0 %1353
    %v1356 = vadd.f32 %v1300, %v1354
    %v1357 = vtanh.pop %v1356
    %v1358 = vsub.f32 1.0, %v1345
    %1360 = vrot.lane.b32.xlu0 %v1357, 112
    %v1361 = vpop.permute.xlu0 %1360
    %v1363 = vmul.f32 %v1358, %v1361
    %v1364 = vmul.f32 %v1345, %v1275
    %v1365 = vadd.f32 %v1363, %v1364
    %s1366 = scalar_lea.vmem [#allocation3], 8
    %v1367 = vld [vmem:[%s1366] sm:$0xff]
    %1369 = vrot.lane.b32.xlu0 %v1282, 112
    %v1370 = vpop.permute.xlu0 %1369
    %v1371 = vsel %vm316, %v1370, 0
    %1373 = vmatpush.msra.mxu0 0.0
    %1374 = vmatpush.msra.mxu0 0.0
    %1375 = vmatpush.msra.mxu0 0.0
    %1376 = vmatpush.msra.mxu0 0.0
    %1377 = vmatpush.msra.mxu0 0.0
    %1378 = vmatpush.msra.mxu0 0.0
    %1379 = vmatpush.msra.mxu0 0.0
    %1380 = vmatpush.msra.mxu0 0.0
    %1381 = vmatpush.msra.mxu0 0.0
    %1382 = vmatpush.msra.mxu0 0.0
    %1383 = vmatpush.msra.mxu0 0.0
    %1384 = vmatpush.msra.mxu0 0.0
    %1385 = vmatpush.msra.mxu0 0.0
    %1386 = vmatpush.msra.mxu0 0.0
    %1387 = vmatpush.msra.mxu0 %v309
    %1388 = vmatpush.msra.mxu0 %v308
    %1389 = vmatmul.f32.gmra.mxu0 %v1371
    %v1390 = vpop.f32.mrf.mxu0
    %v1391 = vadd.f32 0.0, %v1390
    %1392 = vdwg.mxu0
    %v1393 = vadd.f32 %v1367, %v1391
    %v1394 = vxor.u32 %v1393, 2147483648
    %v1395 = vmul.f32 %v1394, 1.442695
    %v1396 = vpow.pop %v1395
    %v1397 = vadd.f32 %v1396, 1.0
    %v1398 = vrcp.pop %v1397
    %v1399 = vmul.f32 %v1397, %v1398
    %v1400 = vsub.f32 1.0, %v1399
    %v1401 = vmul.f32 %v1398, %v1400
    %v1402 = vadd.f32 %v1398, %v1401
    %vm1403 = vweird.f32 %v1397
    %vm1404 = vweird.f32 %v1398
    %vm1405 = vmor %vm1403, %vm1404
    %v1406 = vsel %vm1405, %v1398, %v1402
    %v1407 = vand.u32 2147483647, %v1397
    %vm1408 = vcmp.eq.f32.partialorder %v1407, 8.507059e+37
    %v1409 = vand.u32 %v1397, 2147483648
    %v1410 = vor.u32 1.1754944e-38, %v1409
    %v1411 = vsel %vm1408, %v1410, %v1406
    %v1412 = vmul.f32 1.0, %v1411
    %v1413 = vadd.f32 %v1391, %v430
    %1415 = vrot.lane.b32.xlu0 %v1413, 96
    %v1416 = vpop.permute.xlu0 %1415
    %v1418 = vmul.f32 %v1412, %v1416
    %1420 = vrot.lane.b32.xlu0 %v1418, 32
    %v1421 = vpop.permute.xlu0 %1420
    %v1423 = vadd.f32 %v1367, %v1421
    %v1424 = vtanh.pop %v1423
    %v1425 = vsub.f32 1.0, %v1412
    %1427 = vrot.lane.b32.xlu0 %v1424, 112
    %v1428 = vpop.permute.xlu0 %1427
    %v1430 = vmul.f32 %v1425, %v1428
    %v1431 = vmul.f32 %v1412, %v1282
    %v1432 = vadd.f32 %v1430, %v1431
    %vm1433 = vcmp.gt.f32.partialorder %v1297, 0.0
    %v1434 = vsel %vm1433, 1, 0
    %1435 = vset.pattern.permute.xlu0 0
    %1436 = vperm.xlu0 %1435, %v1434
    %v1437 = vpop.permute.xlu0 %1436
    %vm1438 = vcmp.eq.s32.totalorder %v1437, 1
    %v1439 = vsel %vm1438, %v1365, %v1275
    %vm1440 = vcmp.gt.f32.partialorder %v1298, 0.0
    %v1441 = vsel %vm1440, 1, 0
    %1442 = vset.pattern.permute.xlu0 0
    %1443 = vperm.xlu0 %1442, %v1441
    %v1444 = vpop.permute.xlu0 %1443
    %vm1445 = vcmp.eq.s32.totalorder %v1444, 1
    %v1446 = vsel %vm1445, %v1432, %v1282
    %v1447 = vsel %vm1438, %v1365, 0.0
    %1449 = vrot.lane.b32.xlu0 %v1447, 112
    %v1450 = vpop.permute.xlu0 %1449
    %s1452 = scalar_lea.vmem [#allocation4], 48
    %1453 = vst.msk [vmem:[%s1452] sm:$0xff] %vm316, %v1450
    %v1454 = vsel %vm1445, %v1432, 0.0
    %1456 = vrot.lane.b32.xlu0 %v1454, 112
    %v1457 = vpop.permute.xlu0 %1456
    %s1459 = scalar_lea.vmem [#allocation5], 8
    %1460 = vst.msk [vmem:[%s1459] sm:$0xff] %vm316, %v1457
    %v1461 = vld [vmem:[%s313] sm:$0xff]
    %v1462 = vld [vmem:[%s1] sm:$0xff]
    %s1463 = scalar_lea.vmem [#allocation2], 56
    %v1464 = vld [vmem:[%s1463] sm:$0xff]
    %1466 = vrot.lane.b32.xlu0 %v1439, 112
    %v1467 = vpop.permute.xlu0 %1466
    %v1468 = vsel %vm316, %v1467, 0
    %1470 = vmatpush.msra.mxu0 0.0
    %1471 = vmatpush.msra.mxu0 0.0
    %1472 = vmatpush.msra.mxu0 0.0
    %1473 = vmatpush.msra.mxu0 0.0
    %1474 = vmatpush.msra.mxu0 0.0
    %1475 = vmatpush.msra.mxu0 0.0
    %1476 = vmatpush.msra.mxu0 0.0
    %1477 = vmatpush.msra.mxu0 0.0
    %1478 = vmatpush.msra.mxu0 0.0
    %1479 = vmatpush.msra.mxu0 0.0
    %1480 = vmatpush.msra.mxu0 0.0
    %1481 = vmatpush.msra.mxu0 0.0
    %1482 = vmatpush.msra.mxu0 0.0
    %1483 = vmatpush.msra.mxu0 0.0
    %1484 = vmatpush.msra.mxu0 %v307
    %1485 = vmatpush.msra.mxu0 %v306
    %1486 = vmatmul.f32.gmra.mxu0 %v1468
    %v1487 = vpop.f32.mrf.mxu0
    %v1488 = vadd.f32 0.0, %v1487
    %1489 = vdwg.mxu0
    %v1490 = vadd.f32 %v1464, %v1488
    %v1491 = vxor.u32 %v1490, 2147483648
    %v1492 = vmul.f32 %v1491, 1.442695
    %v1493 = vpow.pop %v1492
    %v1494 = vadd.f32 %v1493, 1.0
    %v1495 = vrcp.pop %v1494
    %v1496 = vmul.f32 %v1494, %v1495
    %v1497 = vsub.f32 1.0, %v1496
    %v1498 = vmul.f32 %v1495, %v1497
    %v1499 = vadd.f32 %v1495, %v1498
    %vm1500 = vweird.f32 %v1494
    %vm1501 = vweird.f32 %v1495
    %vm1502 = vmor %vm1500, %vm1501
    %v1503 = vsel %vm1502, %v1495, %v1499
    %v1504 = vand.u32 2147483647, %v1494
    %vm1505 = vcmp.eq.f32.partialorder %v1504, 8.507059e+37
    %v1506 = vand.u32 %v1494, 2147483648
    %v1507 = vor.u32 1.1754944e-38, %v1506
    %v1508 = vsel %vm1505, %v1507, %v1503
    %v1509 = vmul.f32 1.0, %v1508
    %v1510 = vadd.f32 %v1488, %v363
    %1512 = vrot.lane.b32.xlu0 %v1510, 96
    %v1513 = vpop.permute.xlu0 %1512
    %v1515 = vmul.f32 %v1509, %v1513
    %1517 = vrot.lane.b32.xlu0 %v1515, 32
    %v1518 = vpop.permute.xlu0 %1517
    %v1520 = vadd.f32 %v1464, %v1518
    %v1521 = vtanh.pop %v1520
    %v1522 = vsub.f32 1.0, %v1509
    %1524 = vrot.lane.b32.xlu0 %v1521, 112
    %v1525 = vpop.permute.xlu0 %1524
    %v1527 = vmul.f32 %v1522, %v1525
    %v1528 = vmul.f32 %v1509, %v1439
    %v1529 = vadd.f32 %v1527, %v1528
    %v1530 = vld [vmem:[#allocation3] sm:$0xff]
    %1532 = vrot.lane.b32.xlu0 %v1446, 112
    %v1533 = vpop.permute.xlu0 %1532
    %v1534 = vsel %vm316, %v1533, 0
    %1536 = vmatpush.msra.mxu0 0.0
    %1537 = vmatpush.msra.mxu0 0.0
    %1538 = vmatpush.msra.mxu0 0.0
    %1539 = vmatpush.msra.mxu0 0.0
    %1540 = vmatpush.msra.mxu0 0.0
    %1541 = vmatpush.msra.mxu0 0.0
    %1542 = vmatpush.msra.mxu0 0.0
    %1543 = vmatpush.msra.mxu0 0.0
    %1544 = vmatpush.msra.mxu0 0.0
    %1545 = vmatpush.msra.mxu0 0.0
    %1546 = vmatpush.msra.mxu0 0.0
    %1547 = vmatpush.msra.mxu0 0.0
    %1548 = vmatpush.msra.mxu0 0.0
    %1549 = vmatpush.msra.mxu0 0.0
    %1550 = vmatpush.msra.mxu0 %v309
    %1551 = vmatpush.msra.mxu0 %v308
    %1552 = vmatmul.f32.gmra.mxu0 %v1534
    %v1553 = vpop.f32.mrf.mxu0
    %v1554 = vadd.f32 0.0, %v1553
    %1555 = vdwg.mxu0
    %v1556 = vadd.f32 %v1530, %v1554
    %v1557 = vxor.u32 %v1556, 2147483648
    %v1558 = vmul.f32 %v1557, 1.442695
    %v1559 = vpow.pop %v1558
    %v1560 = vadd.f32 %v1559, 1.0
    %v1561 = vrcp.pop %v1560
    %v1562 = vmul.f32 %v1560, %v1561
    %v1563 = vsub.f32 1.0, %v1562
    %v1564 = vmul.f32 %v1561, %v1563
    %v1565 = vadd.f32 %v1561, %v1564
    %vm1566 = vweird.f32 %v1560
    %vm1567 = vweird.f32 %v1561
    %vm1568 = vmor %vm1566, %vm1567
    %v1569 = vsel %vm1568, %v1561, %v1565
    %v1570 = vand.u32 2147483647, %v1560
    %vm1571 = vcmp.eq.f32.partialorder %v1570, 8.507059e+37
    %v1572 = vand.u32 %v1560, 2147483648
    %v1573 = vor.u32 1.1754944e-38, %v1572
    %v1574 = vsel %vm1571, %v1573, %v1569
    %v1575 = vmul.f32 1.0, %v1574
    %v1576 = vadd.f32 %v1554, %v430
    %1578 = vrot.lane.b32.xlu0 %v1576, 96
    %v1579 = vpop.permute.xlu0 %1578
    %v1581 = vmul.f32 %v1575, %v1579
    %1583 = vrot.lane.b32.xlu0 %v1581, 32
    %v1584 = vpop.permute.xlu0 %1583
    %v1586 = vadd.f32 %v1530, %v1584
    %v1587 = vtanh.pop %v1586
    %v1588 = vsub.f32 1.0, %v1575
    %1590 = vrot.lane.b32.xlu0 %v1587, 112
    %v1591 = vpop.permute.xlu0 %1590
    %v1593 = vmul.f32 %v1588, %v1591
    %v1594 = vmul.f32 %v1575, %v1446
    %v1595 = vadd.f32 %v1593, %v1594
    %vm1596 = vcmp.gt.f32.partialorder %v1461, 0.0
    %v1597 = vsel %vm1596, 1, 0
    %1598 = vset.pattern.permute.xlu0 0
    %1599 = vperm.xlu0 %1598, %v1597
    %v1600 = vpop.permute.xlu0 %1599
    %vm1601 = vcmp.eq.s32.totalorder %v1600, 1
    %vm1602 = vcmp.gt.f32.partialorder %v1462, 0.0
    %v1603 = vsel %vm1602, 1, 0
    %1604 = vset.pattern.permute.xlu0 0
    %1605 = vperm.xlu0 %1604, %v1603
    %v1606 = vpop.permute.xlu0 %1605
    %vm1607 = vcmp.eq.s32.totalorder %v1606, 1
    %v1608 = vsel %vm1601, %v1529, 0.0
    %1610 = vrot.lane.b32.xlu0 %v1608, 112
    %v1611 = vpop.permute.xlu0 %1610
    %s1613 = scalar_lea.vmem [#allocation4], 56
    %1614 = vst.msk [vmem:[%s1613] sm:$0xff] %vm316, %v1611
    %v1615 = vsel %vm1607, %v1595, 0.0
    %1617 = vrot.lane.b32.xlu0 %v1615, 112
    %v1618 = vpop.permute.xlu0 %1617
    %1620 = vst.msk [vmem:[#allocation5] sm:$0xff] %vm316, %v1618
    %v1621 = vld [vmem:[#allocation4] sm:$0xff]
    %v1622 = vld [vmem:[#allocation4 + $0x8] sm:$0xff]
    %v1623 = vld [vmem:[#allocation4 + $0x10] sm:$0xff]
    %v1624 = vld [vmem:[#allocation4 + $0x18] sm:$0xff]
    %v1625 = vld [vmem:[#allocation4 + $0x20] sm:$0xff]
    %v1626 = vld [vmem:[#allocation4 + $0x28] sm:$0xff]
    %v1627 = vld [vmem:[#allocation4 + $0x30] sm:$0xff]
    %v1628 = vld [vmem:[#allocation4 + $0x38] sm:$0xff]
    %v1629 = vld [vmem:[#allocation5] sm:$0xff]
    %v1630 = vld [vmem:[#allocation5 + $0x8] sm:$0xff]
    %v1631 = vld [vmem:[#allocation5 + $0x10] sm:$0xff]
    %v1632 = vld [vmem:[#allocation5 + $0x18] sm:$0xff]
    %v1633 = vld [vmem:[#allocation5 + $0x20] sm:$0xff]
    %v1634 = vld [vmem:[#allocation5 + $0x28] sm:$0xff]
    %v1635 = vld [vmem:[#allocation5 + $0x30] sm:$0xff]
    %v1636 = vld [vmem:[#allocation5 + $0x38] sm:$0xff]
    %v1637 = vpack.c.bf16 %v1622, %v1621
    %v1638 = vpack.c.bf16 %v1624, %v1623
    %v1639 = vpack.c.bf16 %v1626, %v1625
    %v1640 = vpack.c.bf16 %v1628, %v1627
    %v1641 = vld [vmem:[%s10] sm:$0xf]
    %v1642 = vld [vmem:[%s10 + $0x4] sm:$0xf]
    %v1643 = vpack.c.bf16 %v1630, %v1629
    %v1644 = vpack.c.bf16 %v1632, %v1631
    %v1645 = vpack.c.bf16 %v1634, %v1633
    %v1646 = vpack.c.bf16 %v1636, %v1635
    %v1647 = vld [vmem:[%s11] sm:$0xf]
    %v1648 = vld [vmem:[%s11 + $0x4] sm:$0xf]
    %v1651 = vunpack.c.l.b16 %v1647
    %v1652 = vunpack.c.l.b16 %v1648
    %v1653 = vpack.c.b16 %v1652, %v1651
    %v1656 = vsel %vm316, %v1643, 0
    %v1659 = vsel %vm316, %v1644, 0
    %v1662 = vsel %vm316, %v1645, 0
    %v1665 = vsel %vm316, %v1646, 0
    %1667 = vmatpush.bf16.msra.mxu0 0
    %1668 = vmatpush.bf16.msra.mxu0 0
    %1669 = vmatpush.bf16.msra.mxu0 0
    %1670 = vmatpush.bf16.msra.mxu0 0
    %1671 = vmatpush.bf16.msra.mxu0 0
    %1672 = vmatpush.bf16.msra.mxu0 0
    %1673 = vmatpush.bf16.msra.mxu0 0
    %1674 = vmatpush.bf16.msra.mxu0 %v1653
    %1675 = vmatmul.bf16.gmra.mxu0 %v1656
    %v1676 = vpop.f32.mrf.mxu0
    %v1677 = vadd.f32 0.0, %v1676
    %v1678 = vpop.f32.mrf.mxu0
    %v1679 = vadd.f32 0.0, %v1678
    %1680 = vmatmul.bf16.gmra.mxu0 %v1659
    %v1681 = vpop.f32.mrf.mxu0
    %v1682 = vadd.f32 0.0, %v1681
    %v1683 = vpop.f32.mrf.mxu0
    %v1684 = vadd.f32 0.0, %v1683
    %1685 = vmatmul.bf16.gmra.mxu0 %v1662
    %v1686 = vpop.f32.mrf.mxu0
    %v1687 = vadd.f32 0.0, %v1686
    %v1688 = vpop.f32.mrf.mxu0
    %v1689 = vadd.f32 0.0, %v1688
    %1690 = vmatmul.bf16.gmra.mxu0 %v1665
    %v1691 = vpop.f32.mrf.mxu0
    %v1692 = vadd.f32 0.0, %v1691
    %v1693 = vpop.f32.mrf.mxu0
    %v1694 = vadd.f32 0.0, %v1693
    %1695 = vdwg.mxu0
    %v1698 = vunpack.c.l.b16 %v1641
    %v1699 = vunpack.c.l.b16 %v1642
    %v1700 = vpack.c.b16 %v1699, %v1698
    %v1703 = vsel %vm316, %v1637, 0
    %v1706 = vsel %vm316, %v1638, 0
    %v1709 = vsel %vm316, %v1639, 0
    %v1712 = vsel %vm316, %v1640, 0
    %1714 = vmatpush.bf16.msra.mxu0 0
    %1715 = vmatpush.bf16.msra.mxu0 0
    %1716 = vmatpush.bf16.msra.mxu0 0
    %1717 = vmatpush.bf16.msra.mxu0 0
    %1718 = vmatpush.bf16.msra.mxu0 0
    %1719 = vmatpush.bf16.msra.mxu0 0
    %1720 = vmatpush.bf16.msra.mxu0 0
    %1721 = vmatpush.bf16.msra.mxu0 %v1700
    %1722 = vmatmul.bf16.gmra.mxu0 %v1703
    %v1723 = vpop.f32.mrf.mxu0
    %v1724 = vadd.f32 %v1677, %v1723
    %v1725 = vpop.f32.mrf.mxu0
    %v1726 = vadd.f32 %v1679, %v1725
    %1727 = vmatmul.bf16.gmra.mxu0 %v1706
    %v1728 = vpop.f32.mrf.mxu0
    %v1729 = vadd.f32 %v1682, %v1728
    %v1730 = vpop.f32.mrf.mxu0
    %v1731 = vadd.f32 %v1684, %v1730
    %1732 = vmatmul.bf16.gmra.mxu0 %v1709
    %v1733 = vpop.f32.mrf.mxu0
    %v1734 = vadd.f32 %v1687, %v1733
    %v1735 = vpop.f32.mrf.mxu0
    %v1736 = vadd.f32 %v1689, %v1735
    %1737 = vmatmul.bf16.gmra.mxu0 %v1712
    %v1738 = vpop.f32.mrf.mxu0
    %v1739 = vadd.f32 %v1692, %v1738
    %v1740 = vpop.f32.mrf.mxu0
    %v1741 = vadd.f32 %v1694, %v1740
    %1742 = vdwg.mxu0
    %v1743 = vld [vmem:[%s12] sm:$0x1]
    %v1745 = vperm.slane %v1743, 0
    %v1747 = vadd.f32 %v1724, %v1745
    %v1748 = vadd.f32 %v1726, %v1745
    %v1749 = vadd.f32 %v1729, %v1745
    %v1750 = vadd.f32 %v1731, %v1745
    %v1751 = vadd.f32 %v1734, %v1745
    %v1752 = vadd.f32 %v1736, %v1745
    %v1753 = vadd.f32 %v1739, %v1745
    %v1754 = vadd.f32 %v1741, %v1745
    %v1755 = vtanh.pop %v1747
    %v1756 = vtanh.pop %v1748
    %v1757 = vtanh.pop %v1749
    %v1758 = vtanh.pop %v1750
    %v1759 = vtanh.pop %v1751
    %v1760 = vtanh.pop %v1752
    %v1761 = vtanh.pop %v1753
    %v1762 = vtanh.pop %v1754
    %v1763 = vld [vmem:[%s13] sm:$0x1]
    %v1765 = vperm.slane %v1763, 0
    %v1767 = vmul.f32 %v1755, %v1765
    %v1768 = vmul.f32 %v1756, %v1765
    %v1769 = vmul.f32 %v1757, %v1765
    %v1770 = vmul.f32 %v1758, %v1765
    %v1771 = vmul.f32 %v1759, %v1765
    %v1772 = vmul.f32 %v1760, %v1765
    %v1773 = vmul.f32 %v1761, %v1765
    %v1774 = vmul.f32 %v1762, %v1765
    %v1775 = vsel %vm198, %v1767, 0.0
    %1776 = vadd.xlane.f32.xlu0 %v1775
    %v1777 = vpop.xlane.xlu0 %1776
    %v1778 = vsel %vm198, %v1768, 0.0
    %1779 = vadd.xlane.f32.xlu0 %v1778
    %v1780 = vpop.xlane.xlu0 %1779
    %v1781 = vsel %vm198, %v1769, 0.0
    %1782 = vadd.xlane.f32.xlu0 %v1781
    %v1783 = vpop.xlane.xlu0 %1782
    %v1784 = vsel %vm198, %v1770, 0.0
    %1785 = vadd.xlane.f32.xlu0 %v1784
    %v1786 = vpop.xlane.xlu0 %1785
    %v1787 = vsel %vm198, %v1771, 0.0
    %1788 = vadd.xlane.f32.xlu0 %v1787
    %v1789 = vpop.xlane.xlu0 %1788
    %v1790 = vsel %vm198, %v1772, 0.0
    %1791 = vadd.xlane.f32.xlu0 %v1790
    %v1792 = vpop.xlane.xlu0 %1791
    %v1793 = vsel %vm198, %v1773, 0.0
    %1794 = vadd.xlane.f32.xlu0 %v1793
    %v1795 = vpop.xlane.xlu0 %1794
    %v1796 = vsel %vm198, %v1774, 0.0
    %1797 = vadd.xlane.f32.xlu0 %v1796
    %v1798 = vpop.xlane.xlu0 %1797
    %v1799 = vld [vmem:[%s1] sm:$0xff]
    %v1800 = vld [vmem:[%s1 + $0x8] sm:$0xff]
    %v1801 = vld [vmem:[%s1 + $0x10] sm:$0xff]
    %v1802 = vld [vmem:[%s1 + $0x18] sm:$0xff]
    %v1803 = vld [vmem:[%s1 + $0x20] sm:$0xff]
    %v1804 = vld [vmem:[%s1 + $0x28] sm:$0xff]
    %v1805 = vld [vmem:[%s1 + $0x30] sm:$0xff]
    %v1806 = vld [vmem:[%s1 + $0x38] sm:$0xff]
    %vm1807 = vcmp.gt.f32.partialorder %v1799, 0.0
    %vm1808 = vcmp.gt.f32.partialorder %v1800, 0.0
    %vm1809 = vcmp.gt.f32.partialorder %v1801, 0.0
    %vm1810 = vcmp.gt.f32.partialorder %v1802, 0.0
    %vm1811 = vcmp.gt.f32.partialorder %v1803, 0.0
    %vm1812 = vcmp.gt.f32.partialorder %v1804, 0.0
    %vm1813 = vcmp.gt.f32.partialorder %v1805, 0.0
    %vm1814 = vcmp.gt.f32.partialorder %v1806, 0.0
    %v1815 = vsel %vm1807, %v1777, 0.0
    %v1816 = vsel %vm1808, %v1780, 0.0
    %v1817 = vsel %vm1809, %v1783, 0.0
    %v1818 = vsel %vm1810, %v1786, 0.0
    %v1819 = vsel %vm1811, %v1789, 0.0
    %v1820 = vsel %vm1812, %v1792, 0.0
    %v1821 = vsel %vm1813, %v1795, 0.0
    %v1822 = vsel %vm1814, %v1798, 0.0
    %vm1823 = vcmask 7168
    %v1824 = vsel %vm1823, %v1815, -inf
    %v1825 = vsel %vm1823, %v1816, -inf
    %v1826 = vsel %vm1823, %v1817, -inf
    %v1827 = vsel %vm1823, %v1818, -inf
    %v1828 = vsel %vm1823, %v1819, -inf
    %v1829 = vmax.f32 %v1824, %v1828
    %v1830 = vsel %vm1823, %v1820, -inf
    %v1831 = vmax.f32 %v1825, %v1830
    %v1832 = vsel %vm1823, %v1821, -inf
    %v1833 = vmax.f32 %v1826, %v1832
    %v1834 = vsel %vm1823, %v1822, -inf
    %v1835 = vmax.f32 %v1827, %v1834
    %v1836 = vmax.f32 %v1829, %v1831
    %v1837 = vmax.f32 %v1833, %v1835
    %v1838 = vmax.f32 %v1836, %v1837
    %v1839 = vsub.f32 %v1777, %v1838
    %v1840 = vsub.f32 %v1780, %v1838
    %v1841 = vsub.f32 %v1783, %v1838
    %v1842 = vsub.f32 %v1786, %v1838
    %v1843 = vsub.f32 %v1789, %v1838
    %v1844 = vsub.f32 %v1792, %v1838
    %v1845 = vsub.f32 %v1795, %v1838
    %v1846 = vsub.f32 %v1798, %v1838
    %v1847 = vmul.f32 %v1839, 1.442695
    %v1848 = vpow.pop %v1847
    %v1849 = vmul.f32 %v1840, 1.442695
    %v1850 = vpow.pop %v1849
    %v1851 = vmul.f32 %v1841, 1.442695
    %v1852 = vpow.pop %v1851
    %v1853 = vmul.f32 %v1842, 1.442695
    %v1854 = vpow.pop %v1853
    %v1855 = vmul.f32 %v1843, 1.442695
    %v1856 = vpow.pop %v1855
    %v1857 = vmul.f32 %v1844, 1.442695
    %v1858 = vpow.pop %v1857
    %v1859 = vmul.f32 %v1845, 1.442695
    %v1860 = vpow.pop %v1859
    %v1861 = vmul.f32 %v1846, 1.442695
    %v1862 = vpow.pop %v1861
    %v1863 = vmul.f32 %v1848, %v1799
    %v1864 = vmul.f32 %v1850, %v1800
    %v1865 = vmul.f32 %v1852, %v1801
    %v1866 = vmul.f32 %v1854, %v1802
    %v1867 = vmul.f32 %v1856, %v1803
    %v1868 = vmul.f32 %v1858, %v1804
    %v1869 = vmul.f32 %v1860, %v1805
    %v1870 = vmul.f32 %v1862, %v1806
    %v1871 = vsel %vm1823, %v1863, 0.0
    %v1872 = vsel %vm1823, %v1864, 0.0
    %v1873 = vadd.f32 %v1871, %v1872
    %v1874 = vsel %vm1823, %v1865, 0.0
    %v1875 = vadd.f32 %v1873, %v1874
    %v1876 = vsel %vm1823, %v1866, 0.0
    %v1877 = vadd.f32 %v1875, %v1876
    %v1878 = vsel %vm1823, %v1867, 0.0
    %v1879 = vadd.f32 %v1877, %v1878
    %v1880 = vsel %vm1823, %v1868, 0.0
    %v1881 = vadd.f32 %v1879, %v1880
    %v1882 = vsel %vm1823, %v1869, 0.0
    %v1883 = vadd.f32 %v1881, %v1882
    %v1884 = vsel %vm1823, %v1870, 0.0
    %v1885 = vadd.f32 %v1883, %v1884
    %v1886 = vsub.f32 0.0, %v1838
    %v1887 = vmul.f32 %v1886, 1.442695
    %v1888 = vpow.pop %v1887
    %v1889 = vmul.f32 %v1888, 0.0001
    %v1890 = vadd.f32 %v1885, %v1889
    %v1891 = vrcp.pop %v1890
    %v1892 = vmul.f32 %v1890, %v1891
    %v1893 = vsub.f32 1.0, %v1892
    %v1894 = vmul.f32 %v1891, %v1893
    %v1895 = vadd.f32 %v1891, %v1894
    %vm1896 = vweird.f32 %v1890
    %vm1897 = vweird.f32 %v1891
    %vm1898 = vmor %vm1896, %vm1897
    %v1899 = vsel %vm1898, %v1891, %v1895
    %v1900 = vand.u32 2147483647, %v1890
    %vm1901 = vcmp.eq.f32.partialorder %v1900, 8.507059e+37
    %v1902 = vand.u32 %v1890, 2147483648
    %v1903 = vor.u32 1.1754944e-38, %v1902
    %v1904 = vsel %vm1901, %v1903, %v1899
    %v1905 = vmul.f32 %v1863, %v1904
    %v1906 = vmul.f32 %v1864, %v1904
    %v1907 = vmul.f32 %v1865, %v1904
    %v1908 = vmul.f32 %v1866, %v1904
    %v1909 = vmul.f32 %v1867, %v1904
    %v1910 = vmul.f32 %v1868, %v1904
    %v1911 = vmul.f32 %v1869, %v1904
    %v1912 = vmul.f32 %v1870, %v1904
    %1914 = vset.pattern.permute.xlu0 0
    %1915 = vperm.xlu0 %1914, %v1905
    %v1916 = vpop.permute.xlu0 %1915
    %1919 = vset.pattern.permute.xlu0 0
    %1920 = vperm.xlu0 %1919, %v1906
    %v1921 = vpop.permute.xlu0 %1920
    %1924 = vset.pattern.permute.xlu0 0
    %1925 = vperm.xlu0 %1924, %v1907
    %v1926 = vpop.permute.xlu0 %1925
    %1929 = vset.pattern.permute.xlu0 0
    %1930 = vperm.xlu0 %1929, %v1908
    %v1931 = vpop.permute.xlu0 %1930
    %1934 = vset.pattern.permute.xlu0 0
    %1935 = vperm.xlu0 %1934, %v1909
    %v1936 = vpop.permute.xlu0 %1935
    %1939 = vset.pattern.permute.xlu0 0
    %1940 = vperm.xlu0 %1939, %v1910
    %v1941 = vpop.permute.xlu0 %1940
    %1944 = vset.pattern.permute.xlu0 0
    %1945 = vperm.xlu0 %1944, %v1911
    %v1946 = vpop.permute.xlu0 %1945
    %1949 = vset.pattern.permute.xlu0 0
    %1950 = vperm.xlu0 %1949, %v1912
    %v1951 = vpop.permute.xlu0 %1950
    %v1953 = vmul.f32 %v1916, %v1621
    %v1954 = vmul.f32 %v1921, %v1622
    %v1955 = vmul.f32 %v1926, %v1623
    %v1956 = vmul.f32 %v1931, %v1624
    %v1957 = vmul.f32 %v1936, %v1625
    %v1958 = vmul.f32 %v1941, %v1626
    %v1959 = vmul.f32 %v1946, %v1627
    %v1960 = vmul.f32 %v1951, %v1628
    %v1961 = vsel %vm316, %v1953, 0.0
    %v1962 = vsel %vm316, %v1954, 0.0
    %v1963 = vadd.f32 %v1961, %v1962
    %v1964 = vsel %vm316, %v1955, 0.0
    %v1965 = vadd.f32 %v1963, %v1964
    %v1966 = vsel %vm316, %v1956, 0.0
    %v1967 = vadd.f32 %v1965, %v1966
    %v1968 = vsel %vm316, %v1957, 0.0
    %v1969 = vadd.f32 %v1967, %v1968
    %v1970 = vsel %vm316, %v1958, 0.0
    %v1971 = vadd.f32 %v1969, %v1970
    %v1972 = vsel %vm316, %v1959, 0.0
    %v1973 = vadd.f32 %v1971, %v1972
    %v1974 = vsel %vm316, %v1960, 0.0
    %v1975 = vadd.f32 %v1973, %v1974
    %v1976 = vmul.f32 %v1916, %v1629
    %v1977 = vmul.f32 %v1921, %v1630
    %v1978 = vmul.f32 %v1926, %v1631
    %v1979 = vmul.f32 %v1931, %v1632
    %v1980 = vmul.f32 %v1936, %v1633
    %v1981 = vmul.f32 %v1941, %v1634
    %v1982 = vmul.f32 %v1946, %v1635
    %v1983 = vmul.f32 %v1951, %v1636
    %v1984 = vsel %vm316, %v1976, 0.0
    %v1985 = vsel %vm316, %v1977, 0.0
    %v1986 = vadd.f32 %v1984, %v1985
    %v1987 = vsel %vm316, %v1978, 0.0
    %v1988 = vadd.f32 %v1986, %v1987
    %v1989 = vsel %vm316, %v1979, 0.0
    %v1990 = vadd.f32 %v1988, %v1989
    %v1991 = vsel %vm316, %v1980, 0.0
    %v1992 = vadd.f32 %v1990, %v1991
    %v1993 = vsel %vm316, %v1981, 0.0
    %v1994 = vadd.f32 %v1992, %v1993
    %v1995 = vsel %vm316, %v1982, 0.0
    %v1996 = vadd.f32 %v1994, %v1995
    %v1997 = vsel %vm316, %v1983, 0.0
    %v1998 = vadd.f32 %v1996, %v1997
    %2000 = vrot.lane.b32.xlu0 %v1998, 16
    %v2001 = vpop.permute.xlu0 %2000
    %v2003 = vsel %vm316, %v1975, %v2001
    %v2004 = vsel %vm198, %v2003, 0.0
    %2005 = vst [vmem:[#allocation20] sm:$0xff] %v2004
    // Predicated region
    $region90: #{tpu_custom_call.1} parent=1 // pred_check
      _
    $region91: #{tpu_custom_call.1} parent=1 // pred_check_branch
      %2007 = sbr.rel (0) target = $region93
    $region92: #{tpu_custom_call.1} parent=1 // pred_region
      %2009 = vsyncadd [#allocation8], 0
      %s2011 = sshll.u32 [#allocation20], 4
      %s2012 = int_to_ptr.vmem [resolvable:$true] %s2011
      %s2013 = sshll.u32 %s14, 4
      %s2014 = int_to_ptr.hbm [resolvable:$true] %s2013
      %2016 = dma.vmem_to_hbm [thread:$0]  %s2012, 128, %s2014, [#allocation8]
    $region93: #{tpu_custom_call.1} parent=1 // pred_fallthru
      _
    // Predicated region
    $region94: #{tpu_custom_call.1} parent=1 // pred_check
      _
    $region95: #{tpu_custom_call.1} parent=1 // pred_check_branch
      %2018 = sbr.rel (0) target = $region97
    $region96: #{tpu_custom_call.1} parent=1 // pred_region
      %2020 = dma.done [#allocation8], 128
    $region97: #{tpu_custom_call.1} parent=1 // pred_fallthru
      _
    %2021 = vsyncpa [#allocation7], 1
    %2022 = vsyncpa [#allocation10], 1
    %2023 = vsyncpa [#allocation13], 1
    %2024 = vsyncpa [#allocation16], 1
    %2025 = vsyncpa [#allocation19], 1
    %2026 = vsyncpa [#allocation8], 1

</llo_original>
